<compile_context>
chip_gen: v7x
topology: tpu7x:2x2x1
jax: 0.10.0
libtpu: 0.0.40
codegen_flags: <defaults>
</compile_context>

<pallas_src>
import functools

import jax
import jax.numpy as jnp
from jax import lax
from jax.experimental import pallas as pl
from jax.experimental.pallas import tpu as pltpu


# ----------------------------------------------------------------------------
# Fused conv kernel: (Cout,K) @ (K,HW)  + bias + InstanceNorm + act + skip
# ----------------------------------------------------------------------------
def _make_conv_kernel(do_norm, act, has_skip):
    def kernel(*refs):
        if has_skip:
            x_ref, w_ref, b_ref, s_ref, o_ref = refs
        else:
            x_ref, w_ref, b_ref, o_ref = refs
        # x_ref: (1, K, HW) bf16, w_ref: (Cout, K) bf16, b_ref: (Cout, 1) f32
        acc = jnp.dot(w_ref[...], x_ref[0],
                      preferred_element_type=jnp.float32)        # (Cout, HW)
        acc = acc + b_ref[...]                                    # bias bcast
        if do_norm:  # InstanceNorm2d(affine=False, eps=1e-5), stats in f32
            mean = jnp.mean(acc, axis=-1, keepdims=True)          # lane reduce
            var = jnp.mean(jnp.square(acc - mean), axis=-1, keepdims=True)
            acc = (acc - mean) * lax.rsqrt(var + 1e-5)
        if act == "relu":
            acc = jnp.maximum(acc, 0.0)
        elif act == "tanh":
            acc = jnp.tanh(acc)
        if has_skip:  # residual: out = skip + block(x)
            acc = acc + s_ref[0].astype(jnp.float32)
        o_ref[0] = acc.astype(o_ref.dtype)
    return kernel


def pallas_conv_fused(patches, w_mat, bias, *, do_norm, act, skip=None,
                      out_dtype=jnp.bfloat16):
    """patches: (N, K, HW) bf16;  w_mat: (Cout, K) bf16;  bias: (Cout,) f32;
    optional skip: (N, Cout, HW).  Returns (N, Cout, HW) in out_dtype."""
    N, K, HW = patches.shape
    Cout = w_mat.shape[0]
    kernel = _make_conv_kernel(do_norm, act, skip is not None)

    in_specs = [
        pl.BlockSpec((1, K, HW), lambda n: (n, 0, 0)),
        pl.BlockSpec((Cout, K), lambda n: (0, 0)),
        pl.BlockSpec((Cout, 1), lambda n: (0, 0)),
    ]
    args = [patches, w_mat.astype(jnp.bfloat16),
            bias.reshape(Cout, 1).astype(jnp.float32)]
    if skip is not None:
        in_specs.append(pl.BlockSpec((1, Cout, HW), lambda n: (n, 0, 0)))
        args.append(skip)

    out_itemsize = 2 if out_dtype == jnp.bfloat16 else 4
    bytes_accessed = (int(patches.size) * 2 + int(w_mat.size) * 2 + Cout * 4
                      + N * Cout * HW * out_itemsize
                      + (int(skip.size) * 2 if skip is not None else 0))
    cost = pl.CostEstimate(
        flops=2 * N * Cout * K * HW,
        transcendentals=(N * Cout * HW if act == "tanh" else 0),
        bytes_accessed=bytes_accessed)

    return pl.pallas_call(
        kernel,
        out_shape=jax.ShapeDtypeStruct((N, Cout, HW), out_dtype),
        grid=(N,),
        in_specs=in_specs,
        out_specs=pl.BlockSpec((1, Cout, HW), lambda n: (n, 0, 0)),
        compiler_params=pltpu.CompilerParams(
            dimension_semantics=("parallel",),
            vmem_limit_bytes=32 * 1024 * 1024),
        cost_estimate=cost,
    )(*args)


# ----------------------------------------------------------------------------
# Conv glue (padding / im2col layout stays in plain JAX, bf16)
# ----------------------------------------------------------------------------
def conv2d_block(x, w, b, *, stride=1, pad=0, pad_mode="constant",
                 do_norm=True, act="relu", skip=None, out_dtype=jnp.bfloat16):
    """x: NCHW activation.  w: PyTorch Conv2d layout (Cout, Cin, kh, kw).
    Returns NCHW in out_dtype with bias/IN/act/skip fused into the kernel."""
    Cout, Cin, kh, kw = w.shape
    if pad > 0:
        if pad_mode == "reflect":
            assert x.shape[2] > pad and x.shape[3] > pad, "reflect pad too wide"
        x = jnp.pad(x, ((0, 0), (0, 0), (pad, pad), (pad, pad)), mode=pad_mode)
    N, _, Hp, Wp = x.shape
    Ho = (Hp - kh) // stride + 1
    Wo = (Wp - kw) // stride + 1

    x = x.astype(jnp.bfloat16)
    cols = []
    for dy in range(kh):
        for dx in range(kw):
            cols.append(x[:, :, dy:dy + (Ho - 1) * stride + 1:stride,
                             dx:dx + (Wo - 1) * stride + 1:stride])
    # K ordering (cin, dy, dx) matches w.reshape(Cout, Cin*kh*kw)
    patches = jnp.stack(cols, axis=2).reshape(N, Cin * kh * kw, Ho * Wo)
    w_mat = w.reshape(Cout, Cin * kh * kw)

    skip2d = None
    if skip is not None:
        skip2d = skip.reshape(N, Cout, Ho * Wo)

    y = pallas_conv_fused(patches, w_mat, b, do_norm=do_norm, act=act,
                          skip=skip2d, out_dtype=out_dtype)
    return y.reshape(N, Cout, Ho, Wo)


def conv_transpose2d_block(x, w_t, b, *, stride=2, pad=1, output_pad=1,
                           do_norm=True, act="relu", out_dtype=jnp.bfloat16):
    """ConvTranspose2d == zero-dilate input, pad, conv with flipped weights.
    w_t: PyTorch ConvTranspose2d layout (Cin, Cout, kh, kw).  x: NCHW."""
    Cin, Cout, kh, kw = w_t.shape
    N, _, H, W = x.shape
    Hd, Wd = (H - 1) * stride + 1, (W - 1) * stride + 1
    xd = jnp.zeros((N, Cin, Hd, Wd), x.dtype).at[:, :, ::stride, ::stride].set(x)
    p = kh - 1 - pad
    xd = jnp.pad(xd, ((0, 0), (0, 0), (p, p + output_pad), (p, p + output_pad)))
    w_conv = jnp.transpose(jnp.flip(w_t, axis=(2, 3)), (1, 0, 2, 3))  # (Cout,Cin,kh,kw)
    # TODO(synk): sub-pixel decomposition would skip the 75% zero MXU work.
    return conv2d_block(xd, w_conv, b, stride=1, pad=0,
                        do_norm=do_norm, act=act, out_dtype=out_dtype)


# ----------------------------------------------------------------------------
# ResNet generator (parameters + forward), standard CycleGAN architecture:
#   c7s1-ngf, d(2ngf), d(4ngf), n_blocks x ResnetBlock, u(2ngf), u(ngf),
#   c7s1-out_c, Tanh.  InstanceNorm2d(affine=False).
# ----------------------------------------------------------------------------
def init_generator_params(key, in_c, out_c, ngf=8, n_blocks=2):
    def conv_p(k, co, ci, ksz):
        kw_, kb_ = jax.random.split(k)
        return {"w": 0.02 * jax.random.normal(kw_, (co, ci, ksz, ksz), jnp.float32),
                "b": 0.02 * jax.random.normal(kb_, (co,), jnp.float32)}

    def convT_p(k, ci, co, ksz):
        kw_, kb_ = jax.random.split(k)
        return {"w": 0.02 * jax.random.normal(kw_, (ci, co, ksz, ksz), jnp.float32),
                "b": 0.02 * jax.random.normal(kb_, (co,), jnp.float32)}

    keys = jax.random.split(key, 6 + 2 * n_blocks)
    p = {
        "c1": conv_p(keys[0], ngf, in_c, 7),
        "d1": conv_p(keys[1], ngf * 2, ngf, 3),
        "d2": conv_p(keys[2], ngf * 4, ngf * 2, 3),
        "u1": convT_p(keys[3], ngf * 4, ngf * 2, 3),
        "u2": convT_p(keys[4], ngf * 2, ngf, 3),
        "c2": conv_p(keys[5], out_c, ngf, 7),
    }
    for i in range(n_blocks):
        p[f"r{i}_1"] = conv_p(keys[6 + 2 * i], ngf * 4, ngf * 4, 3)
        p[f"r{i}_2"] = conv_p(keys[7 + 2 * i], ngf * 4, ngf * 4, 3)
    return p


def generator_forward(params, x_nchw, n_blocks=2):
    x = x_nchw.astype(jnp.float32)          # NCHW kept end-to-end
    h = conv2d_block(x, params["c1"]["w"], params["c1"]["b"],
                     stride=1, pad=3, pad_mode="reflect", do_norm=True, act="relu")
    h = conv2d_block(h, params["d1"]["w"], params["d1"]["b"],
                     stride=2, pad=1, do_norm=True, act="relu")
    h = conv2d_block(h, params["d2"]["w"], params["d2"]["b"],
                     stride=2, pad=1, do_norm=True, act="relu")
    for i in range(n_blocks):
        r = conv2d_block(h, params[f"r{i}_1"]["w"], params[f"r{i}_1"]["b"],
                         stride=1, pad=1, pad_mode="reflect",
                         do_norm=True, act="relu")
        h = conv2d_block(r, params[f"r{i}_2"]["w"], params[f"r{i}_2"]["b"],
                         stride=1, pad=1, pad_mode="reflect",
                         do_norm=True, act="none", skip=h)
    h = conv_transpose2d_block(h, params["u1"]["w"], params["u1"]["b"],
                               stride=2, pad=1, output_pad=1,
                               do_norm=True, act="relu")
    h = conv_transpose2d_block(h, params["u2"]["w"], params["u2"]["b"],
                               stride=2, pad=1, output_pad=1,
                               do_norm=True, act="relu")
    h = conv2d_block(h, params["c2"]["w"], params["c2"]["b"],
                     stride=1, pad=3, pad_mode="reflect",
                     do_norm=False, act="tanh", out_dtype=jnp.float32)
    return h                                 # NCHW float32


@functools.partial(jax.jit, static_argnames=("n_blocks",))
def cyclegan_forward(genG_params, genF_params, real_X, real_Y, n_blocks=2):
    fake_Y = generator_forward(genG_params, real_X, n_blocks)
    fake_X = generator_forward(genF_params, real_Y, n_blocks)
    fake_fake_X = generator_forward(genF_params, fake_Y, n_blocks)
    fake_fake_Y = generator_forward(genG_params, fake_X, n_blocks)
    return fake_Y, fake_X, fake_fake_X, fake_fake_Y


# ----------------------------------------------------------------------------
if __name__ == "__main__":
    B, C_IN, C_OUT, HW = 2, 3, 3, 16
    NGF, N_BLOCKS = 8, 2

    key = jax.random.PRNGKey(0)
    kG, kF, kX, kY = jax.random.split(key, 4)

    genG = init_generator_params(kG, C_IN, C_OUT, ngf=NGF, n_blocks=N_BLOCKS)
    genF = init_generator_params(kF, C_OUT, C_IN, ngf=NGF, n_blocks=N_BLOCKS)

    real_X = jax.random.normal(kX, (B, C_IN, HW, HW), jnp.float32)
    real_Y = jax.random.normal(kY, (B, C_OUT, HW, HW), jnp.float32)

    outs = cyclegan_forward(genG, genF, real_X, real_Y, n_blocks=N_BLOCKS)
    outs = jax.block_until_ready(outs)

    fake_Y, fake_X, fake_fake_X, fake_fake_Y = outs
    assert fake_Y.shape == (B, C_OUT, HW, HW)
    assert fake_X.shape == (B, C_IN, HW, HW)
    assert fake_fake_X.shape == (B, C_IN, HW, HW)
    assert fake_fake_Y.shape == (B, C_OUT, HW, HW)
    assert all(bool(jnp.all(jnp.isfinite(o))) for o in outs)
    print("KERNEL_OK")
</pallas_src>

<mosaic_0001>
module attributes {stable_mosaic.version = 11 : i64} {
  func.func @kernel(%arg0: i32, %arg1: memref<1x147x256xbf16, #tpu.memory_space<vmem>>, %arg2: memref<8x147xbf16, #tpu.memory_space<vmem>>, %arg3: memref<8x1xf32, #tpu.memory_space<vmem>>, %arg4: memref<1x8x256xbf16, #tpu.memory_space<vmem>>) attributes {dimension_semantics = [#tpu.dimension_semantics<parallel>], iteration_bounds = array<i64: 2>, scalar_prefetch = 0 : i64, scratch_operands = 0 : i64, tpu.core_type = #tpu.core_type<tc>, window_params = [{transform_indices = @transform_0, window_bounds = array<i64: 1, 147, 256>}, {pipeline_mode = #tpu.pipeline_mode<synchronous>, transform_indices = @transform_1, window_bounds = array<i64: 8, 147>}, {pipeline_mode = #tpu.pipeline_mode<synchronous>, transform_indices = @transform_2, window_bounds = array<i64: 8, 1>}, {transform_indices = @transform_3, window_bounds = array<i64: 1, 8, 256>}]} {
    %c0 = arith.constant 0 : index
    %c0_0 = arith.constant 0 : index
    %0 = vector.load %arg2[%c0, %c0_0] : memref<8x147xbf16, #tpu.memory_space<vmem>>, vector<8x147xbf16>
    %c0_1 = arith.constant 0 : index
    %c0_2 = arith.constant 0 : index
    %c0_3 = arith.constant 0 : index
    %1 = vector.load %arg1[%c0_1, %c0_2, %c0_3] : memref<1x147x256xbf16, #tpu.memory_space<vmem>>, vector<1x147x256xbf16>
    %2 = vector.shape_cast %1 : vector<1x147x256xbf16> to vector<147x256xbf16>
    %cst = arith.constant dense<0.000000e+00> : vector<8x256xf32>
    %3 = tpu.matmul %0, %2, %cst {dimension_numbers = #tpu.dot_dimension_numbers<[1], [0], [0], [1], [0, 0, 1, 1], [], []>} : vector<8x147xbf16>, vector<147x256xbf16>, vector<8x256xf32> -> vector<8x256xf32>
    %c0_4 = arith.constant 0 : index
    %c0_5 = arith.constant 0 : index
    %4 = vector.load %arg3[%c0_4, %c0_5] : memref<8x1xf32, #tpu.memory_space<vmem>>, vector<8x1xf32>
    %5 = vector.broadcast %4 : vector<8x1xf32> to vector<8x256xf32>
    %6 = arith.addf %3, %5 : vector<8x256xf32>
    %cst_6 = arith.constant dense<0.000000e+00> : vector<8xf32>
    %7 = vector.multi_reduction <add>, %6, %cst_6 [1] : vector<8x256xf32> to vector<8xf32>
    %8 = vector.shape_cast %7 : vector<8xf32> to vector<8x1xf32>
    %cst_7 = arith.constant 2.560000e+02 : f32
    %9 = vector.broadcast %cst_7 : f32 to vector<8x1xf32>
    %10 = arith.divf %8, %9 : vector<8x1xf32>
    %11 = vector.broadcast %10 : vector<8x1xf32> to vector<8x256xf32>
    %12 = arith.subf %6, %11 : vector<8x256xf32>
    %13 = arith.mulf %12, %12 : vector<8x256xf32>
    %cst_8 = arith.constant dense<0.000000e+00> : vector<8xf32>
    %14 = vector.multi_reduction <add>, %13, %cst_8 [1] : vector<8x256xf32> to vector<8xf32>
    %15 = vector.shape_cast %14 : vector<8xf32> to vector<8x1xf32>
    %cst_9 = arith.constant 2.560000e+02 : f32
    %16 = vector.broadcast %cst_9 : f32 to vector<8x1xf32>
    %17 = arith.divf %15, %16 : vector<8x1xf32>
    %18 = vector.broadcast %10 : vector<8x1xf32> to vector<8x256xf32>
    %19 = arith.subf %6, %18 : vector<8x256xf32>
    %cst_10 = arith.constant 9.99999974E-6 : f32
    %20 = vector.broadcast %cst_10 : f32 to vector<8x1xf32>
    %21 = arith.addf %17, %20 : vector<8x1xf32>
    %22 = math.rsqrt %21 : vector<8x1xf32>
    %23 = vector.broadcast %22 : vector<8x1xf32> to vector<8x256xf32>
    %24 = arith.mulf %19, %23 : vector<8x256xf32>
    %cst_11 = arith.constant 0.000000e+00 : f32
    %25 = vector.broadcast %cst_11 : f32 to vector<8x256xf32>
    %26 = arith.maximumf %24, %25 : vector<8x256xf32>
    %27 = arith.truncf %26 : vector<8x256xf32> to vector<8x256xbf16>
    %c0_12 = arith.constant 0 : index
    %c0_13 = arith.constant 0 : index
    %c0_14 = arith.constant 0 : index
    %28 = vector.load %arg4[%c0_12, %c0_13, %c0_14] : memref<1x8x256xbf16, #tpu.memory_space<vmem>>, vector<1x8x256xbf16>
    %29 = vector.shape_cast %28 : vector<1x8x256xbf16> to vector<8x256xbf16>
    %30 = vector.shape_cast %27 : vector<8x256xbf16> to vector<1x8x256xbf16>
    tpu.vector_store %arg4[%c0_12, %c0_13, %c0_14], %30 {strides = array<i32>} : memref<1x8x256xbf16, #tpu.memory_space<vmem>>, vector<1x8x256xbf16>,
    return
  }
  func.func @transform_0(%arg0: i32) -> (i32, i32, i32) {
    %c0_i32 = arith.constant 0 : i32
    %c0_i32_0 = arith.constant 0 : i32
    %c0_i32_1 = arith.constant 0 : i32
    return %arg0, %c0_i32, %c0_i32_0 : i32, i32, i32
  }
  func.func @transform_1(%arg0: i32) -> (i32, i32) {
    %c0_i32 = arith.constant 0 : i32
    %c0_i32_0 = arith.constant 0 : i32
    %c0_i32_1 = arith.constant 0 : i32
    return %c0_i32, %c0_i32_0 : i32, i32
  }
  func.func @transform_2(%arg0: i32) -> (i32, i32) {
    %c0_i32 = arith.constant 0 : i32
    %c0_i32_0 = arith.constant 0 : i32
    %c0_i32_1 = arith.constant 0 : i32
    return %c0_i32, %c0_i32_0 : i32, i32
  }
  func.func @transform_3(%arg0: i32) -> (i32, i32, i32) {
    %c0_i32 = arith.constant 0 : i32
    %c0_i32_0 = arith.constant 0 : i32
    %c0_i32_1 = arith.constant 0 : i32
    return %arg0, %c0_i32, %c0_i32_0 : i32, i32, i32
  }
}

module attributes {stable_mosaic.version = 11 : i64} {
  func.func @kernel(%arg0: i32, %arg1: memref<1x72x64xbf16, #tpu.memory_space<vmem>>, %arg2: memref<16x72xbf16, #tpu.memory_space<vmem>>, %arg3: memref<16x1xf32, #tpu.memory_space<vmem>>, %arg4: memref<1x16x64xbf16, #tpu.memory_space<vmem>>) attributes {dimension_semantics = [#tpu.dimension_semantics<parallel>], iteration_bounds = array<i64: 2>, scalar_prefetch = 0 : i64, scratch_operands = 0 : i64, tpu.core_type = #tpu.core_type<tc>, window_params = [{transform_indices = @transform_0, window_bounds = array<i64: 1, 72, 64>}, {pipeline_mode = #tpu.pipeline_mode<synchronous>, transform_indices = @transform_1, window_bounds = array<i64: 16, 72>}, {pipeline_mode = #tpu.pipeline_mode<synchronous>, transform_indices = @transform_2, window_bounds = array<i64: 16, 1>}, {transform_indices = @transform_3, window_bounds = array<i64: 1, 16, 64>}]} {
    %c0 = arith.constant 0 : index
    %c0_0 = arith.constant 0 : index
    %0 = vector.load %arg2[%c0, %c0_0] : memref<16x72xbf16, #tpu.memory_space<vmem>>, vector<16x72xbf16>
    %c0_1 = arith.constant 0 : index
    %c0_2 = arith.constant 0 : index
    %c0_3 = arith.constant 0 : index
    %1 = vector.load %arg1[%c0_1, %c0_2, %c0_3] : memref<1x72x64xbf16, #tpu.memory_space<vmem>>, vector<1x72x64xbf16>
    %2 = vector.shape_cast %1 : vector<1x72x64xbf16> to vector<72x64xbf16>
    %cst = arith.constant dense<0.000000e+00> : vector<16x64xf32>
    %3 = tpu.matmul %0, %2, %cst {dimension_numbers = #tpu.dot_dimension_numbers<[1], [0], [0], [1], [0, 0, 1, 1], [], []>} : vector<16x72xbf16>, vector<72x64xbf16>, vector<16x64xf32> -> vector<16x64xf32>
    %c0_4 = arith.constant 0 : index
    %c0_5 = arith.constant 0 : index
    %4 = vector.load %arg3[%c0_4, %c0_5] : memref<16x1xf32, #tpu.memory_space<vmem>>, vector<16x1xf32>
    %5 = vector.broadcast %4 : vector<16x1xf32> to vector<16x64xf32>
    %6 = arith.addf %3, %5 : vector<16x64xf32>
    %cst_6 = arith.constant dense<0.000000e+00> : vector<16xf32>
    %7 = vector.multi_reduction <add>, %6, %cst_6 [1] : vector<16x64xf32> to vector<16xf32>
    %8 = vector.shape_cast %7 : vector<16xf32> to vector<16x1xf32>
    %cst_7 = arith.constant 6.400000e+01 : f32
    %9 = vector.broadcast %cst_7 : f32 to vector<16x1xf32>
    %10 = arith.divf %8, %9 : vector<16x1xf32>
    %11 = vector.broadcast %10 : vector<16x1xf32> to vector<16x64xf32>
    %12 = arith.subf %6, %11 : vector<16x64xf32>
    %13 = arith.mulf %12, %12 : vector<16x64xf32>
    %cst_8 = arith.constant dense<0.000000e+00> : vector<16xf32>
    %14 = vector.multi_reduction <add>, %13, %cst_8 [1] : vector<16x64xf32> to vector<16xf32>
    %15 = vector.shape_cast %14 : vector<16xf32> to vector<16x1xf32>
    %cst_9 = arith.constant 6.400000e+01 : f32
    %16 = vector.broadcast %cst_9 : f32 to vector<16x1xf32>
    %17 = arith.divf %15, %16 : vector<16x1xf32>
    %18 = vector.broadcast %10 : vector<16x1xf32> to vector<16x64xf32>
    %19 = arith.subf %6, %18 : vector<16x64xf32>
    %cst_10 = arith.constant 9.99999974E-6 : f32
    %20 = vector.broadcast %cst_10 : f32 to vector<16x1xf32>
    %21 = arith.addf %17, %20 : vector<16x1xf32>
    %22 = math.rsqrt %21 : vector<16x1xf32>
    %23 = vector.broadcast %22 : vector<16x1xf32> to vector<16x64xf32>
    %24 = arith.mulf %19, %23 : vector<16x64xf32>
    %cst_11 = arith.constant 0.000000e+00 : f32
    %25 = vector.broadcast %cst_11 : f32 to vector<16x64xf32>
    %26 = arith.maximumf %24, %25 : vector<16x64xf32>
    %27 = arith.truncf %26 : vector<16x64xf32> to vector<16x64xbf16>
    %c0_12 = arith.constant 0 : index
    %c0_13 = arith.constant 0 : index
    %c0_14 = arith.constant 0 : index
    %28 = vector.load %arg4[%c0_12, %c0_13, %c0_14] : memref<1x16x64xbf16, #tpu.memory_space<vmem>>, vector<1x16x64xbf16>
    %29 = vector.shape_cast %28 : vector<1x16x64xbf16> to vector<16x64xbf16>
    %30 = vector.shape_cast %27 : vector<16x64xbf16> to vector<1x16x64xbf16>
    tpu.vector_store %arg4[%c0_12, %c0_13, %c0_14], %30 {strides = array<i32>} : memref<1x16x64xbf16, #tpu.memory_space<vmem>>, vector<1x16x64xbf16>,
    return
  }
  func.func @transform_0(%arg0: i32) -> (i32, i32, i32) {
    %c0_i32 = arith.constant 0 : i32
    %c0_i32_0 = arith.constant 0 : i32
    %c0_i32_1 = arith.constant 0 : i32
    return %arg0, %c0_i32, %c0_i32_0 : i32, i32, i32
  }
  func.func @transform_1(%arg0: i32) -> (i32, i32) {
    %c0_i32 = arith.constant 0 : i32
    %c0_i32_0 = arith.constant 0 : i32
    %c0_i32_1 = arith.constant 0 : i32
    return %c0_i32, %c0_i32_0 : i32, i32
  }
  func.func @transform_2(%arg0: i32) -> (i32, i32) {
    %c0_i32 = arith.constant 0 : i32
    %c0_i32_0 = arith.constant 0 : i32
    %c0_i32_1 = arith.constant 0 : i32
    return %c0_i32, %c0_i32_0 : i32, i32
  }
  func.func @transform_3(%arg0: i32) -> (i32, i32, i32) {
    %c0_i32 = arith.constant 0 : i32
    %c0_i32_0 = arith.constant 0 : i32
    %c0_i32_1 = arith.constant 0 : i32
    return %arg0, %c0_i32, %c0_i32_0 : i32, i32, i32
  }
}

module attributes {stable_mosaic.version = 11 : i64} {
  func.func @kernel(%arg0: i32, %arg1: memref<1x144x16xbf16, #tpu.memory_space<vmem>>, %arg2: memref<32x144xbf16, #tpu.memory_space<vmem>>, %arg3: memref<32x1xf32, #tpu.memory_space<vmem>>, %arg4: memref<1x32x16xbf16, #tpu.memory_space<vmem>>) attributes {dimension_semantics = [#tpu.dimension_semantics<parallel>], iteration_bounds = array<i64: 2>, scalar_prefetch = 0 : i64, scratch_operands = 0 : i64, tpu.core_type = #tpu.core_type<tc>, window_params = [{transform_indices = @transform_0, window_bounds = array<i64: 1, 144, 16>}, {pipeline_mode = #tpu.pipeline_mode<synchronous>, transform_indices = @transform_1, window_bounds = array<i64: 32, 144>}, {pipeline_mode = #tpu.pipeline_mode<synchronous>, transform_indices = @transform_2, window_bounds = array<i64: 32, 1>}, {transform_indices = @transform_3, window_bounds = array<i64: 1, 32, 16>}]} {
    %c0 = arith.constant 0 : index
    %c0_0 = arith.constant 0 : index
    %0 = vector.load %arg2[%c0, %c0_0] : memref<32x144xbf16, #tpu.memory_space<vmem>>, vector<32x144xbf16>
    %c0_1 = arith.constant 0 : index
    %c0_2 = arith.constant 0 : index
    %c0_3 = arith.constant 0 : index
    %1 = vector.load %arg1[%c0_1, %c0_2, %c0_3] : memref<1x144x16xbf16, #tpu.memory_space<vmem>>, vector<1x144x16xbf16>
    %2 = vector.shape_cast %1 : vector<1x144x16xbf16> to vector<144x16xbf16>
    %cst = arith.constant dense<0.000000e+00> : vector<32x16xf32>
    %3 = tpu.matmul %0, %2, %cst {dimension_numbers = #tpu.dot_dimension_numbers<[1], [0], [0], [1], [0, 0, 1, 1], [], []>} : vector<32x144xbf16>, vector<144x16xbf16>, vector<32x16xf32> -> vector<32x16xf32>
    %c0_4 = arith.constant 0 : index
    %c0_5 = arith.constant 0 : index
    %4 = vector.load %arg3[%c0_4, %c0_5] : memref<32x1xf32, #tpu.memory_space<vmem>>, vector<32x1xf32>
    %5 = vector.broadcast %4 : vector<32x1xf32> to vector<32x16xf32>
    %6 = arith.addf %3, %5 : vector<32x16xf32>
    %cst_6 = arith.constant dense<0.000000e+00> : vector<32xf32>
    %7 = vector.multi_reduction <add>, %6, %cst_6 [1] : vector<32x16xf32> to vector<32xf32>
    %8 = vector.shape_cast %7 : vector<32xf32> to vector<32x1xf32>
    %cst_7 = arith.constant 1.600000e+01 : f32
    %9 = vector.broadcast %cst_7 : f32 to vector<32x1xf32>
    %10 = arith.divf %8, %9 : vector<32x1xf32>
    %11 = vector.broadcast %10 : vector<32x1xf32> to vector<32x16xf32>
    %12 = arith.subf %6, %11 : vector<32x16xf32>
    %13 = arith.mulf %12, %12 : vector<32x16xf32>
    %cst_8 = arith.constant dense<0.000000e+00> : vector<32xf32>
    %14 = vector.multi_reduction <add>, %13, %cst_8 [1] : vector<32x16xf32> to vector<32xf32>
    %15 = vector.shape_cast %14 : vector<32xf32> to vector<32x1xf32>
    %cst_9 = arith.constant 1.600000e+01 : f32
    %16 = vector.broadcast %cst_9 : f32 to vector<32x1xf32>
    %17 = arith.divf %15, %16 : vector<32x1xf32>
    %18 = vector.broadcast %10 : vector<32x1xf32> to vector<32x16xf32>
    %19 = arith.subf %6, %18 : vector<32x16xf32>
    %cst_10 = arith.constant 9.99999974E-6 : f32
    %20 = vector.broadcast %cst_10 : f32 to vector<32x1xf32>
    %21 = arith.addf %17, %20 : vector<32x1xf32>
    %22 = math.rsqrt %21 : vector<32x1xf32>
    %23 = vector.broadcast %22 : vector<32x1xf32> to vector<32x16xf32>
    %24 = arith.mulf %19, %23 : vector<32x16xf32>
    %cst_11 = arith.constant 0.000000e+00 : f32
    %25 = vector.broadcast %cst_11 : f32 to vector<32x16xf32>
    %26 = arith.maximumf %24, %25 : vector<32x16xf32>
    %27 = arith.truncf %26 : vector<32x16xf32> to vector<32x16xbf16>
    %c0_12 = arith.constant 0 : index
    %c0_13 = arith.constant 0 : index
    %c0_14 = arith.constant 0 : index
    %28 = vector.load %arg4[%c0_12, %c0_13, %c0_14] : memref<1x32x16xbf16, #tpu.memory_space<vmem>>, vector<1x32x16xbf16>
    %29 = vector.shape_cast %28 : vector<1x32x16xbf16> to vector<32x16xbf16>
    %30 = vector.shape_cast %27 : vector<32x16xbf16> to vector<1x32x16xbf16>
    tpu.vector_store %arg4[%c0_12, %c0_13, %c0_14], %30 {strides = array<i32>} : memref<1x32x16xbf16, #tpu.memory_space<vmem>>, vector<1x32x16xbf16>,
    return
  }
  func.func @transform_0(%arg0: i32) -> (i32, i32, i32) {
    %c0_i32 = arith.constant 0 : i32
    %c0_i32_0 = arith.constant 0 : i32
    %c0_i32_1 = arith.constant 0 : i32
    return %arg0, %c0_i32, %c0_i32_0 : i32, i32, i32
  }
  func.func @transform_1(%arg0: i32) -> (i32, i32) {
    %c0_i32 = arith.constant 0 : i32
    %c0_i32_0 = arith.constant 0 : i32
    %c0_i32_1 = arith.constant 0 : i32
    return %c0_i32, %c0_i32_0 : i32, i32
  }
  func.func @transform_2(%arg0: i32) -> (i32, i32) {
    %c0_i32 = arith.constant 0 : i32
    %c0_i32_0 = arith.constant 0 : i32
    %c0_i32_1 = arith.constant 0 : i32
    return %c0_i32, %c0_i32_0 : i32, i32
  }
  func.func @transform_3(%arg0: i32) -> (i32, i32, i32) {
    %c0_i32 = arith.constant 0 : i32
    %c0_i32_0 = arith.constant 0 : i32
    %c0_i32_1 = arith.constant 0 : i32
    return %arg0, %c0_i32, %c0_i32_0 : i32, i32, i32
  }
}

module attributes {stable_mosaic.version = 11 : i64} {
  func.func @kernel(%arg0: i32, %arg1: memref<1x288x16xbf16, #tpu.memory_space<vmem>>, %arg2: memref<32x288xbf16, #tpu.memory_space<vmem>>, %arg3: memref<32x1xf32, #tpu.memory_space<vmem>>, %arg4: memref<1x32x16xbf16, #tpu.memory_space<vmem>>) attributes {dimension_semantics = [#tpu.dimension_semantics<parallel>], iteration_bounds = array<i64: 2>, scalar_prefetch = 0 : i64, scratch_operands = 0 : i64, tpu.core_type = #tpu.core_type<tc>, window_params = [{transform_indices = @transform_0, window_bounds = array<i64: 1, 288, 16>}, {pipeline_mode = #tpu.pipeline_mode<synchronous>, transform_indices = @transform_1, window_bounds = array<i64: 32, 288>}, {pipeline_mode = #tpu.pipeline_mode<synchronous>, transform_indices = @transform_2, window_bounds = array<i64: 32, 1>}, {transform_indices = @transform_3, window_bounds = array<i64: 1, 32, 16>}]} {
    %c0 = arith.constant 0 : index
    %c0_0 = arith.constant 0 : index
    %0 = vector.load %arg2[%c0, %c0_0] : memref<32x288xbf16, #tpu.memory_space<vmem>>, vector<32x288xbf16>
    %c0_1 = arith.constant 0 : index
    %c0_2 = arith.constant 0 : index
    %c0_3 = arith.constant 0 : index
    %1 = vector.load %arg1[%c0_1, %c0_2, %c0_3] : memref<1x288x16xbf16, #tpu.memory_space<vmem>>, vector<1x288x16xbf16>
    %2 = vector.shape_cast %1 : vector<1x288x16xbf16> to vector<288x16xbf16>
    %cst = arith.constant dense<0.000000e+00> : vector<32x16xf32>
    %3 = tpu.matmul %0, %2, %cst {dimension_numbers = #tpu.dot_dimension_numbers<[1], [0], [0], [1], [0, 0, 1, 1], [], []>} : vector<32x288xbf16>, vector<288x16xbf16>, vector<32x16xf32> -> vector<32x16xf32>
    %c0_4 = arith.constant 0 : index
    %c0_5 = arith.constant 0 : index
    %4 = vector.load %arg3[%c0_4, %c0_5] : memref<32x1xf32, #tpu.memory_space<vmem>>, vector<32x1xf32>
    %5 = vector.broadcast %4 : vector<32x1xf32> to vector<32x16xf32>
    %6 = arith.addf %3, %5 : vector<32x16xf32>
    %cst_6 = arith.constant dense<0.000000e+00> : vector<32xf32>
    %7 = vector.multi_reduction <add>, %6, %cst_6 [1] : vector<32x16xf32> to vector<32xf32>
    %8 = vector.shape_cast %7 : vector<32xf32> to vector<32x1xf32>
    %cst_7 = arith.constant 1.600000e+01 : f32
    %9 = vector.broadcast %cst_7 : f32 to vector<32x1xf32>
    %10 = arith.divf %8, %9 : vector<32x1xf32>
    %11 = vector.broadcast %10 : vector<32x1xf32> to vector<32x16xf32>
    %12 = arith.subf %6, %11 : vector<32x16xf32>
    %13 = arith.mulf %12, %12 : vector<32x16xf32>
    %cst_8 = arith.constant dense<0.000000e+00> : vector<32xf32>
    %14 = vector.multi_reduction <add>, %13, %cst_8 [1] : vector<32x16xf32> to vector<32xf32>
    %15 = vector.shape_cast %14 : vector<32xf32> to vector<32x1xf32>
    %cst_9 = arith.constant 1.600000e+01 : f32
    %16 = vector.broadcast %cst_9 : f32 to vector<32x1xf32>
    %17 = arith.divf %15, %16 : vector<32x1xf32>
    %18 = vector.broadcast %10 : vector<32x1xf32> to vector<32x16xf32>
    %19 = arith.subf %6, %18 : vector<32x16xf32>
    %cst_10 = arith.constant 9.99999974E-6 : f32
    %20 = vector.broadcast %cst_10 : f32 to vector<32x1xf32>
    %21 = arith.addf %17, %20 : vector<32x1xf32>
    %22 = math.rsqrt %21 : vector<32x1xf32>
    %23 = vector.broadcast %22 : vector<32x1xf32> to vector<32x16xf32>
    %24 = arith.mulf %19, %23 : vector<32x16xf32>
    %cst_11 = arith.constant 0.000000e+00 : f32
    %25 = vector.broadcast %cst_11 : f32 to vector<32x16xf32>
    %26 = arith.maximumf %24, %25 : vector<32x16xf32>
    %27 = arith.truncf %26 : vector<32x16xf32> to vector<32x16xbf16>
    %c0_12 = arith.constant 0 : index
    %c0_13 = arith.constant 0 : index
    %c0_14 = arith.constant 0 : index
    %28 = vector.load %arg4[%c0_12, %c0_13, %c0_14] : memref<1x32x16xbf16, #tpu.memory_space<vmem>>, vector<1x32x16xbf16>
    %29 = vector.shape_cast %28 : vector<1x32x16xbf16> to vector<32x16xbf16>
    %30 = vector.shape_cast %27 : vector<32x16xbf16> to vector<1x32x16xbf16>
    tpu.vector_store %arg4[%c0_12, %c0_13, %c0_14], %30 {strides = array<i32>} : memref<1x32x16xbf16, #tpu.memory_space<vmem>>, vector<1x32x16xbf16>,
    return
  }
  func.func @transform_0(%arg0: i32) -> (i32, i32, i32) {
    %c0_i32 = arith.constant 0 : i32
    %c0_i32_0 = arith.constant 0 : i32
    %c0_i32_1 = arith.constant 0 : i32
    return %arg0, %c0_i32, %c0_i32_0 : i32, i32, i32
  }
  func.func @transform_1(%arg0: i32) -> (i32, i32) {
    %c0_i32 = arith.constant 0 : i32
    %c0_i32_0 = arith.constant 0 : i32
    %c0_i32_1 = arith.constant 0 : i32
    return %c0_i32, %c0_i32_0 : i32, i32
  }
  func.func @transform_2(%arg0: i32) -> (i32, i32) {
    %c0_i32 = arith.constant 0 : i32
    %c0_i32_0 = arith.constant 0 : i32
    %c0_i32_1 = arith.constant 0 : i32
    return %c0_i32, %c0_i32_0 : i32, i32
  }
  func.func @transform_3(%arg0: i32) -> (i32, i32, i32) {
    %c0_i32 = arith.constant 0 : i32
    %c0_i32_0 = arith.constant 0 : i32
    %c0_i32_1 = arith.constant 0 : i32
    return %arg0, %c0_i32, %c0_i32_0 : i32, i32, i32
  }
}

module attributes {stable_mosaic.version = 11 : i64} {
  func.func @kernel(%arg0: i32, %arg1: memref<1x288x16xbf16, #tpu.memory_space<vmem>>, %arg2: memref<32x288xbf16, #tpu.memory_space<vmem>>, %arg3: memref<32x1xf32, #tpu.memory_space<vmem>>, %arg4: memref<1x32x16xbf16, #tpu.memory_space<vmem>>, %arg5: memref<1x32x16xbf16, #tpu.memory_space<vmem>>) attributes {dimension_semantics = [#tpu.dimension_semantics<parallel>], iteration_bounds = array<i64: 2>, scalar_prefetch = 0 : i64, scratch_operands = 0 : i64, tpu.core_type = #tpu.core_type<tc>, window_params = [{transform_indices = @transform_0, window_bounds = array<i64: 1, 288, 16>}, {pipeline_mode = #tpu.pipeline_mode<synchronous>, transform_indices = @transform_1, window_bounds = array<i64: 32, 288>}, {pipeline_mode = #tpu.pipeline_mode<synchronous>, transform_indices = @transform_2, window_bounds = array<i64: 32, 1>}, {transform_indices = @transform_3, window_bounds = array<i64: 1, 32, 16>}, {transform_indices = @transform_4, window_bounds = array<i64: 1, 32, 16>}]} {
    %c0 = arith.constant 0 : index
    %c0_0 = arith.constant 0 : index
    %0 = vector.load %arg2[%c0, %c0_0] : memref<32x288xbf16, #tpu.memory_space<vmem>>, vector<32x288xbf16>
    %c0_1 = arith.constant 0 : index
    %c0_2 = arith.constant 0 : index
    %c0_3 = arith.constant 0 : index
    %1 = vector.load %arg1[%c0_1, %c0_2, %c0_3] : memref<1x288x16xbf16, #tpu.memory_space<vmem>>, vector<1x288x16xbf16>
    %2 = vector.shape_cast %1 : vector<1x288x16xbf16> to vector<288x16xbf16>
    %cst = arith.constant dense<0.000000e+00> : vector<32x16xf32>
    %3 = tpu.matmul %0, %2, %cst {dimension_numbers = #tpu.dot_dimension_numbers<[1], [0], [0], [1], [0, 0, 1, 1], [], []>} : vector<32x288xbf16>, vector<288x16xbf16>, vector<32x16xf32> -> vector<32x16xf32>
    %c0_4 = arith.constant 0 : index
    %c0_5 = arith.constant 0 : index
    %4 = vector.load %arg3[%c0_4, %c0_5] : memref<32x1xf32, #tpu.memory_space<vmem>>, vector<32x1xf32>
    %5 = vector.broadcast %4 : vector<32x1xf32> to vector<32x16xf32>
    %6 = arith.addf %3, %5 : vector<32x16xf32>
    %cst_6 = arith.constant dense<0.000000e+00> : vector<32xf32>
    %7 = vector.multi_reduction <add>, %6, %cst_6 [1] : vector<32x16xf32> to vector<32xf32>
    %8 = vector.shape_cast %7 : vector<32xf32> to vector<32x1xf32>
    %cst_7 = arith.constant 1.600000e+01 : f32
    %9 = vector.broadcast %cst_7 : f32 to vector<32x1xf32>
    %10 = arith.divf %8, %9 : vector<32x1xf32>
    %11 = vector.broadcast %10 : vector<32x1xf32> to vector<32x16xf32>
    %12 = arith.subf %6, %11 : vector<32x16xf32>
    %13 = arith.mulf %12, %12 : vector<32x16xf32>
    %cst_8 = arith.constant dense<0.000000e+00> : vector<32xf32>
    %14 = vector.multi_reduction <add>, %13, %cst_8 [1] : vector<32x16xf32> to vector<32xf32>
    %15 = vector.shape_cast %14 : vector<32xf32> to vector<32x1xf32>
    %cst_9 = arith.constant 1.600000e+01 : f32
    %16 = vector.broadcast %cst_9 : f32 to vector<32x1xf32>
    %17 = arith.divf %15, %16 : vector<32x1xf32>
    %18 = vector.broadcast %10 : vector<32x1xf32> to vector<32x16xf32>
    %19 = arith.subf %6, %18 : vector<32x16xf32>
    %cst_10 = arith.constant 9.99999974E-6 : f32
    %20 = vector.broadcast %cst_10 : f32 to vector<32x1xf32>
    %21 = arith.addf %17, %20 : vector<32x1xf32>
    %22 = math.rsqrt %21 : vector<32x1xf32>
    %23 = vector.broadcast %22 : vector<32x1xf32> to vector<32x16xf32>
    %24 = arith.mulf %19, %23 : vector<32x16xf32>
    %c0_11 = arith.constant 0 : index
    %c0_12 = arith.constant 0 : index
    %c0_13 = arith.constant 0 : index
    %25 = vector.load %arg4[%c0_11, %c0_12, %c0_13] : memref<1x32x16xbf16, #tpu.memory_space<vmem>>, vector<1x32x16xbf16>
    %26 = vector.shape_cast %25 : vector<1x32x16xbf16> to vector<32x16xbf16>
    %27 = arith.extf %26 : vector<32x16xbf16> to vector<32x16xf32>
    %28 = arith.addf %24, %27 : vector<32x16xf32>
    %29 = arith.truncf %28 : vector<32x16xf32> to vector<32x16xbf16>
    %c0_14 = arith.constant 0 : index
    %c0_15 = arith.constant 0 : index
    %c0_16 = arith.constant 0 : index
    %30 = vector.load %arg5[%c0_14, %c0_15, %c0_16] : memref<1x32x16xbf16, #tpu.memory_space<vmem>>, vector<1x32x16xbf16>
    %31 = vector.shape_cast %30 : vector<1x32x16xbf16> to vector<32x16xbf16>
    %32 = vector.shape_cast %29 : vector<32x16xbf16> to vector<1x32x16xbf16>
    tpu.vector_store %arg5[%c0_14, %c0_15, %c0_16], %32 {strides = array<i32>} : memref<1x32x16xbf16, #tpu.memory_space<vmem>>, vector<1x32x16xbf16>,
    return
  }
  func.func @transform_0(%arg0: i32) -> (i32, i32, i32) {
    %c0_i32 = arith.constant 0 : i32
    %c0_i32_0 = arith.constant 0 : i32
    %c0_i32_1 = arith.constant 0 : i32
    return %arg0, %c0_i32, %c0_i32_0 : i32, i32, i32
  }
  func.func @transform_1(%arg0: i32) -> (i32, i32) {
    %c0_i32 = arith.constant 0 : i32
    %c0_i32_0 = arith.constant 0 : i32
    %c0_i32_1 = arith.constant 0 : i32
    return %c0_i32, %c0_i32_0 : i32, i32
  }
  func.func @transform_2(%arg0: i32) -> (i32, i32) {
    %c0_i32 = arith.constant 0 : i32
    %c0_i32_0 = arith.constant 0 : i32
    %c0_i32_1 = arith.constant 0 : i32
    return %c0_i32, %c0_i32_0 : i32, i32
  }
  func.func @transform_3(%arg0: i32) -> (i32, i32, i32) {
    %c0_i32 = arith.constant 0 : i32
    %c0_i32_0 = arith.constant 0 : i32
    %c0_i32_1 = arith.constant 0 : i32
    return %arg0, %c0_i32, %c0_i32_0 : i32, i32, i32
  }
  func.func @transform_4(%arg0: i32) -> (i32, i32, i32) {
    %c0_i32 = arith.constant 0 : i32
    %c0_i32_0 = arith.constant 0 : i32
    %c0_i32_1 = arith.constant 0 : i32
    return %arg0, %c0_i32, %c0_i32_0 : i32, i32, i32
  }
}

module attributes {stable_mosaic.version = 11 : i64} {
  func.func @kernel(%arg0: i32, %arg1: memref<1x288x64xbf16, #tpu.memory_space<vmem>>, %arg2: memref<16x288xbf16, #tpu.memory_space<vmem>>, %arg3: memref<16x1xf32, #tpu.memory_space<vmem>>, %arg4: memref<1x16x64xbf16, #tpu.memory_space<vmem>>) attributes {dimension_semantics = [#tpu.dimension_semantics<parallel>], iteration_bounds = array<i64: 2>, scalar_prefetch = 0 : i64, scratch_operands = 0 : i64, tpu.core_type = #tpu.core_type<tc>, window_params = [{transform_indices = @transform_0, window_bounds = array<i64: 1, 288, 64>}, {pipeline_mode = #tpu.pipeline_mode<synchronous>, transform_indices = @transform_1, window_bounds = array<i64: 16, 288>}, {pipeline_mode = #tpu.pipeline_mode<synchronous>, transform_indices = @transform_2, window_bounds = array<i64: 16, 1>}, {transform_indices = @transform_3, window_bounds = array<i64: 1, 16, 64>}]} {
    %c0 = arith.constant 0 : index
    %c0_0 = arith.constant 0 : index
    %0 = vector.load %arg2[%c0, %c0_0] : memref<16x288xbf16, #tpu.memory_space<vmem>>, vector<16x288xbf16>
    %c0_1 = arith.constant 0 : index
    %c0_2 = arith.constant 0 : index
    %c0_3 = arith.constant 0 : index
    %1 = vector.load %arg1[%c0_1, %c0_2, %c0_3] : memref<1x288x64xbf16, #tpu.memory_space<vmem>>, vector<1x288x64xbf16>
    %2 = vector.shape_cast %1 : vector<1x288x64xbf16> to vector<288x64xbf16>
    %cst = arith.constant dense<0.000000e+00> : vector<16x64xf32>
    %3 = tpu.matmul %0, %2, %cst {dimension_numbers = #tpu.dot_dimension_numbers<[1], [0], [0], [1], [0, 0, 1, 1], [], []>} : vector<16x288xbf16>, vector<288x64xbf16>, vector<16x64xf32> -> vector<16x64xf32>
    %c0_4 = arith.constant 0 : index
    %c0_5 = arith.constant 0 : index
    %4 = vector.load %arg3[%c0_4, %c0_5] : memref<16x1xf32, #tpu.memory_space<vmem>>, vector<16x1xf32>
    %5 = vector.broadcast %4 : vector<16x1xf32> to vector<16x64xf32>
    %6 = arith.addf %3, %5 : vector<16x64xf32>
    %cst_6 = arith.constant dense<0.000000e+00> : vector<16xf32>
    %7 = vector.multi_reduction <add>, %6, %cst_6 [1] : vector<16x64xf32> to vector<16xf32>
    %8 = vector.shape_cast %7 : vector<16xf32> to vector<16x1xf32>
    %cst_7 = arith.constant 6.400000e+01 : f32
    %9 = vector.broadcast %cst_7 : f32 to vector<16x1xf32>
    %10 = arith.divf %8, %9 : vector<16x1xf32>
    %11 = vector.broadcast %10 : vector<16x1xf32> to vector<16x64xf32>
    %12 = arith.subf %6, %11 : vector<16x64xf32>
    %13 = arith.mulf %12, %12 : vector<16x64xf32>
    %cst_8 = arith.constant dense<0.000000e+00> : vector<16xf32>
    %14 = vector.multi_reduction <add>, %13, %cst_8 [1] : vector<16x64xf32> to vector<16xf32>
    %15 = vector.shape_cast %14 : vector<16xf32> to vector<16x1xf32>
    %cst_9 = arith.constant 6.400000e+01 : f32
    %16 = vector.broadcast %cst_9 : f32 to vector<16x1xf32>
    %17 = arith.divf %15, %16 : vector<16x1xf32>
    %18 = vector.broadcast %10 : vector<16x1xf32> to vector<16x64xf32>
    %19 = arith.subf %6, %18 : vector<16x64xf32>
    %cst_10 = arith.constant 9.99999974E-6 : f32
    %20 = vector.broadcast %cst_10 : f32 to vector<16x1xf32>
    %21 = arith.addf %17, %20 : vector<16x1xf32>
    %22 = math.rsqrt %21 : vector<16x1xf32>
    %23 = vector.broadcast %22 : vector<16x1xf32> to vector<16x64xf32>
    %24 = arith.mulf %19, %23 : vector<16x64xf32>
    %cst_11 = arith.constant 0.000000e+00 : f32
    %25 = vector.broadcast %cst_11 : f32 to vector<16x64xf32>
    %26 = arith.maximumf %24, %25 : vector<16x64xf32>
    %27 = arith.truncf %26 : vector<16x64xf32> to vector<16x64xbf16>
    %c0_12 = arith.constant 0 : index
    %c0_13 = arith.constant 0 : index
    %c0_14 = arith.constant 0 : index
    %28 = vector.load %arg4[%c0_12, %c0_13, %c0_14] : memref<1x16x64xbf16, #tpu.memory_space<vmem>>, vector<1x16x64xbf16>
    %29 = vector.shape_cast %28 : vector<1x16x64xbf16> to vector<16x64xbf16>
    %30 = vector.shape_cast %27 : vector<16x64xbf16> to vector<1x16x64xbf16>
    tpu.vector_store %arg4[%c0_12, %c0_13, %c0_14], %30 {strides = array<i32>} : memref<1x16x64xbf16, #tpu.memory_space<vmem>>, vector<1x16x64xbf16>,
    return
  }
  func.func @transform_0(%arg0: i32) -> (i32, i32, i32) {
    %c0_i32 = arith.constant 0 : i32
    %c0_i32_0 = arith.constant 0 : i32
    %c0_i32_1 = arith.constant 0 : i32
    return %arg0, %c0_i32, %c0_i32_0 : i32, i32, i32
  }
  func.func @transform_1(%arg0: i32) -> (i32, i32) {
    %c0_i32 = arith.constant 0 : i32
    %c0_i32_0 = arith.constant 0 : i32
    %c0_i32_1 = arith.constant 0 : i32
    return %c0_i32, %c0_i32_0 : i32, i32
  }
  func.func @transform_2(%arg0: i32) -> (i32, i32) {
    %c0_i32 = arith.constant 0 : i32
    %c0_i32_0 = arith.constant 0 : i32
    %c0_i32_1 = arith.constant 0 : i32
    return %c0_i32, %c0_i32_0 : i32, i32
  }
  func.func @transform_3(%arg0: i32) -> (i32, i32, i32) {
    %c0_i32 = arith.constant 0 : i32
    %c0_i32_0 = arith.constant 0 : i32
    %c0_i32_1 = arith.constant 0 : i32
    return %arg0, %c0_i32, %c0_i32_0 : i32, i32, i32
  }
}

module attributes {stable_mosaic.version = 11 : i64} {
  func.func @kernel(%arg0: i32, %arg1: memref<1x144x256xbf16, #tpu.memory_space<vmem>>, %arg2: memref<8x144xbf16, #tpu.memory_space<vmem>>, %arg3: memref<8x1xf32, #tpu.memory_space<vmem>>, %arg4: memref<1x8x256xbf16, #tpu.memory_space<vmem>>) attributes {dimension_semantics = [#tpu.dimension_semantics<parallel>], iteration_bounds = array<i64: 2>, scalar_prefetch = 0 : i64, scratch_operands = 0 : i64, tpu.core_type = #tpu.core_type<tc>, window_params = [{transform_indices = @transform_0, window_bounds = array<i64: 1, 144, 256>}, {pipeline_mode = #tpu.pipeline_mode<synchronous>, transform_indices = @transform_1, window_bounds = array<i64: 8, 144>}, {pipeline_mode = #tpu.pipeline_mode<synchronous>, transform_indices = @transform_2, window_bounds = array<i64: 8, 1>}, {transform_indices = @transform_3, window_bounds = array<i64: 1, 8, 256>}]} {
    %c0 = arith.constant 0 : index
    %c0_0 = arith.constant 0 : index
    %0 = vector.load %arg2[%c0, %c0_0] : memref<8x144xbf16, #tpu.memory_space<vmem>>, vector<8x144xbf16>
    %c0_1 = arith.constant 0 : index
    %c0_2 = arith.constant 0 : index
    %c0_3 = arith.constant 0 : index
    %1 = vector.load %arg1[%c0_1, %c0_2, %c0_3] : memref<1x144x256xbf16, #tpu.memory_space<vmem>>, vector<1x144x256xbf16>
    %2 = vector.shape_cast %1 : vector<1x144x256xbf16> to vector<144x256xbf16>
    %cst = arith.constant dense<0.000000e+00> : vector<8x256xf32>
    %3 = tpu.matmul %0, %2, %cst {dimension_numbers = #tpu.dot_dimension_numbers<[1], [0], [0], [1], [0, 0, 1, 1], [], []>} : vector<8x144xbf16>, vector<144x256xbf16>, vector<8x256xf32> -> vector<8x256xf32>
    %c0_4 = arith.constant 0 : index
    %c0_5 = arith.constant 0 : index
    %4 = vector.load %arg3[%c0_4, %c0_5] : memref<8x1xf32, #tpu.memory_space<vmem>>, vector<8x1xf32>
    %5 = vector.broadcast %4 : vector<8x1xf32> to vector<8x256xf32>
    %6 = arith.addf %3, %5 : vector<8x256xf32>
    %cst_6 = arith.constant dense<0.000000e+00> : vector<8xf32>
    %7 = vector.multi_reduction <add>, %6, %cst_6 [1] : vector<8x256xf32> to vector<8xf32>
    %8 = vector.shape_cast %7 : vector<8xf32> to vector<8x1xf32>
    %cst_7 = arith.constant 2.560000e+02 : f32
    %9 = vector.broadcast %cst_7 : f32 to vector<8x1xf32>
    %10 = arith.divf %8, %9 : vector<8x1xf32>
    %11 = vector.broadcast %10 : vector<8x1xf32> to vector<8x256xf32>
    %12 = arith.subf %6, %11 : vector<8x256xf32>
    %13 = arith.mulf %12, %12 : vector<8x256xf32>
    %cst_8 = arith.constant dense<0.000000e+00> : vector<8xf32>
    %14 = vector.multi_reduction <add>, %13, %cst_8 [1] : vector<8x256xf32> to vector<8xf32>
    %15 = vector.shape_cast %14 : vector<8xf32> to vector<8x1xf32>
    %cst_9 = arith.constant 2.560000e+02 : f32
    %16 = vector.broadcast %cst_9 : f32 to vector<8x1xf32>
    %17 = arith.divf %15, %16 : vector<8x1xf32>
    %18 = vector.broadcast %10 : vector<8x1xf32> to vector<8x256xf32>
    %19 = arith.subf %6, %18 : vector<8x256xf32>
    %cst_10 = arith.constant 9.99999974E-6 : f32
    %20 = vector.broadcast %cst_10 : f32 to vector<8x1xf32>
    %21 = arith.addf %17, %20 : vector<8x1xf32>
    %22 = math.rsqrt %21 : vector<8x1xf32>
    %23 = vector.broadcast %22 : vector<8x1xf32> to vector<8x256xf32>
    %24 = arith.mulf %19, %23 : vector<8x256xf32>
    %cst_11 = arith.constant 0.000000e+00 : f32
    %25 = vector.broadcast %cst_11 : f32 to vector<8x256xf32>
    %26 = arith.maximumf %24, %25 : vector<8x256xf32>
    %27 = arith.truncf %26 : vector<8x256xf32> to vector<8x256xbf16>
    %c0_12 = arith.constant 0 : index
    %c0_13 = arith.constant 0 : index
    %c0_14 = arith.constant 0 : index
    %28 = vector.load %arg4[%c0_12, %c0_13, %c0_14] : memref<1x8x256xbf16, #tpu.memory_space<vmem>>, vector<1x8x256xbf16>
    %29 = vector.shape_cast %28 : vector<1x8x256xbf16> to vector<8x256xbf16>
    %30 = vector.shape_cast %27 : vector<8x256xbf16> to vector<1x8x256xbf16>
    tpu.vector_store %arg4[%c0_12, %c0_13, %c0_14], %30 {strides = array<i32>} : memref<1x8x256xbf16, #tpu.memory_space<vmem>>, vector<1x8x256xbf16>,
    return
  }
  func.func @transform_0(%arg0: i32) -> (i32, i32, i32) {
    %c0_i32 = arith.constant 0 : i32
    %c0_i32_0 = arith.constant 0 : i32
    %c0_i32_1 = arith.constant 0 : i32
    return %arg0, %c0_i32, %c0_i32_0 : i32, i32, i32
  }
  func.func @transform_1(%arg0: i32) -> (i32, i32) {
    %c0_i32 = arith.constant 0 : i32
    %c0_i32_0 = arith.constant 0 : i32
    %c0_i32_1 = arith.constant 0 : i32
    return %c0_i32, %c0_i32_0 : i32, i32
  }
  func.func @transform_2(%arg0: i32) -> (i32, i32) {
    %c0_i32 = arith.constant 0 : i32
    %c0_i32_0 = arith.constant 0 : i32
    %c0_i32_1 = arith.constant 0 : i32
    return %c0_i32, %c0_i32_0 : i32, i32
  }
  func.func @transform_3(%arg0: i32) -> (i32, i32, i32) {
    %c0_i32 = arith.constant 0 : i32
    %c0_i32_0 = arith.constant 0 : i32
    %c0_i32_1 = arith.constant 0 : i32
    return %arg0, %c0_i32, %c0_i32_0 : i32, i32, i32
  }
}

module attributes {stable_mosaic.version = 11 : i64} {
  func.func @kernel(%arg0: i32, %arg1: memref<1x392x256xbf16, #tpu.memory_space<vmem>>, %arg2: memref<3x392xbf16, #tpu.memory_space<vmem>>, %arg3: memref<3x1xf32, #tpu.memory_space<vmem>>, %arg4: memref<1x3x256xf32, #tpu.memory_space<vmem>>) attributes {dimension_semantics = [#tpu.dimension_semantics<parallel>], iteration_bounds = array<i64: 2>, scalar_prefetch = 0 : i64, scratch_operands = 0 : i64, tpu.core_type = #tpu.core_type<tc>, window_params = [{transform_indices = @transform_0, window_bounds = array<i64: 1, 392, 256>}, {pipeline_mode = #tpu.pipeline_mode<synchronous>, transform_indices = @transform_1, window_bounds = array<i64: 3, 392>}, {pipeline_mode = #tpu.pipeline_mode<synchronous>, transform_indices = @transform_2, window_bounds = array<i64: 3, 1>}, {transform_indices = @transform_3, window_bounds = array<i64: 1, 3, 256>}]} {
    %c0 = arith.constant 0 : index
    %c0_0 = arith.constant 0 : index
    %0 = vector.load %arg2[%c0, %c0_0] : memref<3x392xbf16, #tpu.memory_space<vmem>>, vector<3x392xbf16>
    %c0_1 = arith.constant 0 : index
    %c0_2 = arith.constant 0 : index
    %c0_3 = arith.constant 0 : index
    %1 = vector.load %arg1[%c0_1, %c0_2, %c0_3] : memref<1x392x256xbf16, #tpu.memory_space<vmem>>, vector<1x392x256xbf16>
    %2 = vector.shape_cast %1 : vector<1x392x256xbf16> to vector<392x256xbf16>
    %cst = arith.constant dense<0.000000e+00> : vector<3x256xf32>
    %3 = tpu.matmul %0, %2, %cst {dimension_numbers = #tpu.dot_dimension_numbers<[1], [0], [0], [1], [0, 0, 1, 1], [], []>} : vector<3x392xbf16>, vector<392x256xbf16>, vector<3x256xf32> -> vector<3x256xf32>
    %c0_4 = arith.constant 0 : index
    %c0_5 = arith.constant 0 : index
    %4 = vector.load %arg3[%c0_4, %c0_5] : memref<3x1xf32, #tpu.memory_space<vmem>>, vector<3x1xf32>
    %5 = vector.broadcast %4 : vector<3x1xf32> to vector<3x256xf32>
    %6 = arith.addf %3, %5 : vector<3x256xf32>
    %7 = math.tanh %6 : vector<3x256xf32>
    %c0_6 = arith.constant 0 : index
    %c0_7 = arith.constant 0 : index
    %c0_8 = arith.constant 0 : index
    %8 = vector.load %arg4[%c0_6, %c0_7, %c0_8] : memref<1x3x256xf32, #tpu.memory_space<vmem>>, vector<1x3x256xf32>
    %9 = vector.shape_cast %8 : vector<1x3x256xf32> to vector<3x256xf32>
    %10 = vector.shape_cast %7 : vector<3x256xf32> to vector<1x3x256xf32>
    tpu.vector_store %arg4[%c0_6, %c0_7, %c0_8], %10 {strides = array<i32>} : memref<1x3x256xf32, #tpu.memory_space<vmem>>, vector<1x3x256xf32>,
    return
  }
  func.func @transform_0(%arg0: i32) -> (i32, i32, i32) {
    %c0_i32 = arith.constant 0 : i32
    %c0_i32_0 = arith.constant 0 : i32
    %c0_i32_1 = arith.constant 0 : i32
    return %arg0, %c0_i32, %c0_i32_0 : i32, i32, i32
  }
  func.func @transform_1(%arg0: i32) -> (i32, i32) {
    %c0_i32 = arith.constant 0 : i32
    %c0_i32_0 = arith.constant 0 : i32
    %c0_i32_1 = arith.constant 0 : i32
    return %c0_i32, %c0_i32_0 : i32, i32
  }
  func.func @transform_2(%arg0: i32) -> (i32, i32) {
    %c0_i32 = arith.constant 0 : i32
    %c0_i32_0 = arith.constant 0 : i32
    %c0_i32_1 = arith.constant 0 : i32
    return %c0_i32, %c0_i32_0 : i32, i32
  }
  func.func @transform_3(%arg0: i32) -> (i32, i32, i32) {
    %c0_i32 = arith.constant 0 : i32
    %c0_i32_0 = arith.constant 0 : i32
    %c0_i32_1 = arith.constant 0 : i32
    return %arg0, %c0_i32, %c0_i32_0 : i32, i32, i32
  }
}

</mosaic_0001>

<llo_original>
// kernel: cyclegan_forward.50
$region0: #{cyclegan_forward.50}
  #allocation0 [shape = 'u32[]', space=smem, size = 0x4, offset = 0x4, fixed_abs, tag = 'smem constant byte address 0x4 - core index']
  #allocation1 [shape = 'u32[144,128]{1,0:T(1,128)}', space=vmem, size = 0x12000, scoped, tag = 'internal scratch']
  %s0 = inlined_call_operand.vmem [shape: bf16[2,147,256], index: 0, kind: input, shape index: {}]
  %s1 = inlined_call_operand.vmem [shape: bf16[8,147], index: 1, kind: input, shape index: {}]
  %s2 = inlined_call_operand.vmem [shape: f32[8,1], index: 2, kind: input, shape index: {}]
  %s3 = inlined_call_operand.vmem [shape: bf16[2,8,256], index: 3, kind: output, shape index: {}]
  %s4 = sld [smem:[#allocation0]]
  $region45: #{cyclegan_forward.50} parent=0
    _
  %s6 = ssub.s32 1, %s4
  %s7 = scalar_select 0, %s6, %s4
  loop: start=0, step=1, limit=4
  $region2: #{cyclegan_forward.50} parent=0 // loop_pre_header
    _
  $region3: #{cyclegan_forward.50} parent=0 // loop_header
    %s9 = sphi 0, %s13
    %p10 = scmp.ge.s32.totalorder %s9, 4
    %s19 = sphi 0, %s21
    %s22 = sphi 0, %s19
    %s23 = sphi 0, %s22
    %s39 = sphi 0, %s23
    %s43 = sphi 0, %s43
    %s45 = sphi 0, %s43
    %s46 = sphi 0, %s45
    %s60 = sphi 0, %s46
    %s64 = sphi 0, %s64
    %s66 = sphi 0, %s64
    %s67 = sphi 0, %s66
    %s81 = sphi 0, %s67
    %s87 = sphi 0, %s89
    %s90 = sphi 0, %s87
    %s91 = sphi 0, %s90
    %s107 = sphi 0, %s91
  $region4: #{cyclegan_forward.50} parent=0 // loop_header_branch
    %12 = sbr.rel (%p10) target = $region8
  $region5: #{cyclegan_forward.50} parent=0 // loop_body
    %s14 = ssub.s32 %s9, 1
    %s15 = ssub.s32 %s9, 2
    %s16 = sadd.s32 %s9, 1
    %s17 = ssub.s32 %s9, %s16
    %p18 = scmp.eq.s32.totalorder %s17, 0
    %s20 = sadd.s32 %s19, 1
    %s21 = scalar_select %p18, %s19, %s20
    %p24 = pneg %p18
    %p25 = scmp.eq.s32.totalorder %s9, 1
    %p26 = por %p24, %p25
    %p27 = scmp.ne.s32.totalorder %s19, %s22
    %p28 = scmp.eq.s32.totalorder %s9, 0
    %p29 = por %p27, %p28
    %p30 = scmp.ne.s32.totalorder %s19, %s22
    %p31 = scmp.eq.s32.totalorder %s14, 1
    %p32 = por %p30, %p31
    %p33 = scmp.ne.s32.totalorder %s22, %s23
    %p34 = scmp.eq.s32.totalorder %s14, 0
    %p35 = por %p33, %p34
    %p36 = scmp.ne.s32.totalorder %s22, %s23
    %p37 = scmp.eq.s32.totalorder %s15, 1
    %p38 = por %p36, %p37
    %p40 = scmp.ne.s32.totalorder %s23, %s39
    %p41 = scmp.eq.s32.totalorder %s15, 0
    %p42 = por %p40, %p41
    %s44 = sadd.s32 %s43, 1
    %p47 = scmp.eq.s32.totalorder %s9, 1
    %p48 = scmp.ne.s32.totalorder %s43, %s45
    %p49 = scmp.eq.s32.totalorder %s9, 0
    %p50 = por %p48, %p49
    %p51 = scmp.ne.s32.totalorder %s43, %s45
    %p52 = scmp.eq.s32.totalorder %s14, 1
    %p53 = por %p51, %p52
    %p54 = scmp.ne.s32.totalorder %s45, %s46
    %p55 = scmp.eq.s32.totalorder %s14, 0
    %p56 = por %p54, %p55
    %p57 = scmp.ne.s32.totalorder %s45, %s46
    %p58 = scmp.eq.s32.totalorder %s15, 1
    %p59 = por %p57, %p58
    %p61 = scmp.ne.s32.totalorder %s46, %s60
    %p62 = scmp.eq.s32.totalorder %s15, 0
    %p63 = por %p61, %p62
    %s65 = sadd.s32 %s64, 1
    %p68 = scmp.eq.s32.totalorder %s9, 1
    %p69 = scmp.ne.s32.totalorder %s64, %s66
    %p70 = scmp.eq.s32.totalorder %s9, 0
    %p71 = por %p69, %p70
    %p72 = scmp.ne.s32.totalorder %s64, %s66
    %p73 = scmp.eq.s32.totalorder %s14, 1
    %p74 = por %p72, %p73
    %p75 = scmp.ne.s32.totalorder %s66, %s67
    %p76 = scmp.eq.s32.totalorder %s14, 0
    %p77 = por %p75, %p76
    %p78 = scmp.ne.s32.totalorder %s66, %s67
    %p79 = scmp.eq.s32.totalorder %s15, 1
    %p80 = por %p78, %p79
    %p82 = scmp.ne.s32.totalorder %s67, %s81
    %p83 = scmp.eq.s32.totalorder %s15, 0
    %p84 = por %p82, %p83
    %s85 = ssub.s32 %s9, %s16
    %p86 = scmp.eq.s32.totalorder %s85, 0
    %s88 = sadd.s32 %s87, 1
    %s89 = scalar_select %p86, %s87, %s88
    %p92 = pneg %p86
    %p93 = scmp.eq.s32.totalorder %s9, 1
    %p94 = por %p92, %p93
    %p95 = scmp.ne.s32.totalorder %s87, %s90
    %p96 = scmp.eq.s32.totalorder %s9, 0
    %p97 = por %p95, %p96
    %p98 = scmp.ne.s32.totalorder %s87, %s90
    %p99 = scmp.eq.s32.totalorder %s14, 1
    %p100 = por %p98, %p99
    %p101 = scmp.ne.s32.totalorder %s90, %s91
    %p102 = scmp.eq.s32.totalorder %s14, 0
    %p103 = por %p101, %p102
    %p104 = scmp.ne.s32.totalorder %s90, %s91
    %p105 = scmp.eq.s32.totalorder %s15, 1
    %p106 = por %p104, %p105
    %p108 = scmp.ne.s32.totalorder %s91, %s107
    %p109 = scmp.eq.s32.totalorder %s15, 0
    %p110 = por %p108, %p109
    %p111 = scmp.le.s32.totalorder 1, %s9
    %p112 = scmp.lt.s32.totalorder %s9, 3
    %p113 = pnand %p111, %p112
    %p114 = pneg %p113
    // Predicated region
    $region9: #{cyclegan_forward.50} parent=5 // pred_check
      _
    $region10: #{cyclegan_forward.50} parent=5 // pred_check_branch
      %116 = sbr.rel (%p113) target = $region12
    $region11: #{cyclegan_forward.50} parent=5 // pred_region
      %s117 = ssub.s32 %s9, 1
      // Predicated region
      $region13: #{cyclegan_forward.50} parent=11 // pred_check
        %p118 = pneg %p56
      $region14: #{cyclegan_forward.50} parent=11 // pred_check_branch
        %120 = sbr.rel (%p118) target = $region16
      $region15: #{cyclegan_forward.50} parent=11 // pred_region
        _
      $region16: #{cyclegan_forward.50} parent=11 // pred_fallthru
        _
      // Predicated region
      $region17: #{cyclegan_forward.50} parent=11 // pred_check
        %p121 = pneg %p77
      $region18: #{cyclegan_forward.50} parent=11 // pred_check_branch
        %123 = sbr.rel (%p121) target = $region20
      $region19: #{cyclegan_forward.50} parent=11 // pred_region
        _
      $region20: #{cyclegan_forward.50} parent=11 // pred_fallthru
        _
    $region12: #{cyclegan_forward.50} parent=5 // pred_fallthru
      _
    %p124 = scmp.lt.s32.totalorder %s9, 2
    // Predicated region
    $region21: #{cyclegan_forward.50} parent=5 // pred_check
      %p125 = pneg %p124
    $region22: #{cyclegan_forward.50} parent=5 // pred_check_branch
      %127 = sbr.rel (%p125) target = $region24
    $region23: #{cyclegan_forward.50} parent=5 // pred_region
      // Predicated region
      $region25: #{cyclegan_forward.50} parent=23 // pred_check
        %p128 = pneg %p29
      $region26: #{cyclegan_forward.50} parent=23 // pred_check_branch
        %130 = sbr.rel (%p128) target = $region28
      $region27: #{cyclegan_forward.50} parent=23 // pred_region
        %p131 = scmp.lt.s32.totalorder %s9, 1
        %s132 = scalar_select %p131, %s9, 1
        %s133 = smul.addr %s132, 38
        %s134 = smul.addr %s133, 4
        %s135 = scalar_lea.vmem %s0, %s134
      $region28: #{cyclegan_forward.50} parent=23 // pred_fallthru
        _
    $region24: #{cyclegan_forward.50} parent=5 // pred_fallthru
      _
    %p136 = scmp.le.s32.totalorder 1, %s9
    %p137 = scmp.lt.s32.totalorder %s9, 3
    %p138 = pnand %p136, %p137
    %p139 = pneg %p138
    // Predicated region
    $region29: #{cyclegan_forward.50} parent=5 // pred_check
      _
    $region30: #{cyclegan_forward.50} parent=5 // pred_check_branch
      %141 = sbr.rel (%p138) target = $region32
    $region31: #{cyclegan_forward.50} parent=5 // pred_region
      %s142 = ssub.s32 %s9, 1
      %p143 = scmp.lt.s32.totalorder %s14, 1
      %s144 = scalar_select %p143, %s14, 1
      %s145 = smul.addr %s144, 38
      %s146 = smul.addr %s145, 4
      %s147 = scalar_lea.vmem %s0, %s146
      %p148 = pneg %p35
      %p149 = pneg %p32
      %p150 = pneg %p56
      %p151 = pneg %p53
      %p152 = pneg %p77
      %p153 = pneg %p74
      %p154 = pneg %p103
      %p155 = pneg %p100
      %p156 = scmp.lt.s32.totalorder %s14, 1
      %s157 = scalar_select %p156, %s14, 1
      %s158 = smul.addr %s157, 2
      %s159 = smul.addr %s158, 4
      %s160 = scalar_lea.vmem %s3, %s159
      %p161 = scmp.lt.s32.totalorder %s14, 1
      %s162 = scalar_select %p161, %s14, 1
      %s163 = smul.addr %s162, 38
      %s164 = smul.addr %s163, 4
      %s165 = scalar_lea.vmem %s0, %s164
      %p166 = scmp.lt.s32.totalorder %s14, 1
      %s167 = scalar_select %p166, %s14, 1
      %s168 = smul.addr %s167, 2
      %s169 = smul.addr %s168, 4
      %s170 = scalar_lea.vmem %s3, %s169
      %v172 = vld [vmem:[%s1] sm:$0xff]
      %v173 = vld [vmem:[%s165] sm:$0xff]
      %v174 = vld [vmem:[%s165 + $0x8] sm:$0xff]
      %v175 = vld [vmem:[%s165 + $0x10] sm:$0xff]
      %v176 = vld [vmem:[%s165 + $0x18] sm:$0xff]
      %v177 = vld [vmem:[%s165 + $0x20] sm:$0xff]
      %v178 = vld [vmem:[%s165 + $0x28] sm:$0xff]
      %v179 = vld [vmem:[%s165 + $0x30] sm:$0xff]
      %v180 = vld [vmem:[%s165 + $0x38] sm:$0xff]
      %v181 = vld [vmem:[%s165 + $0x40] sm:$0xff]
      %v182 = vld [vmem:[%s165 + $0x48] sm:$0xff]
      %v183 = vld [vmem:[%s165 + $0x50] sm:$0xff]
      %v184 = vld [vmem:[%s165 + $0x58] sm:$0xff]
      %v185 = vld [vmem:[%s165 + $0x60] sm:$0xff]
      %v186 = vld [vmem:[%s165 + $0x68] sm:$0xff]
      %v187 = vld [vmem:[%s165 + $0x70] sm:$0xff]
      %v188 = vld [vmem:[%s165 + $0x78] sm:$0xff]
      %v189 = vld [vmem:[%s165 + $0x80] sm:$0xff]
      %v190 = vld [vmem:[%s165 + $0x88] sm:$0xff]
      %v191 = vld [vmem:[%s165 + $0x90] sm:$0x33]
      %v192 = vld [vmem:[%s2] sm:$0xff]
      %194 = vset.pattern.permute.xlu0 0
      %195 = vperm.xlu0 %194, %v192
      %v196 = vpop.permute.xlu0 %195
      %v199 = vunpack.c.l.b16 %v172
      %v200 = vunpack.c.h.b16 %v172
      %v201 = vpack.c.b16 %v199, %v199
      %v202 = vpack.c.b16 %v200, %v200
      %v223 = vunpack.c.l.b16 %v173
      %v224 = vunpack.c.h.b16 %v173
      %v225 = vunpack.c.l.b16 %v174
      %v226 = vunpack.c.h.b16 %v174
      %v227 = vunpack.c.l.b16 %v175
      %v228 = vunpack.c.h.b16 %v175
      %v229 = vunpack.c.l.b16 %v176
      %v230 = vunpack.c.h.b16 %v176
      %v231 = vunpack.c.l.b16 %v177
      %v232 = vunpack.c.h.b16 %v177
      %v233 = vunpack.c.l.b16 %v178
      %v234 = vunpack.c.h.b16 %v178
      %v235 = vunpack.c.l.b16 %v179
      %v236 = vunpack.c.h.b16 %v179
      %v237 = vunpack.c.l.b16 %v180
      %v238 = vunpack.c.h.b16 %v180
      %v239 = vunpack.c.l.b16 %v181
      %v240 = vunpack.c.h.b16 %v181
      %v241 = vunpack.c.l.b16 %v182
      %v242 = vunpack.c.h.b16 %v182
      %v243 = vunpack.c.l.b16 %v183
      %v244 = vunpack.c.h.b16 %v183
      %v245 = vunpack.c.l.b16 %v184
      %v246 = vunpack.c.h.b16 %v184
      %v247 = vunpack.c.l.b16 %v185
      %v248 = vunpack.c.h.b16 %v185
      %v249 = vunpack.c.l.b16 %v186
      %v250 = vunpack.c.h.b16 %v186
      %v251 = vunpack.c.l.b16 %v187
      %v252 = vunpack.c.h.b16 %v187
      %v253 = vunpack.c.l.b16 %v188
      %v254 = vunpack.c.h.b16 %v188
      %v255 = vunpack.c.l.b16 %v189
      %v256 = vunpack.c.h.b16 %v189
      %v257 = vunpack.c.l.b16 %v190
      %v258 = vunpack.c.h.b16 %v190
      %v259 = vunpack.c.l.b16 %v191
      %v260 = vunpack.c.h.b16 %v191
      %v261 = vpack.c.b16 %v225, %v223
      %v262 = vpack.c.b16 %v226, %v224
      %v263 = vpack.c.b16 %v229, %v227
      %v264 = vpack.c.b16 %v230, %v228
      %v265 = vpack.c.b16 %v233, %v231
      %v266 = vpack.c.b16 %v234, %v232
      %v267 = vpack.c.b16 %v237, %v235
      %v268 = vpack.c.b16 %v238, %v236
      %v269 = vpack.c.b16 %v241, %v239
      %v270 = vpack.c.b16 %v242, %v240
      %v271 = vpack.c.b16 %v245, %v243
      %v272 = vpack.c.b16 %v246, %v244
      %v273 = vpack.c.b16 %v249, %v247
      %v274 = vpack.c.b16 %v250, %v248
      %v275 = vpack.c.b16 %v253, %v251
      %v276 = vpack.c.b16 %v254, %v252
      %v277 = vpack.c.b16 %v257, %v255
      %v278 = vpack.c.b16 %v258, %v256
      %v279 = vpack.c.b16 %v259, %v259
      %v280 = vpack.c.b16 %v260, %v260
      %vm299 = vcmask 154624
      %v301 = vsel %vm299, %v202, 0
      %vm303 = vcmask 1040384
      %vm304 = vcmask 1041408
      %v305 = vsel %vm303, 4294967295, 65535
      %v306 = vsel %vm304, %v305, 0
      %v308 = vand.u32 %v279, %v306
      %v311 = vand.u32 %v280, %v306
      %313 = vmatprep.subr.bf16.mxu0 %v262
      %314 = vmatpush1.bf16.msra.mxu0 %v261
      %315 = vmatprep.subr.bf16.mxu0 %v264
      %316 = vmatpush1.bf16.msra.mxu0 %v263
      %317 = vmatprep.subr.bf16.mxu0 %v266
      %318 = vmatpush1.bf16.msra.mxu0 %v265
      %319 = vmatprep.subr.bf16.mxu0 %v268
      %320 = vmatpush1.bf16.msra.mxu0 %v267
      %321 = vmatprep.subr.bf16.mxu0 %v270
      %322 = vmatpush1.bf16.msra.mxu0 %v269
      %323 = vmatprep.subr.bf16.mxu0 %v272
      %324 = vmatpush1.bf16.msra.mxu0 %v271
      %325 = vmatprep.subr.bf16.mxu0 %v274
      %326 = vmatpush1.bf16.msra.mxu0 %v273
      %327 = vmatprep.subr.bf16.mxu0 %v276
      %328 = vmatpush1.bf16.msra.mxu0 %v275
      %329 = vmatprep.subr.bf16.mxu0 %v278
      %330 = vmatpush1.bf16.msra.mxu0 %v277
      %331 = vmatprep.subr.bf16.mxu0 %v311
      %332 = vmatpush1.bf16.msra.mxu0 %v308
      %333 = vmatprep.subr.bf16.mxu0 0
      %334 = vmatpush1.bf16.msra.mxu0 0
      %335 = vmatprep.subr.bf16.mxu0 0
      %336 = vmatpush1.bf16.msra.mxu0 0
      %337 = vmatprep.subr.bf16.mxu0 0
      %338 = vmatpush1.bf16.msra.mxu0 0
      %339 = vmatprep.subr.bf16.mxu0 0
      %340 = vmatpush1.bf16.msra.mxu0 0
      %341 = vmatprep.subr.bf16.mxu0 0
      %342 = vmatpush1.bf16.msra.mxu0 0
      %343 = vmatprep.subr.bf16.mxu0 0
      %344 = vmatpush1.bf16.msra.mxu0 0
      %345 = vmatprep.mubr.bf16.mxu0 %v301
      %346 = vmatmul.mubr.bf16.gmra.mrb[0].mxu0 %v201
      %v347 = vpop.f32.mrb[0].mxu0
      %v348 = vadd.f32 %v196, %v347
      %v349 = vpop.f32.mrb[0].mxu0
      %v350 = vadd.f32 %v196, %v349
      %v351 = vpop.f32.mrb[0].mxu0
      %v352 = vpop.f32.mrb[0].mxu0
      %353 = vdwg.mxu0
      %v354 = vadd.f32 %v348, %v350
      %355 = vadd.xlane.f32.xlu0 %v354
      %v356 = vpop.xlane.xlu0 %355
      %v357 = vrcp.pop 256.0
      %v358 = vmul.f32 %v356, %v357
      %v359 = vsub.f32 %v348, %v358
      %v360 = vsub.f32 %v350, %v358
      %v361 = vmul.f32 %v359, %v359
      %v362 = vmul.f32 %v360, %v360
      %v363 = vadd.f32 %v361, %v362
      %364 = vadd.xlane.f32.xlu0 %v363
      %v365 = vpop.xlane.xlu0 %364
      %v366 = vmul.f32 %v365, %v357
      %v367 = vadd.f32 %v366, 1e-05
      %v368 = vrsqrt.pop %v367
      %v369 = vmul.f32 %v359, %v368
      %v370 = vmul.f32 %v360, %v368
      %v371 = vmax.f32 %v369, 0.0
      %v372 = vmax.f32 %v370, 0.0
      %v373 = vpack.c.bf16 %v371, %v371
      %v374 = vpack.c.bf16 %v372, %v372
      %v377 = vunpack.c.l.b16 %v373
      %v378 = vunpack.c.l.b16 %v374
      %v379 = vpack.c.b16 %v378, %v377
      %381 = vst [vmem:[%s170] sm:$0xff] %v379
      %p382 = scmp.lt.s32.totalorder %s14, 1
      %s383 = scalar_select %p382, %s14, 1
      %s384 = smul.addr %s383, 2
      %s385 = smul.addr %s384, 4
      %s386 = scalar_lea.vmem %s3, %s385
      // Predicated region
      $region33: #{cyclegan_forward.50} parent=31 // pred_check
        %p387 = pneg %p100
      $region34: #{cyclegan_forward.50} parent=31 // pred_check_branch
        %389 = sbr.rel (%p387) target = $region36
      $region35: #{cyclegan_forward.50} parent=31 // pred_region
        _
      $region36: #{cyclegan_forward.50} parent=31 // pred_fallthru
        _
    $region32: #{cyclegan_forward.50} parent=5 // pred_fallthru
      _
    %p390 = scmp.le.s32.totalorder 2, %s9
    // Predicated region
    $region37: #{cyclegan_forward.50} parent=5 // pred_check
      %p391 = pneg %p390
    $region38: #{cyclegan_forward.50} parent=5 // pred_check_branch
      %393 = sbr.rel (%p391) target = $region40
    $region39: #{cyclegan_forward.50} parent=5 // pred_region
      %s394 = ssub.s32 %s9, 2
      // Predicated region
      $region41: #{cyclegan_forward.50} parent=39 // pred_check
        %p395 = pneg %p106
      $region42: #{cyclegan_forward.50} parent=39 // pred_check_branch
        %397 = sbr.rel (%p395) target = $region44
      $region43: #{cyclegan_forward.50} parent=39 // pred_region
        %p398 = scmp.lt.s32.totalorder %s15, 1
        %s399 = scalar_select %p398, %s15, 1
        %s400 = smul.addr %s399, 2
        %s401 = smul.addr %s400, 4
        %s402 = scalar_lea.vmem %s3, %s401
      $region44: #{cyclegan_forward.50} parent=39 // pred_fallthru
        _
    $region40: #{cyclegan_forward.50} parent=5 // pred_fallthru
      _
  $region6: #{cyclegan_forward.50} parent=0 // loop_footer
    %s13 = sadd.s32 1, %s9
  $region7: #{cyclegan_forward.50} parent=0 // loop_footer_branch
    %8 = sbr.rel target = $region3
  $region8: #{cyclegan_forward.50} parent=0 // loop_exit
    _

// kernel: cyclegan_forward.51
$region0: #{cyclegan_forward.51}
  #allocation0 [shape = 'u32[]', space=smem, size = 0x4, offset = 0x4, fixed_abs, tag = 'smem constant byte address 0x4 - core index']
  #allocation1 [shape = 'u32[144,128]{1,0:T(1,128)}', space=vmem, size = 0x12000, scoped, tag = 'internal scratch']
  %s0 = inlined_call_operand.vmem [shape: bf16[2,72,64], index: 0, kind: input, shape index: {}]
  %s1 = inlined_call_operand.vmem [shape: bf16[16,72], index: 1, kind: input, shape index: {}]
  %s2 = inlined_call_operand.vmem [shape: f32[16,1], index: 2, kind: input, shape index: {}]
  %s3 = inlined_call_operand.vmem [shape: bf16[2,16,64], index: 3, kind: output, shape index: {}]
  %s4 = sld [smem:[#allocation0]]
  $region45: #{cyclegan_forward.51} parent=0
    _
  %s6 = ssub.s32 1, %s4
  %s7 = scalar_select 0, %s6, %s4
  loop: start=0, step=1, limit=4
  $region2: #{cyclegan_forward.51} parent=0 // loop_pre_header
    _
  $region3: #{cyclegan_forward.51} parent=0 // loop_header
    %s9 = sphi 0, %s13
    %p10 = scmp.ge.s32.totalorder %s9, 4
    %s19 = sphi 0, %s21
    %s22 = sphi 0, %s19
    %s23 = sphi 0, %s22
    %s39 = sphi 0, %s23
    %s43 = sphi 0, %s43
    %s45 = sphi 0, %s43
    %s46 = sphi 0, %s45
    %s60 = sphi 0, %s46
    %s64 = sphi 0, %s64
    %s66 = sphi 0, %s64
    %s67 = sphi 0, %s66
    %s81 = sphi 0, %s67
    %s87 = sphi 0, %s89
    %s90 = sphi 0, %s87
    %s91 = sphi 0, %s90
    %s107 = sphi 0, %s91
  $region4: #{cyclegan_forward.51} parent=0 // loop_header_branch
    %12 = sbr.rel (%p10) target = $region8
  $region5: #{cyclegan_forward.51} parent=0 // loop_body
    %s14 = ssub.s32 %s9, 1
    %s15 = ssub.s32 %s9, 2
    %s16 = sadd.s32 %s9, 1
    %s17 = ssub.s32 %s9, %s16
    %p18 = scmp.eq.s32.totalorder %s17, 0
    %s20 = sadd.s32 %s19, 1
    %s21 = scalar_select %p18, %s19, %s20
    %p24 = pneg %p18
    %p25 = scmp.eq.s32.totalorder %s9, 1
    %p26 = por %p24, %p25
    %p27 = scmp.ne.s32.totalorder %s19, %s22
    %p28 = scmp.eq.s32.totalorder %s9, 0
    %p29 = por %p27, %p28
    %p30 = scmp.ne.s32.totalorder %s19, %s22
    %p31 = scmp.eq.s32.totalorder %s14, 1
    %p32 = por %p30, %p31
    %p33 = scmp.ne.s32.totalorder %s22, %s23
    %p34 = scmp.eq.s32.totalorder %s14, 0
    %p35 = por %p33, %p34
    %p36 = scmp.ne.s32.totalorder %s22, %s23
    %p37 = scmp.eq.s32.totalorder %s15, 1
    %p38 = por %p36, %p37
    %p40 = scmp.ne.s32.totalorder %s23, %s39
    %p41 = scmp.eq.s32.totalorder %s15, 0
    %p42 = por %p40, %p41
    %s44 = sadd.s32 %s43, 1
    %p47 = scmp.eq.s32.totalorder %s9, 1
    %p48 = scmp.ne.s32.totalorder %s43, %s45
    %p49 = scmp.eq.s32.totalorder %s9, 0
    %p50 = por %p48, %p49
    %p51 = scmp.ne.s32.totalorder %s43, %s45
    %p52 = scmp.eq.s32.totalorder %s14, 1
    %p53 = por %p51, %p52
    %p54 = scmp.ne.s32.totalorder %s45, %s46
    %p55 = scmp.eq.s32.totalorder %s14, 0
    %p56 = por %p54, %p55
    %p57 = scmp.ne.s32.totalorder %s45, %s46
    %p58 = scmp.eq.s32.totalorder %s15, 1
    %p59 = por %p57, %p58
    %p61 = scmp.ne.s32.totalorder %s46, %s60
    %p62 = scmp.eq.s32.totalorder %s15, 0
    %p63 = por %p61, %p62
    %s65 = sadd.s32 %s64, 1
    %p68 = scmp.eq.s32.totalorder %s9, 1
    %p69 = scmp.ne.s32.totalorder %s64, %s66
    %p70 = scmp.eq.s32.totalorder %s9, 0
    %p71 = por %p69, %p70
    %p72 = scmp.ne.s32.totalorder %s64, %s66
    %p73 = scmp.eq.s32.totalorder %s14, 1
    %p74 = por %p72, %p73
    %p75 = scmp.ne.s32.totalorder %s66, %s67
    %p76 = scmp.eq.s32.totalorder %s14, 0
    %p77 = por %p75, %p76
    %p78 = scmp.ne.s32.totalorder %s66, %s67
    %p79 = scmp.eq.s32.totalorder %s15, 1
    %p80 = por %p78, %p79
    %p82 = scmp.ne.s32.totalorder %s67, %s81
    %p83 = scmp.eq.s32.totalorder %s15, 0
    %p84 = por %p82, %p83
    %s85 = ssub.s32 %s9, %s16
    %p86 = scmp.eq.s32.totalorder %s85, 0
    %s88 = sadd.s32 %s87, 1
    %s89 = scalar_select %p86, %s87, %s88
    %p92 = pneg %p86
    %p93 = scmp.eq.s32.totalorder %s9, 1
    %p94 = por %p92, %p93
    %p95 = scmp.ne.s32.totalorder %s87, %s90
    %p96 = scmp.eq.s32.totalorder %s9, 0
    %p97 = por %p95, %p96
    %p98 = scmp.ne.s32.totalorder %s87, %s90
    %p99 = scmp.eq.s32.totalorder %s14, 1
    %p100 = por %p98, %p99
    %p101 = scmp.ne.s32.totalorder %s90, %s91
    %p102 = scmp.eq.s32.totalorder %s14, 0
    %p103 = por %p101, %p102
    %p104 = scmp.ne.s32.totalorder %s90, %s91
    %p105 = scmp.eq.s32.totalorder %s15, 1
    %p106 = por %p104, %p105
    %p108 = scmp.ne.s32.totalorder %s91, %s107
    %p109 = scmp.eq.s32.totalorder %s15, 0
    %p110 = por %p108, %p109
    %p111 = scmp.le.s32.totalorder 1, %s9
    %p112 = scmp.lt.s32.totalorder %s9, 3
    %p113 = pnand %p111, %p112
    %p114 = pneg %p113
    // Predicated region
    $region9: #{cyclegan_forward.51} parent=5 // pred_check
      _
    $region10: #{cyclegan_forward.51} parent=5 // pred_check_branch
      %116 = sbr.rel (%p113) target = $region12
    $region11: #{cyclegan_forward.51} parent=5 // pred_region
      %s117 = ssub.s32 %s9, 1
      // Predicated region
      $region13: #{cyclegan_forward.51} parent=11 // pred_check
        %p118 = pneg %p56
      $region14: #{cyclegan_forward.51} parent=11 // pred_check_branch
        %120 = sbr.rel (%p118) target = $region16
      $region15: #{cyclegan_forward.51} parent=11 // pred_region
        _
      $region16: #{cyclegan_forward.51} parent=11 // pred_fallthru
        _
      // Predicated region
      $region17: #{cyclegan_forward.51} parent=11 // pred_check
        %p121 = pneg %p77
      $region18: #{cyclegan_forward.51} parent=11 // pred_check_branch
        %123 = sbr.rel (%p121) target = $region20
      $region19: #{cyclegan_forward.51} parent=11 // pred_region
        _
      $region20: #{cyclegan_forward.51} parent=11 // pred_fallthru
        _
    $region12: #{cyclegan_forward.51} parent=5 // pred_fallthru
      _
    %p124 = scmp.lt.s32.totalorder %s9, 2
    // Predicated region
    $region21: #{cyclegan_forward.51} parent=5 // pred_check
      %p125 = pneg %p124
    $region22: #{cyclegan_forward.51} parent=5 // pred_check_branch
      %127 = sbr.rel (%p125) target = $region24
    $region23: #{cyclegan_forward.51} parent=5 // pred_region
      // Predicated region
      $region25: #{cyclegan_forward.51} parent=23 // pred_check
        %p128 = pneg %p29
      $region26: #{cyclegan_forward.51} parent=23 // pred_check_branch
        %130 = sbr.rel (%p128) target = $region28
      $region27: #{cyclegan_forward.51} parent=23 // pred_region
        %p131 = scmp.lt.s32.totalorder %s9, 1
        %s132 = scalar_select %p131, %s9, 1
        %s133 = smul.addr %s132, 9
        %s134 = smul.addr %s133, 4
        %s135 = scalar_lea.vmem %s0, %s134
      $region28: #{cyclegan_forward.51} parent=23 // pred_fallthru
        _
    $region24: #{cyclegan_forward.51} parent=5 // pred_fallthru
      _
    %p136 = scmp.le.s32.totalorder 1, %s9
    %p137 = scmp.lt.s32.totalorder %s9, 3
    %p138 = pnand %p136, %p137
    %p139 = pneg %p138
    // Predicated region
    $region29: #{cyclegan_forward.51} parent=5 // pred_check
      _
    $region30: #{cyclegan_forward.51} parent=5 // pred_check_branch
      %141 = sbr.rel (%p138) target = $region32
    $region31: #{cyclegan_forward.51} parent=5 // pred_region
      %s142 = ssub.s32 %s9, 1
      %p143 = scmp.lt.s32.totalorder %s14, 1
      %s144 = scalar_select %p143, %s14, 1
      %s145 = smul.addr %s144, 9
      %s146 = smul.addr %s145, 4
      %s147 = scalar_lea.vmem %s0, %s146
      %p148 = pneg %p35
      %p149 = pneg %p32
      %p150 = pneg %p56
      %p151 = pneg %p53
      %p152 = pneg %p77
      %p153 = pneg %p74
      %p154 = pneg %p103
      %p155 = pneg %p100
      %p156 = scmp.lt.s32.totalorder %s14, 1
      %s157 = scalar_select %p156, %s14, 1
      %s158 = smul.addr %s157, 2
      %s159 = smul.addr %s158, 4
      %s160 = scalar_lea.vmem %s3, %s159
      %p161 = scmp.lt.s32.totalorder %s14, 1
      %s162 = scalar_select %p161, %s14, 1
      %s163 = smul.addr %s162, 9
      %s164 = smul.addr %s163, 4
      %s165 = scalar_lea.vmem %s0, %s164
      %p166 = scmp.lt.s32.totalorder %s14, 1
      %s167 = scalar_select %p166, %s14, 1
      %s168 = smul.addr %s167, 2
      %s169 = smul.addr %s168, 4
      %s170 = scalar_lea.vmem %s3, %s169
      %v172 = vld [vmem:[%s1] sm:$0xf]
      %v173 = vld [vmem:[%s1 + $0x4] sm:$0xf]
      %v174 = vld [vmem:[%s165] sm:$0xf]
      %v175 = vld [vmem:[%s165 + $0x4] sm:$0xf]
      %v176 = vld [vmem:[%s165 + $0x8] sm:$0xf]
      %v177 = vld [vmem:[%s165 + $0xc] sm:$0xf]
      %v178 = vld [vmem:[%s165 + $0x10] sm:$0xf]
      %v179 = vld [vmem:[%s165 + $0x14] sm:$0xf]
      %v180 = vld [vmem:[%s165 + $0x18] sm:$0xf]
      %v181 = vld [vmem:[%s165 + $0x1c] sm:$0xf]
      %v182 = vld [vmem:[%s165 + $0x20] sm:$0xf]
      %v183 = vld [vmem:[%s2] sm:$0xff]
      %v184 = vld [vmem:[%s2 + $0x8] sm:$0xff]
      %186 = vset.pattern.permute.xlu0 0
      %187 = vperm.xlu0 %186, %v183
      %v188 = vpop.permute.xlu0 %187
      %191 = vset.pattern.permute.xlu0 0
      %192 = vperm.xlu0 %191, %v184
      %v193 = vpop.permute.xlu0 %192
      %v197 = vunpack.c.l.b16 %v172
      %v198 = vunpack.c.l.b16 %v173
      %v199 = vpack.c.b16 %v198, %v197
      %v209 = vunpack.c.l.b16 %v174
      %v210 = vunpack.c.l.b16 %v175
      %v211 = vunpack.c.l.b16 %v176
      %v212 = vunpack.c.l.b16 %v177
      %v213 = vunpack.c.l.b16 %v178
      %v214 = vunpack.c.l.b16 %v179
      %v215 = vunpack.c.l.b16 %v180
      %v216 = vunpack.c.l.b16 %v181
      %v217 = vunpack.c.l.b16 %v182
      %v218 = vpack.c.b16 %v210, %v209
      %v219 = vpack.c.b16 %v212, %v211
      %v220 = vpack.c.b16 %v214, %v213
      %v221 = vpack.c.b16 %v216, %v215
      %v222 = vpack.c.b16 %v217, %v217
      %vm227 = vcmask 588800
      %v229 = vsel %vm227, %v199, 0
      %vm231 = vcmask 1043456
      %v233 = vsel %vm231, %v222, 0
      %235 = vmatprep.subr.bf16.mxu0 0
      %236 = vmatpush1.bf16.msra.mxu0 %v218
      %237 = vmatprep.subr.bf16.mxu0 0
      %238 = vmatpush1.bf16.msra.mxu0 %v219
      %239 = vmatprep.subr.bf16.mxu0 0
      %240 = vmatpush1.bf16.msra.mxu0 %v220
      %241 = vmatprep.subr.bf16.mxu0 0
      %242 = vmatpush1.bf16.msra.mxu0 %v221
      %243 = vmatprep.subr.bf16.mxu0 0
      %244 = vmatpush1.bf16.msra.mxu0 %v233
      %245 = vmatprep.subr.bf16.mxu0 0
      %246 = vmatpush1.bf16.msra.mxu0 0
      %247 = vmatprep.subr.bf16.mxu0 0
      %248 = vmatpush1.bf16.msra.mxu0 0
      %249 = vmatprep.subr.bf16.mxu0 0
      %250 = vmatpush1.bf16.msra.mxu0 0
      %251 = vmatprep.subr.bf16.mxu0 0
      %252 = vmatpush1.bf16.msra.mxu0 0
      %253 = vmatprep.subr.bf16.mxu0 0
      %254 = vmatpush1.bf16.msra.mxu0 0
      %255 = vmatprep.subr.bf16.mxu0 0
      %256 = vmatpush1.bf16.msra.mxu0 0
      %257 = vmatprep.subr.bf16.mxu0 0
      %258 = vmatpush1.bf16.msra.mxu0 0
      %259 = vmatprep.subr.bf16.mxu0 0
      %260 = vmatpush1.bf16.msra.mxu0 0
      %261 = vmatprep.subr.bf16.mxu0 0
      %262 = vmatpush1.bf16.msra.mxu0 0
      %263 = vmatprep.subr.bf16.mxu0 0
      %264 = vmatpush1.bf16.msra.mxu0 0
      %265 = vmatprep.subr.bf16.mxu0 0
      %266 = vmatpush1.bf16.msra.mxu0 0
      %267 = vmatprep.mubr.bf16.mxu0 0
      %268 = vmatmul.mubr.bf16.gmra.mrb[0].mxu0 %v229
      %v269 = vpop.f32.mrb[0].mxu0
      %v270 = vadd.f32 %v188, %v269
      %v271 = vpop.f32.mrb[0].mxu0
      %v272 = vpop.f32.mrb[0].mxu0
      %v273 = vadd.f32 %v193, %v272
      %v274 = vpop.f32.mrb[0].mxu0
      %275 = vdwg.mxu0
      %vm276 = vcmask 523264
      %v277 = vsel %vm276, %v270, 0.0
      %278 = vadd.xlane.f32.xlu0 %v277
      %v279 = vpop.xlane.xlu0 %278
      %v280 = vsel %vm276, %v273, 0.0
      %281 = vadd.xlane.f32.xlu0 %v280
      %v282 = vpop.xlane.xlu0 %281
      %v283 = vrcp.pop 64.0
      %v284 = vmul.f32 %v279, %v283
      %v285 = vmul.f32 %v282, %v283
      %v286 = vsub.f32 %v270, %v284
      %v287 = vsub.f32 %v273, %v285
      %v288 = vmul.f32 %v286, %v286
      %v289 = vmul.f32 %v287, %v287
      %v290 = vsel %vm276, %v288, 0.0
      %291 = vadd.xlane.f32.xlu0 %v290
      %v292 = vpop.xlane.xlu0 %291
      %v293 = vsel %vm276, %v289, 0.0
      %294 = vadd.xlane.f32.xlu0 %v293
      %v295 = vpop.xlane.xlu0 %294
      %v296 = vmul.f32 %v292, %v283
      %v297 = vmul.f32 %v295, %v283
      %v298 = vadd.f32 %v296, 1e-05
      %v299 = vadd.f32 %v297, 1e-05
      %v300 = vrsqrt.pop %v298
      %v301 = vrsqrt.pop %v299
      %v302 = vmul.f32 %v286, %v300
      %v303 = vmul.f32 %v287, %v301
      %v304 = vmax.f32 %v302, 0.0
      %v305 = vmax.f32 %v303, 0.0
      %v306 = vpack.c.bf16 %v305, %v304
      %v308 = vunpack.c.l.b16 %v306
      %v309 = vunpack.c.h.b16 %v306
      %v310 = vpack.c.b16 %v308, %v308
      %v311 = vpack.c.b16 %v309, %v309
      %vm314 = vcmask 519168
      %315 = vst.msk [vmem:[%s170] sm:$0xf] %vm314, %v310
      %316 = vst.msk [vmem:[%s170 + $0x4] sm:$0xf] %vm314, %v311
      %p317 = scmp.lt.s32.totalorder %s14, 1
      %s318 = scalar_select %p317, %s14, 1
      %s319 = smul.addr %s318, 2
      %s320 = smul.addr %s319, 4
      %s321 = scalar_lea.vmem %s3, %s320
      // Predicated region
      $region33: #{cyclegan_forward.51} parent=31 // pred_check
        %p322 = pneg %p100
      $region34: #{cyclegan_forward.51} parent=31 // pred_check_branch
        %324 = sbr.rel (%p322) target = $region36
      $region35: #{cyclegan_forward.51} parent=31 // pred_region
        _
      $region36: #{cyclegan_forward.51} parent=31 // pred_fallthru
        _
    $region32: #{cyclegan_forward.51} parent=5 // pred_fallthru
      _
    %p325 = scmp.le.s32.totalorder 2, %s9
    // Predicated region
    $region37: #{cyclegan_forward.51} parent=5 // pred_check
      %p326 = pneg %p325
    $region38: #{cyclegan_forward.51} parent=5 // pred_check_branch
      %328 = sbr.rel (%p326) target = $region40
    $region39: #{cyclegan_forward.51} parent=5 // pred_region
      %s329 = ssub.s32 %s9, 2
      // Predicated region
      $region41: #{cyclegan_forward.51} parent=39 // pred_check
        %p330 = pneg %p106
      $region42: #{cyclegan_forward.51} parent=39 // pred_check_branch
        %332 = sbr.rel (%p330) target = $region44
      $region43: #{cyclegan_forward.51} parent=39 // pred_region
        %p333 = scmp.lt.s32.totalorder %s15, 1
        %s334 = scalar_select %p333, %s15, 1
        %s335 = smul.addr %s334, 2
        %s336 = smul.addr %s335, 4
        %s337 = scalar_lea.vmem %s3, %s336
      $region44: #{cyclegan_forward.51} parent=39 // pred_fallthru
        _
    $region40: #{cyclegan_forward.51} parent=5 // pred_fallthru
      _
  $region6: #{cyclegan_forward.51} parent=0 // loop_footer
    %s13 = sadd.s32 1, %s9
  $region7: #{cyclegan_forward.51} parent=0 // loop_footer_branch
    %8 = sbr.rel target = $region3
  $region8: #{cyclegan_forward.51} parent=0 // loop_exit
    _

// kernel: cyclegan_forward.52
$region0: #{cyclegan_forward.52}
  #allocation0 [shape = 'u32[]', space=smem, size = 0x4, offset = 0x4, fixed_abs, tag = 'smem constant byte address 0x4 - core index']
  #allocation1 [shape = 'u32[144,128]{1,0:T(1,128)}', space=vmem, size = 0x12000, scoped, tag = 'internal scratch']
  %s0 = inlined_call_operand.vmem [shape: bf16[2,144,16], index: 0, kind: input, shape index: {}]
  %s1 = inlined_call_operand.vmem [shape: bf16[32,144], index: 1, kind: input, shape index: {}]
  %s2 = inlined_call_operand.vmem [shape: f32[32,1], index: 2, kind: input, shape index: {}]
  %s3 = inlined_call_operand.vmem [shape: bf16[2,32,16], index: 3, kind: output, shape index: {}]
  %s4 = sld [smem:[#allocation0]]
  $region45: #{cyclegan_forward.52} parent=0
    _
  %s6 = ssub.s32 1, %s4
  %s7 = scalar_select 0, %s6, %s4
  loop: start=0, step=1, limit=4
  $region2: #{cyclegan_forward.52} parent=0 // loop_pre_header
    _
  $region3: #{cyclegan_forward.52} parent=0 // loop_header
    %s9 = sphi 0, %s13
    %p10 = scmp.ge.s32.totalorder %s9, 4
    %s19 = sphi 0, %s21
    %s22 = sphi 0, %s19
    %s23 = sphi 0, %s22
    %s39 = sphi 0, %s23
    %s43 = sphi 0, %s43
    %s45 = sphi 0, %s43
    %s46 = sphi 0, %s45
    %s60 = sphi 0, %s46
    %s64 = sphi 0, %s64
    %s66 = sphi 0, %s64
    %s67 = sphi 0, %s66
    %s81 = sphi 0, %s67
    %s87 = sphi 0, %s89
    %s90 = sphi 0, %s87
    %s91 = sphi 0, %s90
    %s107 = sphi 0, %s91
  $region4: #{cyclegan_forward.52} parent=0 // loop_header_branch
    %12 = sbr.rel (%p10) target = $region8
  $region5: #{cyclegan_forward.52} parent=0 // loop_body
    %s14 = ssub.s32 %s9, 1
    %s15 = ssub.s32 %s9, 2
    %s16 = sadd.s32 %s9, 1
    %s17 = ssub.s32 %s9, %s16
    %p18 = scmp.eq.s32.totalorder %s17, 0
    %s20 = sadd.s32 %s19, 1
    %s21 = scalar_select %p18, %s19, %s20
    %p24 = pneg %p18
    %p25 = scmp.eq.s32.totalorder %s9, 1
    %p26 = por %p24, %p25
    %p27 = scmp.ne.s32.totalorder %s19, %s22
    %p28 = scmp.eq.s32.totalorder %s9, 0
    %p29 = por %p27, %p28
    %p30 = scmp.ne.s32.totalorder %s19, %s22
    %p31 = scmp.eq.s32.totalorder %s14, 1
    %p32 = por %p30, %p31
    %p33 = scmp.ne.s32.totalorder %s22, %s23
    %p34 = scmp.eq.s32.totalorder %s14, 0
    %p35 = por %p33, %p34
    %p36 = scmp.ne.s32.totalorder %s22, %s23
    %p37 = scmp.eq.s32.totalorder %s15, 1
    %p38 = por %p36, %p37
    %p40 = scmp.ne.s32.totalorder %s23, %s39
    %p41 = scmp.eq.s32.totalorder %s15, 0
    %p42 = por %p40, %p41
    %s44 = sadd.s32 %s43, 1
    %p47 = scmp.eq.s32.totalorder %s9, 1
    %p48 = scmp.ne.s32.totalorder %s43, %s45
    %p49 = scmp.eq.s32.totalorder %s9, 0
    %p50 = por %p48, %p49
    %p51 = scmp.ne.s32.totalorder %s43, %s45
    %p52 = scmp.eq.s32.totalorder %s14, 1
    %p53 = por %p51, %p52
    %p54 = scmp.ne.s32.totalorder %s45, %s46
    %p55 = scmp.eq.s32.totalorder %s14, 0
    %p56 = por %p54, %p55
    %p57 = scmp.ne.s32.totalorder %s45, %s46
    %p58 = scmp.eq.s32.totalorder %s15, 1
    %p59 = por %p57, %p58
    %p61 = scmp.ne.s32.totalorder %s46, %s60
    %p62 = scmp.eq.s32.totalorder %s15, 0
    %p63 = por %p61, %p62
    %s65 = sadd.s32 %s64, 1
    %p68 = scmp.eq.s32.totalorder %s9, 1
    %p69 = scmp.ne.s32.totalorder %s64, %s66
    %p70 = scmp.eq.s32.totalorder %s9, 0
    %p71 = por %p69, %p70
    %p72 = scmp.ne.s32.totalorder %s64, %s66
    %p73 = scmp.eq.s32.totalorder %s14, 1
    %p74 = por %p72, %p73
    %p75 = scmp.ne.s32.totalorder %s66, %s67
    %p76 = scmp.eq.s32.totalorder %s14, 0
    %p77 = por %p75, %p76
    %p78 = scmp.ne.s32.totalorder %s66, %s67
    %p79 = scmp.eq.s32.totalorder %s15, 1
    %p80 = por %p78, %p79
    %p82 = scmp.ne.s32.totalorder %s67, %s81
    %p83 = scmp.eq.s32.totalorder %s15, 0
    %p84 = por %p82, %p83
    %s85 = ssub.s32 %s9, %s16
    %p86 = scmp.eq.s32.totalorder %s85, 0
    %s88 = sadd.s32 %s87, 1
    %s89 = scalar_select %p86, %s87, %s88
    %p92 = pneg %p86
    %p93 = scmp.eq.s32.totalorder %s9, 1
    %p94 = por %p92, %p93
    %p95 = scmp.ne.s32.totalorder %s87, %s90
    %p96 = scmp.eq.s32.totalorder %s9, 0
    %p97 = por %p95, %p96
    %p98 = scmp.ne.s32.totalorder %s87, %s90
    %p99 = scmp.eq.s32.totalorder %s14, 1
    %p100 = por %p98, %p99
    %p101 = scmp.ne.s32.totalorder %s90, %s91
    %p102 = scmp.eq.s32.totalorder %s14, 0
    %p103 = por %p101, %p102
    %p104 = scmp.ne.s32.totalorder %s90, %s91
    %p105 = scmp.eq.s32.totalorder %s15, 1
    %p106 = por %p104, %p105
    %p108 = scmp.ne.s32.totalorder %s91, %s107
    %p109 = scmp.eq.s32.totalorder %s15, 0
    %p110 = por %p108, %p109
    %p111 = scmp.le.s32.totalorder 1, %s9
    %p112 = scmp.lt.s32.totalorder %s9, 3
    %p113 = pnand %p111, %p112
    %p114 = pneg %p113
    // Predicated region
    $region9: #{cyclegan_forward.52} parent=5 // pred_check
      _
    $region10: #{cyclegan_forward.52} parent=5 // pred_check_branch
      %116 = sbr.rel (%p113) target = $region12
    $region11: #{cyclegan_forward.52} parent=5 // pred_region
      %s117 = ssub.s32 %s9, 1
      // Predicated region
      $region13: #{cyclegan_forward.52} parent=11 // pred_check
        %p118 = pneg %p56
      $region14: #{cyclegan_forward.52} parent=11 // pred_check_branch
        %120 = sbr.rel (%p118) target = $region16
      $region15: #{cyclegan_forward.52} parent=11 // pred_region
        _
      $region16: #{cyclegan_forward.52} parent=11 // pred_fallthru
        _
      // Predicated region
      $region17: #{cyclegan_forward.52} parent=11 // pred_check
        %p121 = pneg %p77
      $region18: #{cyclegan_forward.52} parent=11 // pred_check_branch
        %123 = sbr.rel (%p121) target = $region20
      $region19: #{cyclegan_forward.52} parent=11 // pred_region
        _
      $region20: #{cyclegan_forward.52} parent=11 // pred_fallthru
        _
    $region12: #{cyclegan_forward.52} parent=5 // pred_fallthru
      _
    %p124 = scmp.lt.s32.totalorder %s9, 2
    // Predicated region
    $region21: #{cyclegan_forward.52} parent=5 // pred_check
      %p125 = pneg %p124
    $region22: #{cyclegan_forward.52} parent=5 // pred_check_branch
      %127 = sbr.rel (%p125) target = $region24
    $region23: #{cyclegan_forward.52} parent=5 // pred_region
      // Predicated region
      $region25: #{cyclegan_forward.52} parent=23 // pred_check
        %p128 = pneg %p29
      $region26: #{cyclegan_forward.52} parent=23 // pred_check_branch
        %130 = sbr.rel (%p128) target = $region28
      $region27: #{cyclegan_forward.52} parent=23 // pred_region
        %p131 = scmp.lt.s32.totalorder %s9, 1
        %s132 = scalar_select %p131, %s9, 1
        %s133 = smul.addr %s132, 18
        %s134 = smul.addr %s133, 4
        %s135 = scalar_lea.vmem %s0, %s134
      $region28: #{cyclegan_forward.52} parent=23 // pred_fallthru
        _
    $region24: #{cyclegan_forward.52} parent=5 // pred_fallthru
      _
    %p136 = scmp.le.s32.totalorder 1, %s9
    %p137 = scmp.lt.s32.totalorder %s9, 3
    %p138 = pnand %p136, %p137
    %p139 = pneg %p138
    // Predicated region
    $region29: #{cyclegan_forward.52} parent=5 // pred_check
      _
    $region30: #{cyclegan_forward.52} parent=5 // pred_check_branch
      %141 = sbr.rel (%p138) target = $region32
    $region31: #{cyclegan_forward.52} parent=5 // pred_region
      %s142 = ssub.s32 %s9, 1
      %p143 = scmp.lt.s32.totalorder %s14, 1
      %s144 = scalar_select %p143, %s14, 1
      %s145 = smul.addr %s144, 18
      %s146 = smul.addr %s145, 4
      %s147 = scalar_lea.vmem %s0, %s146
      %p148 = pneg %p35
      %p149 = pneg %p32
      %p150 = pneg %p56
      %p151 = pneg %p53
      %p152 = pneg %p77
      %p153 = pneg %p74
      %p154 = pneg %p103
      %p155 = pneg %p100
      %p156 = scmp.lt.s32.totalorder %s14, 1
      %s157 = scalar_select %p156, %s14, 1
      %s158 = smul.addr %s157, 4
      %s159 = smul.addr %s158, 4
      %s160 = scalar_lea.vmem %s3, %s159
      %p161 = scmp.lt.s32.totalorder %s14, 1
      %s162 = scalar_select %p161, %s14, 1
      %s163 = smul.addr %s162, 18
      %s164 = smul.addr %s163, 4
      %s165 = scalar_lea.vmem %s0, %s164
      %p166 = scmp.lt.s32.totalorder %s14, 1
      %s167 = scalar_select %p166, %s14, 1
      %s168 = smul.addr %s167, 4
      %s169 = smul.addr %s168, 4
      %s170 = scalar_lea.vmem %s3, %s169
      %v172 = vld [vmem:[%s1] sm:$0xff]
      %v173 = vld [vmem:[%s1 + $0x8] sm:$0xff]
      %v174 = vld [vmem:[%s1 + $0x10] sm:$0xff]
      %v175 = vld [vmem:[%s1 + $0x18] sm:$0xff]
      %v176 = vld [vmem:[%s165] sm:$0xf]
      %v177 = vld [vmem:[%s165 + $0x4] sm:$0xf]
      %v178 = vld [vmem:[%s165 + $0x8] sm:$0xf]
      %v179 = vld [vmem:[%s165 + $0xc] sm:$0xf]
      %v180 = vld [vmem:[%s165 + $0x10] sm:$0xf]
      %v181 = vld [vmem:[%s165 + $0x14] sm:$0xf]
      %v182 = vld [vmem:[%s165 + $0x18] sm:$0xf]
      %v183 = vld [vmem:[%s165 + $0x1c] sm:$0xf]
      %v184 = vld [vmem:[%s165 + $0x20] sm:$0xf]
      %v185 = vld [vmem:[%s165 + $0x24] sm:$0xf]
      %v186 = vld [vmem:[%s165 + $0x28] sm:$0xf]
      %v187 = vld [vmem:[%s165 + $0x2c] sm:$0xf]
      %v188 = vld [vmem:[%s165 + $0x30] sm:$0xf]
      %v189 = vld [vmem:[%s165 + $0x34] sm:$0xf]
      %v190 = vld [vmem:[%s165 + $0x38] sm:$0xf]
      %v191 = vld [vmem:[%s165 + $0x3c] sm:$0xf]
      %v192 = vld [vmem:[%s165 + $0x40] sm:$0xf]
      %v193 = vld [vmem:[%s165 + $0x44] sm:$0xf]
      %v194 = vld [vmem:[%s2] sm:$0xff]
      %v195 = vld [vmem:[%s2 + $0x8] sm:$0xff]
      %v196 = vld [vmem:[%s2 + $0x10] sm:$0xff]
      %v197 = vld [vmem:[%s2 + $0x18] sm:$0xff]
      %199 = vset.pattern.permute.xlu0 0
      %200 = vperm.xlu0 %199, %v194
      %v201 = vpop.permute.xlu0 %200
      %204 = vset.pattern.permute.xlu0 0
      %205 = vperm.xlu0 %204, %v195
      %v206 = vpop.permute.xlu0 %205
      %209 = vset.pattern.permute.xlu0 0
      %210 = vperm.xlu0 %209, %v196
      %v211 = vpop.permute.xlu0 %210
      %214 = vset.pattern.permute.xlu0 0
      %215 = vperm.xlu0 %214, %v197
      %v216 = vpop.permute.xlu0 %215
      %v222 = vunpack.c.l.b16 %v172
      %v223 = vunpack.c.h.b16 %v172
      %v224 = vunpack.c.l.b16 %v173
      %v225 = vunpack.c.h.b16 %v173
      %v226 = vunpack.c.l.b16 %v174
      %v227 = vunpack.c.h.b16 %v174
      %v228 = vunpack.c.l.b16 %v175
      %v229 = vunpack.c.h.b16 %v175
      %v230 = vpack.c.b16 %v224, %v222
      %v231 = vpack.c.b16 %v225, %v223
      %v232 = vpack.c.b16 %v228, %v226
      %v233 = vpack.c.b16 %v229, %v227
      %v254 = vunpack.c.l.b16 %v176
      %v255 = vunpack.c.l.b16 %v177
      %v256 = vunpack.c.l.b16 %v178
      %v257 = vunpack.c.l.b16 %v179
      %v258 = vunpack.c.l.b16 %v180
      %v259 = vunpack.c.l.b16 %v181
      %v260 = vunpack.c.l.b16 %v182
      %v261 = vunpack.c.l.b16 %v183
      %v262 = vunpack.c.l.b16 %v184
      %v263 = vunpack.c.l.b16 %v185
      %v264 = vunpack.c.l.b16 %v186
      %v265 = vunpack.c.l.b16 %v187
      %v266 = vunpack.c.l.b16 %v188
      %v267 = vunpack.c.l.b16 %v189
      %v268 = vunpack.c.l.b16 %v190
      %v269 = vunpack.c.l.b16 %v191
      %v270 = vunpack.c.l.b16 %v192
      %v271 = vunpack.c.l.b16 %v193
      %v272 = vpack.c.b16 %v255, %v254
      %v273 = vpack.c.b16 %v257, %v256
      %v274 = vpack.c.b16 %v259, %v258
      %v275 = vpack.c.b16 %v261, %v260
      %v276 = vpack.c.b16 %v263, %v262
      %v277 = vpack.c.b16 %v265, %v264
      %v278 = vpack.c.b16 %v267, %v266
      %v279 = vpack.c.b16 %v269, %v268
      %v280 = vpack.c.b16 %v271, %v270
      %vm290 = vcmask 130048
      %v292 = vsel %vm290, %v231, 0
      %v295 = vsel %vm290, %v233, 0
      %297 = vmatprep.subr.bf16.mxu0 0
      %298 = vmatpush1.bf16.msra.mxu0 %v272
      %299 = vmatprep.subr.bf16.mxu0 0
      %300 = vmatpush1.bf16.msra.mxu0 %v273
      %301 = vmatprep.subr.bf16.mxu0 0
      %302 = vmatpush1.bf16.msra.mxu0 %v274
      %303 = vmatprep.subr.bf16.mxu0 0
      %304 = vmatpush1.bf16.msra.mxu0 %v275
      %305 = vmatprep.subr.bf16.mxu0 0
      %306 = vmatpush1.bf16.msra.mxu0 %v276
      %307 = vmatprep.subr.bf16.mxu0 0
      %308 = vmatpush1.bf16.msra.mxu0 %v277
      %309 = vmatprep.subr.bf16.mxu0 0
      %310 = vmatpush1.bf16.msra.mxu0 %v278
      %311 = vmatprep.subr.bf16.mxu0 0
      %312 = vmatpush1.bf16.msra.mxu0 %v279
      %313 = vmatprep.subr.bf16.mxu0 0
      %314 = vmatpush1.bf16.msra.mxu0 %v280
      %315 = vmatprep.subr.bf16.mxu0 0
      %316 = vmatpush1.bf16.msra.mxu0 0
      %317 = vmatprep.subr.bf16.mxu0 0
      %318 = vmatpush1.bf16.msra.mxu0 0
      %319 = vmatprep.subr.bf16.mxu0 0
      %320 = vmatpush1.bf16.msra.mxu0 0
      %321 = vmatprep.subr.bf16.mxu0 0
      %322 = vmatpush1.bf16.msra.mxu0 0
      %323 = vmatprep.subr.bf16.mxu0 0
      %324 = vmatpush1.bf16.msra.mxu0 0
      %325 = vmatprep.subr.bf16.mxu0 0
      %326 = vmatpush1.bf16.msra.mxu0 0
      %327 = vmatprep.subr.bf16.mxu0 0
      %328 = vmatpush1.bf16.msra.mxu0 0
      %329 = vmatprep.mubr.bf16.mxu0 %v292
      %330 = vmatmul.mubr.bf16.gmra.mrb[0].mxu0 %v230
      %v331 = vpop.f32.mrb[0].mxu0
      %v332 = vadd.f32 %v201, %v331
      %v333 = vpop.f32.mrb[0].mxu0
      %v334 = vpop.f32.mrb[0].mxu0
      %v335 = vadd.f32 %v206, %v334
      %v336 = vpop.f32.mrb[0].mxu0
      %337 = vmatprep.mubr.bf16.mxu0 %v295
      %338 = vmatmul.mubr.bf16.gmra.mrb[0].mxu0 %v232
      %v339 = vpop.f32.mrb[0].mxu0
      %v340 = vadd.f32 %v211, %v339
      %v341 = vpop.f32.mrb[0].mxu0
      %v342 = vpop.f32.mrb[0].mxu0
      %v343 = vadd.f32 %v216, %v342
      %v344 = vpop.f32.mrb[0].mxu0
      %345 = vdwg.mxu0
      %v346 = vsel %vm290, %v332, 0.0
      %347 = vadd.xlane.f32.xlu0 %v346
      %v348 = vpop.xlane.xlu0 %347
      %v349 = vsel %vm290, %v335, 0.0
      %350 = vadd.xlane.f32.xlu0 %v349
      %v351 = vpop.xlane.xlu0 %350
      %v352 = vsel %vm290, %v340, 0.0
      %353 = vadd.xlane.f32.xlu0 %v352
      %v354 = vpop.xlane.xlu0 %353
      %v355 = vsel %vm290, %v343, 0.0
      %356 = vadd.xlane.f32.xlu0 %v355
      %v357 = vpop.xlane.xlu0 %356
      %v358 = vrcp.pop 16.0
      %v359 = vmul.f32 %v348, %v358
      %v360 = vmul.f32 %v351, %v358
      %v361 = vmul.f32 %v354, %v358
      %v362 = vmul.f32 %v357, %v358
      %v363 = vsub.f32 %v332, %v359
      %v364 = vsub.f32 %v335, %v360
      %v365 = vsub.f32 %v340, %v361
      %v366 = vsub.f32 %v343, %v362
      %v367 = vmul.f32 %v363, %v363
      %v368 = vmul.f32 %v364, %v364
      %v369 = vmul.f32 %v365, %v365
      %v370 = vmul.f32 %v366, %v366
      %v371 = vsel %vm290, %v367, 0.0
      %372 = vadd.xlane.f32.xlu0 %v371
      %v373 = vpop.xlane.xlu0 %372
      %v374 = vsel %vm290, %v368, 0.0
      %375 = vadd.xlane.f32.xlu0 %v374
      %v376 = vpop.xlane.xlu0 %375
      %v377 = vsel %vm290, %v369, 0.0
      %378 = vadd.xlane.f32.xlu0 %v377
      %v379 = vpop.xlane.xlu0 %378
      %v380 = vsel %vm290, %v370, 0.0
      %381 = vadd.xlane.f32.xlu0 %v380
      %v382 = vpop.xlane.xlu0 %381
      %v383 = vmul.f32 %v373, %v358
      %v384 = vmul.f32 %v376, %v358
      %v385 = vmul.f32 %v379, %v358
      %v386 = vmul.f32 %v382, %v358
      %v387 = vadd.f32 %v383, 1e-05
      %v388 = vadd.f32 %v384, 1e-05
      %v389 = vadd.f32 %v385, 1e-05
      %v390 = vadd.f32 %v386, 1e-05
      %v391 = vrsqrt.pop %v387
      %v392 = vrsqrt.pop %v388
      %v393 = vrsqrt.pop %v389
      %v394 = vrsqrt.pop %v390
      %v395 = vmul.f32 %v363, %v391
      %v396 = vmul.f32 %v364, %v392
      %v397 = vmul.f32 %v365, %v393
      %v398 = vmul.f32 %v366, %v394
      %v399 = vmax.f32 %v395, 0.0
      %v400 = vmax.f32 %v396, 0.0
      %v401 = vmax.f32 %v397, 0.0
      %v402 = vmax.f32 %v398, 0.0
      %v403 = vpack.c.bf16 %v400, %v399
      %v404 = vpack.c.bf16 %v402, %v401
      %v407 = vunpack.c.l.b16 %v403
      %v408 = vunpack.c.h.b16 %v403
      %v409 = vunpack.c.l.b16 %v404
      %v410 = vunpack.c.h.b16 %v404
      %v411 = vpack.c.b16 %v407, %v407
      %v412 = vpack.c.b16 %v408, %v408
      %v413 = vpack.c.b16 %v409, %v409
      %v414 = vpack.c.b16 %v410, %v410
      %vm419 = vcmask 125952
      %420 = vst.msk [vmem:[%s170] sm:$0xf] %vm419, %v411
      %421 = vst.msk [vmem:[%s170 + $0x4] sm:$0xf] %vm419, %v412
      %422 = vst.msk [vmem:[%s170 + $0x8] sm:$0xf] %vm419, %v413
      %423 = vst.msk [vmem:[%s170 + $0xc] sm:$0xf] %vm419, %v414
      %p424 = scmp.lt.s32.totalorder %s14, 1
      %s425 = scalar_select %p424, %s14, 1
      %s426 = smul.addr %s425, 4
      %s427 = smul.addr %s426, 4
      %s428 = scalar_lea.vmem %s3, %s427
      // Predicated region
      $region33: #{cyclegan_forward.52} parent=31 // pred_check
        %p429 = pneg %p100
      $region34: #{cyclegan_forward.52} parent=31 // pred_check_branch
        %431 = sbr.rel (%p429) target = $region36
      $region35: #{cyclegan_forward.52} parent=31 // pred_region
        _
      $region36: #{cyclegan_forward.52} parent=31 // pred_fallthru
        _
    $region32: #{cyclegan_forward.52} parent=5 // pred_fallthru
      _
    %p432 = scmp.le.s32.totalorder 2, %s9
    // Predicated region
    $region37: #{cyclegan_forward.52} parent=5 // pred_check
      %p433 = pneg %p432
    $region38: #{cyclegan_forward.52} parent=5 // pred_check_branch
      %435 = sbr.rel (%p433) target = $region40
    $region39: #{cyclegan_forward.52} parent=5 // pred_region
      %s436 = ssub.s32 %s9, 2
      // Predicated region
      $region41: #{cyclegan_forward.52} parent=39 // pred_check
        %p437 = pneg %p106
      $region42: #{cyclegan_forward.52} parent=39 // pred_check_branch
        %439 = sbr.rel (%p437) target = $region44
      $region43: #{cyclegan_forward.52} parent=39 // pred_region
        %p440 = scmp.lt.s32.totalorder %s15, 1
        %s441 = scalar_select %p440, %s15, 1
        %s442 = smul.addr %s441, 4
        %s443 = smul.addr %s442, 4
        %s444 = scalar_lea.vmem %s3, %s443
      $region44: #{cyclegan_forward.52} parent=39 // pred_fallthru
        _
    $region40: #{cyclegan_forward.52} parent=5 // pred_fallthru
      _
  $region6: #{cyclegan_forward.52} parent=0 // loop_footer
    %s13 = sadd.s32 1, %s9
  $region7: #{cyclegan_forward.52} parent=0 // loop_footer_branch
    %8 = sbr.rel target = $region3
  $region8: #{cyclegan_forward.52} parent=0 // loop_exit
    _

// kernel: cyclegan_forward.53
$region0: #{cyclegan_forward.53}
  #allocation0 [shape = 'u32[]', space=smem, size = 0x4, offset = 0x4, fixed_abs, tag = 'smem constant byte address 0x4 - core index']
  #allocation1 [shape = 'u32[144,128]{1,0:T(1,128)}', space=vmem, size = 0x12000, scoped, tag = 'internal scratch']
  %s0 = inlined_call_operand.vmem [shape: bf16[2,288,16], index: 0, kind: input, shape index: {}]
  %s1 = inlined_call_operand.vmem [shape: bf16[32,288], index: 1, kind: input, shape index: {}]
  %s2 = inlined_call_operand.vmem [shape: f32[32,1], index: 2, kind: input, shape index: {}]
  %s3 = inlined_call_operand.vmem [shape: bf16[2,32,16], index: 3, kind: output, shape index: {}]
  %s4 = sld [smem:[#allocation0]]
  $region45: #{cyclegan_forward.53} parent=0
    _
  %s6 = ssub.s32 1, %s4
  %s7 = scalar_select 0, %s6, %s4
  loop: start=0, step=1, limit=4
  $region2: #{cyclegan_forward.53} parent=0 // loop_pre_header
    _
  $region3: #{cyclegan_forward.53} parent=0 // loop_header
    %s9 = sphi 0, %s13
    %p10 = scmp.ge.s32.totalorder %s9, 4
    %s19 = sphi 0, %s21
    %s22 = sphi 0, %s19
    %s23 = sphi 0, %s22
    %s39 = sphi 0, %s23
    %s43 = sphi 0, %s43
    %s45 = sphi 0, %s43
    %s46 = sphi 0, %s45
    %s60 = sphi 0, %s46
    %s64 = sphi 0, %s64
    %s66 = sphi 0, %s64
    %s67 = sphi 0, %s66
    %s81 = sphi 0, %s67
    %s87 = sphi 0, %s89
    %s90 = sphi 0, %s87
    %s91 = sphi 0, %s90
    %s107 = sphi 0, %s91
  $region4: #{cyclegan_forward.53} parent=0 // loop_header_branch
    %12 = sbr.rel (%p10) target = $region8
  $region5: #{cyclegan_forward.53} parent=0 // loop_body
    %s14 = ssub.s32 %s9, 1
    %s15 = ssub.s32 %s9, 2
    %s16 = sadd.s32 %s9, 1
    %s17 = ssub.s32 %s9, %s16
    %p18 = scmp.eq.s32.totalorder %s17, 0
    %s20 = sadd.s32 %s19, 1
    %s21 = scalar_select %p18, %s19, %s20
    %p24 = pneg %p18
    %p25 = scmp.eq.s32.totalorder %s9, 1
    %p26 = por %p24, %p25
    %p27 = scmp.ne.s32.totalorder %s19, %s22
    %p28 = scmp.eq.s32.totalorder %s9, 0
    %p29 = por %p27, %p28
    %p30 = scmp.ne.s32.totalorder %s19, %s22
    %p31 = scmp.eq.s32.totalorder %s14, 1
    %p32 = por %p30, %p31
    %p33 = scmp.ne.s32.totalorder %s22, %s23
    %p34 = scmp.eq.s32.totalorder %s14, 0
    %p35 = por %p33, %p34
    %p36 = scmp.ne.s32.totalorder %s22, %s23
    %p37 = scmp.eq.s32.totalorder %s15, 1
    %p38 = por %p36, %p37
    %p40 = scmp.ne.s32.totalorder %s23, %s39
    %p41 = scmp.eq.s32.totalorder %s15, 0
    %p42 = por %p40, %p41
    %s44 = sadd.s32 %s43, 1
    %p47 = scmp.eq.s32.totalorder %s9, 1
    %p48 = scmp.ne.s32.totalorder %s43, %s45
    %p49 = scmp.eq.s32.totalorder %s9, 0
    %p50 = por %p48, %p49
    %p51 = scmp.ne.s32.totalorder %s43, %s45
    %p52 = scmp.eq.s32.totalorder %s14, 1
    %p53 = por %p51, %p52
    %p54 = scmp.ne.s32.totalorder %s45, %s46
    %p55 = scmp.eq.s32.totalorder %s14, 0
    %p56 = por %p54, %p55
    %p57 = scmp.ne.s32.totalorder %s45, %s46
    %p58 = scmp.eq.s32.totalorder %s15, 1
    %p59 = por %p57, %p58
    %p61 = scmp.ne.s32.totalorder %s46, %s60
    %p62 = scmp.eq.s32.totalorder %s15, 0
    %p63 = por %p61, %p62
    %s65 = sadd.s32 %s64, 1
    %p68 = scmp.eq.s32.totalorder %s9, 1
    %p69 = scmp.ne.s32.totalorder %s64, %s66
    %p70 = scmp.eq.s32.totalorder %s9, 0
    %p71 = por %p69, %p70
    %p72 = scmp.ne.s32.totalorder %s64, %s66
    %p73 = scmp.eq.s32.totalorder %s14, 1
    %p74 = por %p72, %p73
    %p75 = scmp.ne.s32.totalorder %s66, %s67
    %p76 = scmp.eq.s32.totalorder %s14, 0
    %p77 = por %p75, %p76
    %p78 = scmp.ne.s32.totalorder %s66, %s67
    %p79 = scmp.eq.s32.totalorder %s15, 1
    %p80 = por %p78, %p79
    %p82 = scmp.ne.s32.totalorder %s67, %s81
    %p83 = scmp.eq.s32.totalorder %s15, 0
    %p84 = por %p82, %p83
    %s85 = ssub.s32 %s9, %s16
    %p86 = scmp.eq.s32.totalorder %s85, 0
    %s88 = sadd.s32 %s87, 1
    %s89 = scalar_select %p86, %s87, %s88
    %p92 = pneg %p86
    %p93 = scmp.eq.s32.totalorder %s9, 1
    %p94 = por %p92, %p93
    %p95 = scmp.ne.s32.totalorder %s87, %s90
    %p96 = scmp.eq.s32.totalorder %s9, 0
    %p97 = por %p95, %p96
    %p98 = scmp.ne.s32.totalorder %s87, %s90
    %p99 = scmp.eq.s32.totalorder %s14, 1
    %p100 = por %p98, %p99
    %p101 = scmp.ne.s32.totalorder %s90, %s91
    %p102 = scmp.eq.s32.totalorder %s14, 0
    %p103 = por %p101, %p102
    %p104 = scmp.ne.s32.totalorder %s90, %s91
    %p105 = scmp.eq.s32.totalorder %s15, 1
    %p106 = por %p104, %p105
    %p108 = scmp.ne.s32.totalorder %s91, %s107
    %p109 = scmp.eq.s32.totalorder %s15, 0
    %p110 = por %p108, %p109
    %p111 = scmp.le.s32.totalorder 1, %s9
    %p112 = scmp.lt.s32.totalorder %s9, 3
    %p113 = pnand %p111, %p112
    %p114 = pneg %p113
    // Predicated region
    $region9: #{cyclegan_forward.53} parent=5 // pred_check
      _
    $region10: #{cyclegan_forward.53} parent=5 // pred_check_branch
      %116 = sbr.rel (%p113) target = $region12
    $region11: #{cyclegan_forward.53} parent=5 // pred_region
      %s117 = ssub.s32 %s9, 1
      // Predicated region
      $region13: #{cyclegan_forward.53} parent=11 // pred_check
        %p118 = pneg %p56
      $region14: #{cyclegan_forward.53} parent=11 // pred_check_branch
        %120 = sbr.rel (%p118) target = $region16
      $region15: #{cyclegan_forward.53} parent=11 // pred_region
        _
      $region16: #{cyclegan_forward.53} parent=11 // pred_fallthru
        _
      // Predicated region
      $region17: #{cyclegan_forward.53} parent=11 // pred_check
        %p121 = pneg %p77
      $region18: #{cyclegan_forward.53} parent=11 // pred_check_branch
        %123 = sbr.rel (%p121) target = $region20
      $region19: #{cyclegan_forward.53} parent=11 // pred_region
        _
      $region20: #{cyclegan_forward.53} parent=11 // pred_fallthru
        _
    $region12: #{cyclegan_forward.53} parent=5 // pred_fallthru
      _
    %p124 = scmp.lt.s32.totalorder %s9, 2
    // Predicated region
    $region21: #{cyclegan_forward.53} parent=5 // pred_check
      %p125 = pneg %p124
    $region22: #{cyclegan_forward.53} parent=5 // pred_check_branch
      %127 = sbr.rel (%p125) target = $region24
    $region23: #{cyclegan_forward.53} parent=5 // pred_region
      // Predicated region
      $region25: #{cyclegan_forward.53} parent=23 // pred_check
        %p128 = pneg %p29
      $region26: #{cyclegan_forward.53} parent=23 // pred_check_branch
        %130 = sbr.rel (%p128) target = $region28
      $region27: #{cyclegan_forward.53} parent=23 // pred_region
        %p131 = scmp.lt.s32.totalorder %s9, 1
        %s132 = scalar_select %p131, %s9, 1
        %s133 = smul.addr %s132, 36
        %s134 = smul.addr %s133, 4
        %s135 = scalar_lea.vmem %s0, %s134
      $region28: #{cyclegan_forward.53} parent=23 // pred_fallthru
        _
    $region24: #{cyclegan_forward.53} parent=5 // pred_fallthru
      _
    %p136 = scmp.le.s32.totalorder 1, %s9
    %p137 = scmp.lt.s32.totalorder %s9, 3
    %p138 = pnand %p136, %p137
    %p139 = pneg %p138
    // Predicated region
    $region29: #{cyclegan_forward.53} parent=5 // pred_check
      _
    $region30: #{cyclegan_forward.53} parent=5 // pred_check_branch
      %141 = sbr.rel (%p138) target = $region32
    $region31: #{cyclegan_forward.53} parent=5 // pred_region
      %s142 = ssub.s32 %s9, 1
      %p143 = scmp.lt.s32.totalorder %s14, 1
      %s144 = scalar_select %p143, %s14, 1
      %s145 = smul.addr %s144, 36
      %s146 = smul.addr %s145, 4
      %s147 = scalar_lea.vmem %s0, %s146
      %p148 = pneg %p35
      %p149 = pneg %p32
      %p150 = pneg %p56
      %p151 = pneg %p53
      %p152 = pneg %p77
      %p153 = pneg %p74
      %p154 = pneg %p103
      %p155 = pneg %p100
      %p156 = scmp.lt.s32.totalorder %s14, 1
      %s157 = scalar_select %p156, %s14, 1
      %s158 = smul.addr %s157, 4
      %s159 = smul.addr %s158, 4
      %s160 = scalar_lea.vmem %s3, %s159
      %p161 = scmp.lt.s32.totalorder %s14, 1
      %s162 = scalar_select %p161, %s14, 1
      %s163 = smul.addr %s162, 36
      %s164 = smul.addr %s163, 4
      %s165 = scalar_lea.vmem %s0, %s164
      %p166 = scmp.lt.s32.totalorder %s14, 1
      %s167 = scalar_select %p166, %s14, 1
      %s168 = smul.addr %s167, 4
      %s169 = smul.addr %s168, 4
      %s170 = scalar_lea.vmem %s3, %s169
      %v172 = vld [vmem:[%s1] sm:$0xff]
      %v173 = vld [vmem:[%s1 + $0x8] sm:$0xf]
      %v174 = vld [vmem:[%s1 + $0xc] sm:$0xff]
      %v175 = vld [vmem:[%s1 + $0x14] sm:$0xf]
      %v176 = vld [vmem:[%s1 + $0x18] sm:$0xff]
      %v177 = vld [vmem:[%s1 + $0x20] sm:$0xf]
      %v178 = vld [vmem:[%s1 + $0x24] sm:$0xff]
      %v179 = vld [vmem:[%s1 + $0x2c] sm:$0xf]
      %v180 = vld [vmem:[%s165] sm:$0xf]
      %v181 = vld [vmem:[%s165 + $0x4] sm:$0xf]
      %v182 = vld [vmem:[%s165 + $0x8] sm:$0xf]
      %v183 = vld [vmem:[%s165 + $0xc] sm:$0xf]
      %v184 = vld [vmem:[%s165 + $0x10] sm:$0xf]
      %v185 = vld [vmem:[%s165 + $0x14] sm:$0xf]
      %v186 = vld [vmem:[%s165 + $0x18] sm:$0xf]
      %v187 = vld [vmem:[%s165 + $0x1c] sm:$0xf]
      %v188 = vld [vmem:[%s165 + $0x20] sm:$0xf]
      %v189 = vld [vmem:[%s165 + $0x24] sm:$0xf]
      %v190 = vld [vmem:[%s165 + $0x28] sm:$0xf]
      %v191 = vld [vmem:[%s165 + $0x2c] sm:$0xf]
      %v192 = vld [vmem:[%s165 + $0x30] sm:$0xf]
      %v193 = vld [vmem:[%s165 + $0x34] sm:$0xf]
      %v194 = vld [vmem:[%s165 + $0x38] sm:$0xf]
      %v195 = vld [vmem:[%s165 + $0x3c] sm:$0xf]
      %v196 = vld [vmem:[%s165 + $0x40] sm:$0xf]
      %v197 = vld [vmem:[%s165 + $0x44] sm:$0xf]
      %v198 = vld [vmem:[%s165 + $0x48] sm:$0xf]
      %v199 = vld [vmem:[%s165 + $0x4c] sm:$0xf]
      %v200 = vld [vmem:[%s165 + $0x50] sm:$0xf]
      %v201 = vld [vmem:[%s165 + $0x54] sm:$0xf]
      %v202 = vld [vmem:[%s165 + $0x58] sm:$0xf]
      %v203 = vld [vmem:[%s165 + $0x5c] sm:$0xf]
      %v204 = vld [vmem:[%s165 + $0x60] sm:$0xf]
      %v205 = vld [vmem:[%s165 + $0x64] sm:$0xf]
      %v206 = vld [vmem:[%s165 + $0x68] sm:$0xf]
      %v207 = vld [vmem:[%s165 + $0x6c] sm:$0xf]
      %v208 = vld [vmem:[%s165 + $0x70] sm:$0xf]
      %v209 = vld [vmem:[%s165 + $0x74] sm:$0xf]
      %v210 = vld [vmem:[%s165 + $0x78] sm:$0xf]
      %v211 = vld [vmem:[%s165 + $0x7c] sm:$0xf]
      %v212 = vld [vmem:[%s165 + $0x80] sm:$0xf]
      %v213 = vld [vmem:[%s165 + $0x84] sm:$0xf]
      %v214 = vld [vmem:[%s165 + $0x88] sm:$0xf]
      %v215 = vld [vmem:[%s165 + $0x8c] sm:$0xf]
      %v216 = vld [vmem:[%s2] sm:$0xff]
      %v217 = vld [vmem:[%s2 + $0x8] sm:$0xff]
      %v218 = vld [vmem:[%s2 + $0x10] sm:$0xff]
      %v219 = vld [vmem:[%s2 + $0x18] sm:$0xff]
      %221 = vset.pattern.permute.xlu0 0
      %222 = vperm.xlu0 %221, %v216
      %v223 = vpop.permute.xlu0 %222
      %226 = vset.pattern.permute.xlu0 0
      %227 = vperm.xlu0 %226, %v217
      %v228 = vpop.permute.xlu0 %227
      %231 = vset.pattern.permute.xlu0 0
      %232 = vperm.xlu0 %231, %v218
      %v233 = vpop.permute.xlu0 %232
      %236 = vset.pattern.permute.xlu0 0
      %237 = vperm.xlu0 %236, %v219
      %v238 = vpop.permute.xlu0 %237
      %v248 = vunpack.c.l.b16 %v172
      %v249 = vunpack.c.h.b16 %v172
      %v250 = vunpack.c.l.b16 %v173
      %v251 = vunpack.c.l.b16 %v174
      %v252 = vunpack.c.h.b16 %v174
      %v253 = vunpack.c.l.b16 %v175
      %v254 = vunpack.c.l.b16 %v176
      %v255 = vunpack.c.h.b16 %v176
      %v256 = vunpack.c.l.b16 %v177
      %v257 = vunpack.c.l.b16 %v178
      %v258 = vunpack.c.h.b16 %v178
      %v259 = vunpack.c.l.b16 %v179
      %v260 = vpack.c.b16 %v251, %v248
      %v261 = vpack.c.b16 %v252, %v249
      %v262 = vpack.c.b16 %v253, %v250
      %v263 = vpack.c.b16 %v257, %v254
      %v264 = vpack.c.b16 %v258, %v255
      %v265 = vpack.c.b16 %v259, %v256
      %v306 = vunpack.c.l.b16 %v180
      %v307 = vunpack.c.l.b16 %v181
      %v308 = vunpack.c.l.b16 %v182
      %v309 = vunpack.c.l.b16 %v183
      %v310 = vunpack.c.l.b16 %v184
      %v311 = vunpack.c.l.b16 %v185
      %v312 = vunpack.c.l.b16 %v186
      %v313 = vunpack.c.l.b16 %v187
      %v314 = vunpack.c.l.b16 %v188
      %v315 = vunpack.c.l.b16 %v189
      %v316 = vunpack.c.l.b16 %v190
      %v317 = vunpack.c.l.b16 %v191
      %v318 = vunpack.c.l.b16 %v192
      %v319 = vunpack.c.l.b16 %v193
      %v320 = vunpack.c.l.b16 %v194
      %v321 = vunpack.c.l.b16 %v195
      %v322 = vunpack.c.l.b16 %v196
      %v323 = vunpack.c.l.b16 %v197
      %v324 = vunpack.c.l.b16 %v198
      %v325 = vunpack.c.l.b16 %v199
      %v326 = vunpack.c.l.b16 %v200
      %v327 = vunpack.c.l.b16 %v201
      %v328 = vunpack.c.l.b16 %v202
      %v329 = vunpack.c.l.b16 %v203
      %v330 = vunpack.c.l.b16 %v204
      %v331 = vunpack.c.l.b16 %v205
      %v332 = vunpack.c.l.b16 %v206
      %v333 = vunpack.c.l.b16 %v207
      %v334 = vunpack.c.l.b16 %v208
      %v335 = vunpack.c.l.b16 %v209
      %v336 = vunpack.c.l.b16 %v210
      %v337 = vunpack.c.l.b16 %v211
      %v338 = vunpack.c.l.b16 %v212
      %v339 = vunpack.c.l.b16 %v213
      %v340 = vunpack.c.l.b16 %v214
      %v341 = vunpack.c.l.b16 %v215
      %v342 = vpack.c.b16 %v307, %v306
      %v343 = vpack.c.b16 %v309, %v308
      %v344 = vpack.c.b16 %v311, %v310
      %v345 = vpack.c.b16 %v313, %v312
      %v346 = vpack.c.b16 %v315, %v314
      %v347 = vpack.c.b16 %v317, %v316
      %v348 = vpack.c.b16 %v319, %v318
      %v349 = vpack.c.b16 %v321, %v320
      %v350 = vpack.c.b16 %v323, %v322
      %v351 = vpack.c.b16 %v325, %v324
      %v352 = vpack.c.b16 %v327, %v326
      %v353 = vpack.c.b16 %v329, %v328
      %v354 = vpack.c.b16 %v331, %v330
      %v355 = vpack.c.b16 %v333, %v332
      %v356 = vpack.c.b16 %v335, %v334
      %v357 = vpack.c.b16 %v337, %v336
      %v358 = vpack.c.b16 %v339, %v338
      %v359 = vpack.c.b16 %v341, %v340
      %vm378 = vcmask 261120
      %v380 = vsel %vm378, %v262, 0
      %v383 = vsel %vm378, %v265, 0
      %385 = vmatprep.subr.bf16.mxu0 0
      %386 = vmatpush1.bf16.msra.mxu0 %v342
      %387 = vmatprep.subr.bf16.mxu0 0
      %388 = vmatpush1.bf16.msra.mxu0 %v343
      %389 = vmatprep.subr.bf16.mxu0 0
      %390 = vmatpush1.bf16.msra.mxu0 %v344
      %391 = vmatprep.subr.bf16.mxu0 0
      %392 = vmatpush1.bf16.msra.mxu0 %v345
      %393 = vmatprep.subr.bf16.mxu0 0
      %394 = vmatpush1.bf16.msra.mxu0 %v346
      %395 = vmatprep.subr.bf16.mxu0 0
      %396 = vmatpush1.bf16.msra.mxu0 %v347
      %397 = vmatprep.subr.bf16.mxu0 0
      %398 = vmatpush1.bf16.msra.mxu0 %v348
      %399 = vmatprep.subr.bf16.mxu0 0
      %400 = vmatpush1.bf16.msra.mxu0 %v349
      %401 = vmatprep.subr.bf16.mxu0 0
      %402 = vmatpush1.bf16.msra.mxu0 %v350
      %403 = vmatprep.subr.bf16.mxu0 0
      %404 = vmatpush1.bf16.msra.mxu0 %v351
      %405 = vmatprep.subr.bf16.mxu0 0
      %406 = vmatpush1.bf16.msra.mxu0 %v352
      %407 = vmatprep.subr.bf16.mxu0 0
      %408 = vmatpush1.bf16.msra.mxu0 %v353
      %409 = vmatprep.subr.bf16.mxu0 0
      %410 = vmatpush1.bf16.msra.mxu0 %v354
      %411 = vmatprep.subr.bf16.mxu0 0
      %412 = vmatpush1.bf16.msra.mxu0 %v355
      %413 = vmatprep.subr.bf16.mxu0 0
      %414 = vmatpush1.bf16.msra.mxu0 %v356
      %415 = vmatprep.subr.bf16.mxu0 0
      %416 = vmatpush1.bf16.msra.mxu0 %v357
      %417 = vmatprep.mubr.bf16.mxu0 %v261
      %418 = vmatmul.mubr.bf16.gmra.mrb[0].mxu0 %v260
      %v419 = vpop.f32.mrb[0].mxu0
      %v420 = vadd.f32 %v223, %v419
      %v421 = vpop.f32.mrb[0].mxu0
      %v422 = vpop.f32.mrb[0].mxu0
      %v423 = vadd.f32 %v228, %v422
      %v424 = vpop.f32.mrb[0].mxu0
      %425 = vmatprep.mubr.bf16.mxu0 %v264
      %426 = vmatmul.mubr.bf16.gmra.mrb[0].mxu0 %v263
      %v427 = vpop.f32.mrb[0].mxu0
      %v428 = vadd.f32 %v233, %v427
      %v429 = vpop.f32.mrb[0].mxu0
      %v430 = vpop.f32.mrb[0].mxu0
      %v431 = vadd.f32 %v238, %v430
      %v432 = vpop.f32.mrb[0].mxu0
      %433 = vdwg.mxu0
      %434 = vmatprep.subr.bf16.mxu0 0
      %435 = vmatpush1.bf16.msra.mxu0 %v358
      %436 = vmatprep.subr.bf16.mxu0 0
      %437 = vmatpush1.bf16.msra.mxu0 %v359
      %438 = vmatprep.subr.bf16.mxu0 0
      %439 = vmatpush1.bf16.msra.mxu0 0
      %440 = vmatprep.subr.bf16.mxu0 0
      %441 = vmatpush1.bf16.msra.mxu0 0
      %442 = vmatprep.subr.bf16.mxu0 0
      %443 = vmatpush1.bf16.msra.mxu0 0
      %444 = vmatprep.subr.bf16.mxu0 0
      %445 = vmatpush1.bf16.msra.mxu0 0
      %446 = vmatprep.subr.bf16.mxu0 0
      %447 = vmatpush1.bf16.msra.mxu0 0
      %448 = vmatprep.subr.bf16.mxu0 0
      %449 = vmatpush1.bf16.msra.mxu0 0
      %450 = vmatprep.subr.bf16.mxu0 0
      %451 = vmatpush1.bf16.msra.mxu0 0
      %452 = vmatprep.subr.bf16.mxu0 0
      %453 = vmatpush1.bf16.msra.mxu0 0
      %454 = vmatprep.subr.bf16.mxu0 0
      %455 = vmatpush1.bf16.msra.mxu0 0
      %456 = vmatprep.subr.bf16.mxu0 0
      %457 = vmatpush1.bf16.msra.mxu0 0
      %458 = vmatprep.subr.bf16.mxu0 0
      %459 = vmatpush1.bf16.msra.mxu0 0
      %460 = vmatprep.subr.bf16.mxu0 0
      %461 = vmatpush1.bf16.msra.mxu0 0
      %462 = vmatprep.subr.bf16.mxu0 0
      %463 = vmatpush1.bf16.msra.mxu0 0
      %464 = vmatprep.subr.bf16.mxu0 0
      %465 = vmatpush1.bf16.msra.mxu0 0
      %466 = vmatprep.mubr.bf16.mxu0 0
      %467 = vmatmul.mubr.bf16.gmra.mrb[0].mxu0 %v380
      %v468 = vpop.f32.mrb[0].mxu0
      %v469 = vadd.f32 %v420, %v468
      %v470 = vpop.f32.mrb[0].mxu0
      %v471 = vpop.f32.mrb[0].mxu0
      %v472 = vadd.f32 %v423, %v471
      %v473 = vpop.f32.mrb[0].mxu0
      %474 = vmatprep.mubr.bf16.mxu0 0
      %475 = vmatmul.mubr.bf16.gmra.mrb[0].mxu0 %v383
      %v476 = vpop.f32.mrb[0].mxu0
      %v477 = vadd.f32 %v428, %v476
      %v478 = vpop.f32.mrb[0].mxu0
      %v479 = vpop.f32.mrb[0].mxu0
      %v480 = vadd.f32 %v431, %v479
      %v481 = vpop.f32.mrb[0].mxu0
      %482 = vdwg.mxu0
      %vm483 = vcmask 130048
      %v484 = vsel %vm483, %v469, 0.0
      %485 = vadd.xlane.f32.xlu0 %v484
      %v486 = vpop.xlane.xlu0 %485
      %v487 = vsel %vm483, %v472, 0.0
      %488 = vadd.xlane.f32.xlu0 %v487
      %v489 = vpop.xlane.xlu0 %488
      %v490 = vsel %vm483, %v477, 0.0
      %491 = vadd.xlane.f32.xlu0 %v490
      %v492 = vpop.xlane.xlu0 %491
      %v493 = vsel %vm483, %v480, 0.0
      %494 = vadd.xlane.f32.xlu0 %v493
      %v495 = vpop.xlane.xlu0 %494
      %v496 = vrcp.pop 16.0
      %v497 = vmul.f32 %v486, %v496
      %v498 = vmul.f32 %v489, %v496
      %v499 = vmul.f32 %v492, %v496
      %v500 = vmul.f32 %v495, %v496
      %v501 = vsub.f32 %v469, %v497
      %v502 = vsub.f32 %v472, %v498
      %v503 = vsub.f32 %v477, %v499
      %v504 = vsub.f32 %v480, %v500
      %v505 = vmul.f32 %v501, %v501
      %v506 = vmul.f32 %v502, %v502
      %v507 = vmul.f32 %v503, %v503
      %v508 = vmul.f32 %v504, %v504
      %v509 = vsel %vm483, %v505, 0.0
      %510 = vadd.xlane.f32.xlu0 %v509
      %v511 = vpop.xlane.xlu0 %510
      %v512 = vsel %vm483, %v506, 0.0
      %513 = vadd.xlane.f32.xlu0 %v512
      %v514 = vpop.xlane.xlu0 %513
      %v515 = vsel %vm483, %v507, 0.0
      %516 = vadd.xlane.f32.xlu0 %v515
      %v517 = vpop.xlane.xlu0 %516
      %v518 = vsel %vm483, %v508, 0.0
      %519 = vadd.xlane.f32.xlu0 %v518
      %v520 = vpop.xlane.xlu0 %519
      %v521 = vmul.f32 %v511, %v496
      %v522 = vmul.f32 %v514, %v496
      %v523 = vmul.f32 %v517, %v496
      %v524 = vmul.f32 %v520, %v496
      %v525 = vadd.f32 %v521, 1e-05
      %v526 = vadd.f32 %v522, 1e-05
      %v527 = vadd.f32 %v523, 1e-05
      %v528 = vadd.f32 %v524, 1e-05
      %v529 = vrsqrt.pop %v525
      %v530 = vrsqrt.pop %v526
      %v531 = vrsqrt.pop %v527
      %v532 = vrsqrt.pop %v528
      %v533 = vmul.f32 %v501, %v529
      %v534 = vmul.f32 %v502, %v530
      %v535 = vmul.f32 %v503, %v531
      %v536 = vmul.f32 %v504, %v532
      %v537 = vmax.f32 %v533, 0.0
      %v538 = vmax.f32 %v534, 0.0
      %v539 = vmax.f32 %v535, 0.0
      %v540 = vmax.f32 %v536, 0.0
      %v541 = vpack.c.bf16 %v538, %v537
      %v542 = vpack.c.bf16 %v540, %v539
      %v545 = vunpack.c.l.b16 %v541
      %v546 = vunpack.c.h.b16 %v541
      %v547 = vunpack.c.l.b16 %v542
      %v548 = vunpack.c.h.b16 %v542
      %v549 = vpack.c.b16 %v545, %v545
      %v550 = vpack.c.b16 %v546, %v546
      %v551 = vpack.c.b16 %v547, %v547
      %v552 = vpack.c.b16 %v548, %v548
      %vm557 = vcmask 125952
      %558 = vst.msk [vmem:[%s170] sm:$0xf] %vm557, %v549
      %559 = vst.msk [vmem:[%s170 + $0x4] sm:$0xf] %vm557, %v550
      %560 = vst.msk [vmem:[%s170 + $0x8] sm:$0xf] %vm557, %v551
      %561 = vst.msk [vmem:[%s170 + $0xc] sm:$0xf] %vm557, %v552
      %p562 = scmp.lt.s32.totalorder %s14, 1
      %s563 = scalar_select %p562, %s14, 1
      %s564 = smul.addr %s563, 4
      %s565 = smul.addr %s564, 4
      %s566 = scalar_lea.vmem %s3, %s565
      // Predicated region
      $region33: #{cyclegan_forward.53} parent=31 // pred_check
        %p567 = pneg %p100
      $region34: #{cyclegan_forward.53} parent=31 // pred_check_branch
        %569 = sbr.rel (%p567) target = $region36
      $region35: #{cyclegan_forward.53} parent=31 // pred_region
        _
      $region36: #{cyclegan_forward.53} parent=31 // pred_fallthru
        _
    $region32: #{cyclegan_forward.53} parent=5 // pred_fallthru
      _
    %p570 = scmp.le.s32.totalorder 2, %s9
    // Predicated region
    $region37: #{cyclegan_forward.53} parent=5 // pred_check
      %p571 = pneg %p570
    $region38: #{cyclegan_forward.53} parent=5 // pred_check_branch
      %573 = sbr.rel (%p571) target = $region40
    $region39: #{cyclegan_forward.53} parent=5 // pred_region
      %s574 = ssub.s32 %s9, 2
      // Predicated region
      $region41: #{cyclegan_forward.53} parent=39 // pred_check
        %p575 = pneg %p106
      $region42: #{cyclegan_forward.53} parent=39 // pred_check_branch
        %577 = sbr.rel (%p575) target = $region44
      $region43: #{cyclegan_forward.53} parent=39 // pred_region
        %p578 = scmp.lt.s32.totalorder %s15, 1
        %s579 = scalar_select %p578, %s15, 1
        %s580 = smul.addr %s579, 4
        %s581 = smul.addr %s580, 4
        %s582 = scalar_lea.vmem %s3, %s581
      $region44: #{cyclegan_forward.53} parent=39 // pred_fallthru
        _
    $region40: #{cyclegan_forward.53} parent=5 // pred_fallthru
      _
  $region6: #{cyclegan_forward.53} parent=0 // loop_footer
    %s13 = sadd.s32 1, %s9
  $region7: #{cyclegan_forward.53} parent=0 // loop_footer_branch
    %8 = sbr.rel target = $region3
  $region8: #{cyclegan_forward.53} parent=0 // loop_exit
    _

// kernel: cyclegan_forward.54
$region0: #{cyclegan_forward.54}
  #allocation0 [shape = 'u32[]', space=smem, size = 0x4, offset = 0x4, fixed_abs, tag = 'smem constant byte address 0x4 - core index']
  #allocation1 [shape = 'u32[144,128]{1,0:T(1,128)}', space=vmem, size = 0x12000, scoped, tag = 'internal scratch']
  %s0 = inlined_call_operand.vmem [shape: bf16[2,288,16], index: 0, kind: input, shape index: {}]
  %s1 = inlined_call_operand.vmem [shape: bf16[32,288], index: 1, kind: input, shape index: {}]
  %s2 = inlined_call_operand.vmem [shape: f32[32,1], index: 2, kind: input, shape index: {}]
  %s3 = inlined_call_operand.vmem [shape: bf16[2,32,16], index: 3, kind: input, shape index: {}]
  %s4 = inlined_call_operand.vmem [shape: bf16[2,32,16], index: 4, kind: output, shape index: {}]
  %s5 = sld [smem:[#allocation0]]
  $region49: #{cyclegan_forward.54} parent=0
    _
  %s7 = ssub.s32 1, %s5
  %s8 = scalar_select 0, %s7, %s5
  loop: start=0, step=1, limit=4
  $region2: #{cyclegan_forward.54} parent=0 // loop_pre_header
    _
  $region3: #{cyclegan_forward.54} parent=0 // loop_header
    %s10 = sphi 0, %s14
    %p11 = scmp.ge.s32.totalorder %s10, 4
    %s20 = sphi 0, %s22
    %s23 = sphi 0, %s20
    %s24 = sphi 0, %s23
    %s40 = sphi 0, %s24
    %s44 = sphi 0, %s44
    %s46 = sphi 0, %s44
    %s47 = sphi 0, %s46
    %s61 = sphi 0, %s47
    %s65 = sphi 0, %s65
    %s67 = sphi 0, %s65
    %s68 = sphi 0, %s67
    %s82 = sphi 0, %s68
    %s88 = sphi 0, %s90
    %s91 = sphi 0, %s88
    %s92 = sphi 0, %s91
    %s108 = sphi 0, %s92
    %s114 = sphi 0, %s116
    %s117 = sphi 0, %s114
    %s118 = sphi 0, %s117
    %s134 = sphi 0, %s118
  $region4: #{cyclegan_forward.54} parent=0 // loop_header_branch
    %13 = sbr.rel (%p11) target = $region8
  $region5: #{cyclegan_forward.54} parent=0 // loop_body
    %s15 = ssub.s32 %s10, 1
    %s16 = ssub.s32 %s10, 2
    %s17 = sadd.s32 %s10, 1
    %s18 = ssub.s32 %s10, %s17
    %p19 = scmp.eq.s32.totalorder %s18, 0
    %s21 = sadd.s32 %s20, 1
    %s22 = scalar_select %p19, %s20, %s21
    %p25 = pneg %p19
    %p26 = scmp.eq.s32.totalorder %s10, 1
    %p27 = por %p25, %p26
    %p28 = scmp.ne.s32.totalorder %s20, %s23
    %p29 = scmp.eq.s32.totalorder %s10, 0
    %p30 = por %p28, %p29
    %p31 = scmp.ne.s32.totalorder %s20, %s23
    %p32 = scmp.eq.s32.totalorder %s15, 1
    %p33 = por %p31, %p32
    %p34 = scmp.ne.s32.totalorder %s23, %s24
    %p35 = scmp.eq.s32.totalorder %s15, 0
    %p36 = por %p34, %p35
    %p37 = scmp.ne.s32.totalorder %s23, %s24
    %p38 = scmp.eq.s32.totalorder %s16, 1
    %p39 = por %p37, %p38
    %p41 = scmp.ne.s32.totalorder %s24, %s40
    %p42 = scmp.eq.s32.totalorder %s16, 0
    %p43 = por %p41, %p42
    %s45 = sadd.s32 %s44, 1
    %p48 = scmp.eq.s32.totalorder %s10, 1
    %p49 = scmp.ne.s32.totalorder %s44, %s46
    %p50 = scmp.eq.s32.totalorder %s10, 0
    %p51 = por %p49, %p50
    %p52 = scmp.ne.s32.totalorder %s44, %s46
    %p53 = scmp.eq.s32.totalorder %s15, 1
    %p54 = por %p52, %p53
    %p55 = scmp.ne.s32.totalorder %s46, %s47
    %p56 = scmp.eq.s32.totalorder %s15, 0
    %p57 = por %p55, %p56
    %p58 = scmp.ne.s32.totalorder %s46, %s47
    %p59 = scmp.eq.s32.totalorder %s16, 1
    %p60 = por %p58, %p59
    %p62 = scmp.ne.s32.totalorder %s47, %s61
    %p63 = scmp.eq.s32.totalorder %s16, 0
    %p64 = por %p62, %p63
    %s66 = sadd.s32 %s65, 1
    %p69 = scmp.eq.s32.totalorder %s10, 1
    %p70 = scmp.ne.s32.totalorder %s65, %s67
    %p71 = scmp.eq.s32.totalorder %s10, 0
    %p72 = por %p70, %p71
    %p73 = scmp.ne.s32.totalorder %s65, %s67
    %p74 = scmp.eq.s32.totalorder %s15, 1
    %p75 = por %p73, %p74
    %p76 = scmp.ne.s32.totalorder %s67, %s68
    %p77 = scmp.eq.s32.totalorder %s15, 0
    %p78 = por %p76, %p77
    %p79 = scmp.ne.s32.totalorder %s67, %s68
    %p80 = scmp.eq.s32.totalorder %s16, 1
    %p81 = por %p79, %p80
    %p83 = scmp.ne.s32.totalorder %s68, %s82
    %p84 = scmp.eq.s32.totalorder %s16, 0
    %p85 = por %p83, %p84
    %s86 = ssub.s32 %s10, %s17
    %p87 = scmp.eq.s32.totalorder %s86, 0
    %s89 = sadd.s32 %s88, 1
    %s90 = scalar_select %p87, %s88, %s89
    %p93 = pneg %p87
    %p94 = scmp.eq.s32.totalorder %s10, 1
    %p95 = por %p93, %p94
    %p96 = scmp.ne.s32.totalorder %s88, %s91
    %p97 = scmp.eq.s32.totalorder %s10, 0
    %p98 = por %p96, %p97
    %p99 = scmp.ne.s32.totalorder %s88, %s91
    %p100 = scmp.eq.s32.totalorder %s15, 1
    %p101 = por %p99, %p100
    %p102 = scmp.ne.s32.totalorder %s91, %s92
    %p103 = scmp.eq.s32.totalorder %s15, 0
    %p104 = por %p102, %p103
    %p105 = scmp.ne.s32.totalorder %s91, %s92
    %p106 = scmp.eq.s32.totalorder %s16, 1
    %p107 = por %p105, %p106
    %p109 = scmp.ne.s32.totalorder %s92, %s108
    %p110 = scmp.eq.s32.totalorder %s16, 0
    %p111 = por %p109, %p110
    %s112 = ssub.s32 %s10, %s17
    %p113 = scmp.eq.s32.totalorder %s112, 0
    %s115 = sadd.s32 %s114, 1
    %s116 = scalar_select %p113, %s114, %s115
    %p119 = pneg %p113
    %p120 = scmp.eq.s32.totalorder %s10, 1
    %p121 = por %p119, %p120
    %p122 = scmp.ne.s32.totalorder %s114, %s117
    %p123 = scmp.eq.s32.totalorder %s10, 0
    %p124 = por %p122, %p123
    %p125 = scmp.ne.s32.totalorder %s114, %s117
    %p126 = scmp.eq.s32.totalorder %s15, 1
    %p127 = por %p125, %p126
    %p128 = scmp.ne.s32.totalorder %s117, %s118
    %p129 = scmp.eq.s32.totalorder %s15, 0
    %p130 = por %p128, %p129
    %p131 = scmp.ne.s32.totalorder %s117, %s118
    %p132 = scmp.eq.s32.totalorder %s16, 1
    %p133 = por %p131, %p132
    %p135 = scmp.ne.s32.totalorder %s118, %s134
    %p136 = scmp.eq.s32.totalorder %s16, 0
    %p137 = por %p135, %p136
    %p138 = scmp.le.s32.totalorder 1, %s10
    %p139 = scmp.lt.s32.totalorder %s10, 3
    %p140 = pnand %p138, %p139
    %p141 = pneg %p140
    // Predicated region
    $region9: #{cyclegan_forward.54} parent=5 // pred_check
      _
    $region10: #{cyclegan_forward.54} parent=5 // pred_check_branch
      %143 = sbr.rel (%p140) target = $region12
    $region11: #{cyclegan_forward.54} parent=5 // pred_region
      %s144 = ssub.s32 %s10, 1
      // Predicated region
      $region13: #{cyclegan_forward.54} parent=11 // pred_check
        %p145 = pneg %p57
      $region14: #{cyclegan_forward.54} parent=11 // pred_check_branch
        %147 = sbr.rel (%p145) target = $region16
      $region15: #{cyclegan_forward.54} parent=11 // pred_region
        _
      $region16: #{cyclegan_forward.54} parent=11 // pred_fallthru
        _
      // Predicated region
      $region17: #{cyclegan_forward.54} parent=11 // pred_check
        %p148 = pneg %p78
      $region18: #{cyclegan_forward.54} parent=11 // pred_check_branch
        %150 = sbr.rel (%p148) target = $region20
      $region19: #{cyclegan_forward.54} parent=11 // pred_region
        _
      $region20: #{cyclegan_forward.54} parent=11 // pred_fallthru
        _
    $region12: #{cyclegan_forward.54} parent=5 // pred_fallthru
      _
    %p151 = scmp.lt.s32.totalorder %s10, 2
    // Predicated region
    $region21: #{cyclegan_forward.54} parent=5 // pred_check
      %p152 = pneg %p151
    $region22: #{cyclegan_forward.54} parent=5 // pred_check_branch
      %154 = sbr.rel (%p152) target = $region24
    $region23: #{cyclegan_forward.54} parent=5 // pred_region
      // Predicated region
      $region25: #{cyclegan_forward.54} parent=23 // pred_check
        %p155 = pneg %p30
      $region26: #{cyclegan_forward.54} parent=23 // pred_check_branch
        %157 = sbr.rel (%p155) target = $region28
      $region27: #{cyclegan_forward.54} parent=23 // pred_region
        %p158 = scmp.lt.s32.totalorder %s10, 1
        %s159 = scalar_select %p158, %s10, 1
        %s160 = smul.addr %s159, 36
        %s161 = smul.addr %s160, 4
        %s162 = scalar_lea.vmem %s0, %s161
      $region28: #{cyclegan_forward.54} parent=23 // pred_fallthru
        _
      // Predicated region
      $region29: #{cyclegan_forward.54} parent=23 // pred_check
        %p163 = pneg %p98
      $region30: #{cyclegan_forward.54} parent=23 // pred_check_branch
        %165 = sbr.rel (%p163) target = $region32
      $region31: #{cyclegan_forward.54} parent=23 // pred_region
        %p166 = scmp.lt.s32.totalorder %s10, 1
        %s167 = scalar_select %p166, %s10, 1
        %s168 = smul.addr %s167, 4
        %s169 = smul.addr %s168, 4
        %s170 = scalar_lea.vmem %s3, %s169
      $region32: #{cyclegan_forward.54} parent=23 // pred_fallthru
        _
    $region24: #{cyclegan_forward.54} parent=5 // pred_fallthru
      _
    %p171 = scmp.le.s32.totalorder 1, %s10
    %p172 = scmp.lt.s32.totalorder %s10, 3
    %p173 = pnand %p171, %p172
    %p174 = pneg %p173
    // Predicated region
    $region33: #{cyclegan_forward.54} parent=5 // pred_check
      _
    $region34: #{cyclegan_forward.54} parent=5 // pred_check_branch
      %176 = sbr.rel (%p173) target = $region36
    $region35: #{cyclegan_forward.54} parent=5 // pred_region
      %s177 = ssub.s32 %s10, 1
      %p178 = scmp.lt.s32.totalorder %s15, 1
      %s179 = scalar_select %p178, %s15, 1
      %s180 = smul.addr %s179, 36
      %s181 = smul.addr %s180, 4
      %s182 = scalar_lea.vmem %s0, %s181
      %p183 = pneg %p36
      %p184 = pneg %p33
      %p185 = pneg %p57
      %p186 = pneg %p54
      %p187 = pneg %p78
      %p188 = pneg %p75
      %p189 = scmp.lt.s32.totalorder %s15, 1
      %s190 = scalar_select %p189, %s15, 1
      %s191 = smul.addr %s190, 4
      %s192 = smul.addr %s191, 4
      %s193 = scalar_lea.vmem %s3, %s192
      %p194 = pneg %p104
      %p195 = pneg %p101
      %p196 = pneg %p130
      %p197 = pneg %p127
      %p198 = scmp.lt.s32.totalorder %s15, 1
      %s199 = scalar_select %p198, %s15, 1
      %s200 = smul.addr %s199, 4
      %s201 = smul.addr %s200, 4
      %s202 = scalar_lea.vmem %s4, %s201
      %p203 = scmp.lt.s32.totalorder %s15, 1
      %s204 = scalar_select %p203, %s15, 1
      %s205 = smul.addr %s204, 36
      %s206 = smul.addr %s205, 4
      %s207 = scalar_lea.vmem %s0, %s206
      %p208 = scmp.lt.s32.totalorder %s15, 1
      %s209 = scalar_select %p208, %s15, 1
      %s210 = smul.addr %s209, 4
      %s211 = smul.addr %s210, 4
      %s212 = scalar_lea.vmem %s3, %s211
      %p213 = scmp.lt.s32.totalorder %s15, 1
      %s214 = scalar_select %p213, %s15, 1
      %s215 = smul.addr %s214, 4
      %s216 = smul.addr %s215, 4
      %s217 = scalar_lea.vmem %s4, %s216
      %v219 = vld [vmem:[%s1] sm:$0xff]
      %v220 = vld [vmem:[%s1 + $0x8] sm:$0xf]
      %v221 = vld [vmem:[%s1 + $0xc] sm:$0xff]
      %v222 = vld [vmem:[%s1 + $0x14] sm:$0xf]
      %v223 = vld [vmem:[%s1 + $0x18] sm:$0xff]
      %v224 = vld [vmem:[%s1 + $0x20] sm:$0xf]
      %v225 = vld [vmem:[%s1 + $0x24] sm:$0xff]
      %v226 = vld [vmem:[%s1 + $0x2c] sm:$0xf]
      %v227 = vld [vmem:[%s207] sm:$0xf]
      %v228 = vld [vmem:[%s207 + $0x4] sm:$0xf]
      %v229 = vld [vmem:[%s207 + $0x8] sm:$0xf]
      %v230 = vld [vmem:[%s207 + $0xc] sm:$0xf]
      %v231 = vld [vmem:[%s207 + $0x10] sm:$0xf]
      %v232 = vld [vmem:[%s207 + $0x14] sm:$0xf]
      %v233 = vld [vmem:[%s207 + $0x18] sm:$0xf]
      %v234 = vld [vmem:[%s207 + $0x1c] sm:$0xf]
      %v235 = vld [vmem:[%s207 + $0x20] sm:$0xf]
      %v236 = vld [vmem:[%s207 + $0x24] sm:$0xf]
      %v237 = vld [vmem:[%s207 + $0x28] sm:$0xf]
      %v238 = vld [vmem:[%s207 + $0x2c] sm:$0xf]
      %v239 = vld [vmem:[%s207 + $0x30] sm:$0xf]
      %v240 = vld [vmem:[%s207 + $0x34] sm:$0xf]
      %v241 = vld [vmem:[%s207 + $0x38] sm:$0xf]
      %v242 = vld [vmem:[%s207 + $0x3c] sm:$0xf]
      %v243 = vld [vmem:[%s207 + $0x40] sm:$0xf]
      %v244 = vld [vmem:[%s207 + $0x44] sm:$0xf]
      %v245 = vld [vmem:[%s207 + $0x48] sm:$0xf]
      %v246 = vld [vmem:[%s207 + $0x4c] sm:$0xf]
      %v247 = vld [vmem:[%s207 + $0x50] sm:$0xf]
      %v248 = vld [vmem:[%s207 + $0x54] sm:$0xf]
      %v249 = vld [vmem:[%s207 + $0x58] sm:$0xf]
      %v250 = vld [vmem:[%s207 + $0x5c] sm:$0xf]
      %v251 = vld [vmem:[%s207 + $0x60] sm:$0xf]
      %v252 = vld [vmem:[%s207 + $0x64] sm:$0xf]
      %v253 = vld [vmem:[%s207 + $0x68] sm:$0xf]
      %v254 = vld [vmem:[%s207 + $0x6c] sm:$0xf]
      %v255 = vld [vmem:[%s207 + $0x70] sm:$0xf]
      %v256 = vld [vmem:[%s207 + $0x74] sm:$0xf]
      %v257 = vld [vmem:[%s207 + $0x78] sm:$0xf]
      %v258 = vld [vmem:[%s207 + $0x7c] sm:$0xf]
      %v259 = vld [vmem:[%s207 + $0x80] sm:$0xf]
      %v260 = vld [vmem:[%s207 + $0x84] sm:$0xf]
      %v261 = vld [vmem:[%s207 + $0x88] sm:$0xf]
      %v262 = vld [vmem:[%s207 + $0x8c] sm:$0xf]
      %v263 = vld [vmem:[%s2] sm:$0xff]
      %v264 = vld [vmem:[%s2 + $0x8] sm:$0xff]
      %v265 = vld [vmem:[%s2 + $0x10] sm:$0xff]
      %v266 = vld [vmem:[%s2 + $0x18] sm:$0xff]
      %268 = vset.pattern.permute.xlu0 0
      %269 = vperm.xlu0 %268, %v263
      %v270 = vpop.permute.xlu0 %269
      %273 = vset.pattern.permute.xlu0 0
      %274 = vperm.xlu0 %273, %v264
      %v275 = vpop.permute.xlu0 %274
      %278 = vset.pattern.permute.xlu0 0
      %279 = vperm.xlu0 %278, %v265
      %v280 = vpop.permute.xlu0 %279
      %283 = vset.pattern.permute.xlu0 0
      %284 = vperm.xlu0 %283, %v266
      %v285 = vpop.permute.xlu0 %284
      %v295 = vunpack.c.l.b16 %v219
      %v296 = vunpack.c.h.b16 %v219
      %v297 = vunpack.c.l.b16 %v220
      %v298 = vunpack.c.l.b16 %v221
      %v299 = vunpack.c.h.b16 %v221
      %v300 = vunpack.c.l.b16 %v222
      %v301 = vunpack.c.l.b16 %v223
      %v302 = vunpack.c.h.b16 %v223
      %v303 = vunpack.c.l.b16 %v224
      %v304 = vunpack.c.l.b16 %v225
      %v305 = vunpack.c.h.b16 %v225
      %v306 = vunpack.c.l.b16 %v226
      %v307 = vpack.c.b16 %v298, %v295
      %v308 = vpack.c.b16 %v299, %v296
      %v309 = vpack.c.b16 %v300, %v297
      %v310 = vpack.c.b16 %v304, %v301
      %v311 = vpack.c.b16 %v305, %v302
      %v312 = vpack.c.b16 %v306, %v303
      %v353 = vunpack.c.l.b16 %v227
      %v354 = vunpack.c.l.b16 %v228
      %v355 = vunpack.c.l.b16 %v229
      %v356 = vunpack.c.l.b16 %v230
      %v357 = vunpack.c.l.b16 %v231
      %v358 = vunpack.c.l.b16 %v232
      %v359 = vunpack.c.l.b16 %v233
      %v360 = vunpack.c.l.b16 %v234
      %v361 = vunpack.c.l.b16 %v235
      %v362 = vunpack.c.l.b16 %v236
      %v363 = vunpack.c.l.b16 %v237
      %v364 = vunpack.c.l.b16 %v238
      %v365 = vunpack.c.l.b16 %v239
      %v366 = vunpack.c.l.b16 %v240
      %v367 = vunpack.c.l.b16 %v241
      %v368 = vunpack.c.l.b16 %v242
      %v369 = vunpack.c.l.b16 %v243
      %v370 = vunpack.c.l.b16 %v244
      %v371 = vunpack.c.l.b16 %v245
      %v372 = vunpack.c.l.b16 %v246
      %v373 = vunpack.c.l.b16 %v247
      %v374 = vunpack.c.l.b16 %v248
      %v375 = vunpack.c.l.b16 %v249
      %v376 = vunpack.c.l.b16 %v250
      %v377 = vunpack.c.l.b16 %v251
      %v378 = vunpack.c.l.b16 %v252
      %v379 = vunpack.c.l.b16 %v253
      %v380 = vunpack.c.l.b16 %v254
      %v381 = vunpack.c.l.b16 %v255
      %v382 = vunpack.c.l.b16 %v256
      %v383 = vunpack.c.l.b16 %v257
      %v384 = vunpack.c.l.b16 %v258
      %v385 = vunpack.c.l.b16 %v259
      %v386 = vunpack.c.l.b16 %v260
      %v387 = vunpack.c.l.b16 %v261
      %v388 = vunpack.c.l.b16 %v262
      %v389 = vpack.c.b16 %v354, %v353
      %v390 = vpack.c.b16 %v356, %v355
      %v391 = vpack.c.b16 %v358, %v357
      %v392 = vpack.c.b16 %v360, %v359
      %v393 = vpack.c.b16 %v362, %v361
      %v394 = vpack.c.b16 %v364, %v363
      %v395 = vpack.c.b16 %v366, %v365
      %v396 = vpack.c.b16 %v368, %v367
      %v397 = vpack.c.b16 %v370, %v369
      %v398 = vpack.c.b16 %v372, %v371
      %v399 = vpack.c.b16 %v374, %v373
      %v400 = vpack.c.b16 %v376, %v375
      %v401 = vpack.c.b16 %v378, %v377
      %v402 = vpack.c.b16 %v380, %v379
      %v403 = vpack.c.b16 %v382, %v381
      %v404 = vpack.c.b16 %v384, %v383
      %v405 = vpack.c.b16 %v386, %v385
      %v406 = vpack.c.b16 %v388, %v387
      %vm425 = vcmask 261120
      %v427 = vsel %vm425, %v309, 0
      %v430 = vsel %vm425, %v312, 0
      %432 = vmatprep.subr.bf16.mxu0 0
      %433 = vmatpush1.bf16.msra.mxu0 %v389
      %434 = vmatprep.subr.bf16.mxu0 0
      %435 = vmatpush1.bf16.msra.mxu0 %v390
      %436 = vmatprep.subr.bf16.mxu0 0
      %437 = vmatpush1.bf16.msra.mxu0 %v391
      %438 = vmatprep.subr.bf16.mxu0 0
      %439 = vmatpush1.bf16.msra.mxu0 %v392
      %440 = vmatprep.subr.bf16.mxu0 0
      %441 = vmatpush1.bf16.msra.mxu0 %v393
      %442 = vmatprep.subr.bf16.mxu0 0
      %443 = vmatpush1.bf16.msra.mxu0 %v394
      %444 = vmatprep.subr.bf16.mxu0 0
      %445 = vmatpush1.bf16.msra.mxu0 %v395
      %446 = vmatprep.subr.bf16.mxu0 0
      %447 = vmatpush1.bf16.msra.mxu0 %v396
      %448 = vmatprep.subr.bf16.mxu0 0
      %449 = vmatpush1.bf16.msra.mxu0 %v397
      %450 = vmatprep.subr.bf16.mxu0 0
      %451 = vmatpush1.bf16.msra.mxu0 %v398
      %452 = vmatprep.subr.bf16.mxu0 0
      %453 = vmatpush1.bf16.msra.mxu0 %v399
      %454 = vmatprep.subr.bf16.mxu0 0
      %455 = vmatpush1.bf16.msra.mxu0 %v400
      %456 = vmatprep.subr.bf16.mxu0 0
      %457 = vmatpush1.bf16.msra.mxu0 %v401
      %458 = vmatprep.subr.bf16.mxu0 0
      %459 = vmatpush1.bf16.msra.mxu0 %v402
      %460 = vmatprep.subr.bf16.mxu0 0
      %461 = vmatpush1.bf16.msra.mxu0 %v403
      %462 = vmatprep.subr.bf16.mxu0 0
      %463 = vmatpush1.bf16.msra.mxu0 %v404
      %464 = vmatprep.mubr.bf16.mxu0 %v308
      %465 = vmatmul.mubr.bf16.gmra.mrb[0].mxu0 %v307
      %v466 = vpop.f32.mrb[0].mxu0
      %v467 = vadd.f32 %v270, %v466
      %v468 = vpop.f32.mrb[0].mxu0
      %v469 = vpop.f32.mrb[0].mxu0
      %v470 = vadd.f32 %v275, %v469
      %v471 = vpop.f32.mrb[0].mxu0
      %472 = vmatprep.mubr.bf16.mxu0 %v311
      %473 = vmatmul.mubr.bf16.gmra.mrb[0].mxu0 %v310
      %v474 = vpop.f32.mrb[0].mxu0
      %v475 = vadd.f32 %v280, %v474
      %v476 = vpop.f32.mrb[0].mxu0
      %v477 = vpop.f32.mrb[0].mxu0
      %v478 = vadd.f32 %v285, %v477
      %v479 = vpop.f32.mrb[0].mxu0
      %480 = vdwg.mxu0
      %481 = vmatprep.subr.bf16.mxu0 0
      %482 = vmatpush1.bf16.msra.mxu0 %v405
      %483 = vmatprep.subr.bf16.mxu0 0
      %484 = vmatpush1.bf16.msra.mxu0 %v406
      %485 = vmatprep.subr.bf16.mxu0 0
      %486 = vmatpush1.bf16.msra.mxu0 0
      %487 = vmatprep.subr.bf16.mxu0 0
      %488 = vmatpush1.bf16.msra.mxu0 0
      %489 = vmatprep.subr.bf16.mxu0 0
      %490 = vmatpush1.bf16.msra.mxu0 0
      %491 = vmatprep.subr.bf16.mxu0 0
      %492 = vmatpush1.bf16.msra.mxu0 0
      %493 = vmatprep.subr.bf16.mxu0 0
      %494 = vmatpush1.bf16.msra.mxu0 0
      %495 = vmatprep.subr.bf16.mxu0 0
      %496 = vmatpush1.bf16.msra.mxu0 0
      %497 = vmatprep.subr.bf16.mxu0 0
      %498 = vmatpush1.bf16.msra.mxu0 0
      %499 = vmatprep.subr.bf16.mxu0 0
      %500 = vmatpush1.bf16.msra.mxu0 0
      %501 = vmatprep.subr.bf16.mxu0 0
      %502 = vmatpush1.bf16.msra.mxu0 0
      %503 = vmatprep.subr.bf16.mxu0 0
      %504 = vmatpush1.bf16.msra.mxu0 0
      %505 = vmatprep.subr.bf16.mxu0 0
      %506 = vmatpush1.bf16.msra.mxu0 0
      %507 = vmatprep.subr.bf16.mxu0 0
      %508 = vmatpush1.bf16.msra.mxu0 0
      %509 = vmatprep.subr.bf16.mxu0 0
      %510 = vmatpush1.bf16.msra.mxu0 0
      %511 = vmatprep.subr.bf16.mxu0 0
      %512 = vmatpush1.bf16.msra.mxu0 0
      %513 = vmatprep.mubr.bf16.mxu0 0
      %514 = vmatmul.mubr.bf16.gmra.mrb[0].mxu0 %v427
      %v515 = vpop.f32.mrb[0].mxu0
      %v516 = vadd.f32 %v467, %v515
      %v517 = vpop.f32.mrb[0].mxu0
      %v518 = vpop.f32.mrb[0].mxu0
      %v519 = vadd.f32 %v470, %v518
      %v520 = vpop.f32.mrb[0].mxu0
      %521 = vmatprep.mubr.bf16.mxu0 0
      %522 = vmatmul.mubr.bf16.gmra.mrb[0].mxu0 %v430
      %v523 = vpop.f32.mrb[0].mxu0
      %v524 = vadd.f32 %v475, %v523
      %v525 = vpop.f32.mrb[0].mxu0
      %v526 = vpop.f32.mrb[0].mxu0
      %v527 = vadd.f32 %v478, %v526
      %v528 = vpop.f32.mrb[0].mxu0
      %529 = vdwg.mxu0
      %vm530 = vcmask 130048
      %v531 = vsel %vm530, %v516, 0.0
      %532 = vadd.xlane.f32.xlu0 %v531
      %v533 = vpop.xlane.xlu0 %532
      %v534 = vsel %vm530, %v519, 0.0
      %535 = vadd.xlane.f32.xlu0 %v534
      %v536 = vpop.xlane.xlu0 %535
      %v537 = vsel %vm530, %v524, 0.0
      %538 = vadd.xlane.f32.xlu0 %v537
      %v539 = vpop.xlane.xlu0 %538
      %v540 = vsel %vm530, %v527, 0.0
      %541 = vadd.xlane.f32.xlu0 %v540
      %v542 = vpop.xlane.xlu0 %541
      %v543 = vrcp.pop 16.0
      %v544 = vmul.f32 %v533, %v543
      %v545 = vmul.f32 %v536, %v543
      %v546 = vmul.f32 %v539, %v543
      %v547 = vmul.f32 %v542, %v543
      %v548 = vsub.f32 %v516, %v544
      %v549 = vsub.f32 %v519, %v545
      %v550 = vsub.f32 %v524, %v546
      %v551 = vsub.f32 %v527, %v547
      %v552 = vmul.f32 %v548, %v548
      %v553 = vmul.f32 %v549, %v549
      %v554 = vmul.f32 %v550, %v550
      %v555 = vmul.f32 %v551, %v551
      %v556 = vsel %vm530, %v552, 0.0
      %557 = vadd.xlane.f32.xlu0 %v556
      %v558 = vpop.xlane.xlu0 %557
      %v559 = vsel %vm530, %v553, 0.0
      %560 = vadd.xlane.f32.xlu0 %v559
      %v561 = vpop.xlane.xlu0 %560
      %v562 = vsel %vm530, %v554, 0.0
      %563 = vadd.xlane.f32.xlu0 %v562
      %v564 = vpop.xlane.xlu0 %563
      %v565 = vsel %vm530, %v555, 0.0
      %566 = vadd.xlane.f32.xlu0 %v565
      %v567 = vpop.xlane.xlu0 %566
      %v568 = vmul.f32 %v558, %v543
      %v569 = vmul.f32 %v561, %v543
      %v570 = vmul.f32 %v564, %v543
      %v571 = vmul.f32 %v567, %v543
      %v572 = vadd.f32 %v568, 1e-05
      %v573 = vadd.f32 %v569, 1e-05
      %v574 = vadd.f32 %v570, 1e-05
      %v575 = vadd.f32 %v571, 1e-05
      %v576 = vrsqrt.pop %v572
      %v577 = vrsqrt.pop %v573
      %v578 = vrsqrt.pop %v574
      %v579 = vrsqrt.pop %v575
      %v580 = vmul.f32 %v548, %v576
      %v581 = vmul.f32 %v549, %v577
      %v582 = vmul.f32 %v550, %v578
      %v583 = vmul.f32 %v551, %v579
      %v584 = vld [vmem:[%s212] sm:$0xf]
      %v585 = vld [vmem:[%s212 + $0x4] sm:$0xf]
      %v586 = vld [vmem:[%s212 + $0x8] sm:$0xf]
      %v587 = vld [vmem:[%s212 + $0xc] sm:$0xf]
      %v588 = vunpack.c.l.bf16 %v584
      %v589 = vunpack.c.l.bf16 %v585
      %v590 = vunpack.c.l.bf16 %v586
      %v591 = vunpack.c.l.bf16 %v587
      %v592 = vadd.f32 %v580, %v588
      %v593 = vadd.f32 %v581, %v589
      %v594 = vadd.f32 %v582, %v590
      %v595 = vadd.f32 %v583, %v591
      %v596 = vpack.c.bf16 %v593, %v592
      %v597 = vpack.c.bf16 %v595, %v594
      %v600 = vunpack.c.l.b16 %v596
      %v601 = vunpack.c.h.b16 %v596
      %v602 = vunpack.c.l.b16 %v597
      %v603 = vunpack.c.h.b16 %v597
      %v604 = vpack.c.b16 %v600, %v600
      %v605 = vpack.c.b16 %v601, %v601
      %v606 = vpack.c.b16 %v602, %v602
      %v607 = vpack.c.b16 %v603, %v603
      %vm612 = vcmask 125952
      %613 = vst.msk [vmem:[%s217] sm:$0xf] %vm612, %v604
      %614 = vst.msk [vmem:[%s217 + $0x4] sm:$0xf] %vm612, %v605
      %615 = vst.msk [vmem:[%s217 + $0x8] sm:$0xf] %vm612, %v606
      %616 = vst.msk [vmem:[%s217 + $0xc] sm:$0xf] %vm612, %v607
      %p617 = scmp.lt.s32.totalorder %s15, 1
      %s618 = scalar_select %p617, %s15, 1
      %s619 = smul.addr %s618, 4
      %s620 = smul.addr %s619, 4
      %s621 = scalar_lea.vmem %s4, %s620
      // Predicated region
      $region37: #{cyclegan_forward.54} parent=35 // pred_check
        %p622 = pneg %p127
      $region38: #{cyclegan_forward.54} parent=35 // pred_check_branch
        %624 = sbr.rel (%p622) target = $region40
      $region39: #{cyclegan_forward.54} parent=35 // pred_region
        _
      $region40: #{cyclegan_forward.54} parent=35 // pred_fallthru
        _
    $region36: #{cyclegan_forward.54} parent=5 // pred_fallthru
      _
    %p625 = scmp.le.s32.totalorder 2, %s10
    // Predicated region
    $region41: #{cyclegan_forward.54} parent=5 // pred_check
      %p626 = pneg %p625
    $region42: #{cyclegan_forward.54} parent=5 // pred_check_branch
      %628 = sbr.rel (%p626) target = $region44
    $region43: #{cyclegan_forward.54} parent=5 // pred_region
      %s629 = ssub.s32 %s10, 2
      // Predicated region
      $region45: #{cyclegan_forward.54} parent=43 // pred_check
        %p630 = pneg %p133
      $region46: #{cyclegan_forward.54} parent=43 // pred_check_branch
        %632 = sbr.rel (%p630) target = $region48
      $region47: #{cyclegan_forward.54} parent=43 // pred_region
        %p633 = scmp.lt.s32.totalorder %s16, 1
        %s634 = scalar_select %p633, %s16, 1
        %s635 = smul.addr %s634, 4
        %s636 = smul.addr %s635, 4
        %s637 = scalar_lea.vmem %s4, %s636
      $region48: #{cyclegan_forward.54} parent=43 // pred_fallthru
        _
    $region44: #{cyclegan_forward.54} parent=5 // pred_fallthru
      _
  $region6: #{cyclegan_forward.54} parent=0 // loop_footer
    %s14 = sadd.s32 1, %s10
  $region7: #{cyclegan_forward.54} parent=0 // loop_footer_branch
    %9 = sbr.rel target = $region3
  $region8: #{cyclegan_forward.54} parent=0 // loop_exit
    _

// kernel: cyclegan_forward.57
$region0: #{cyclegan_forward.57}
  #allocation0 [shape = 'u32[]', space=smem, size = 0x4, offset = 0x4, fixed_abs, tag = 'smem constant byte address 0x4 - core index']
  #allocation1 [shape = 'u32[144,128]{1,0:T(1,128)}', space=vmem, size = 0x12000, scoped, tag = 'internal scratch']
  %s0 = inlined_call_operand.vmem [shape: bf16[2,288,64], index: 0, kind: input, shape index: {}]
  %s1 = inlined_call_operand.vmem [shape: bf16[16,288], index: 1, kind: input, shape index: {}]
  %s2 = inlined_call_operand.vmem [shape: f32[16,1], index: 2, kind: input, shape index: {}]
  %s3 = inlined_call_operand.vmem [shape: bf16[2,16,64], index: 3, kind: output, shape index: {}]
  %s4 = sld [smem:[#allocation0]]
  $region45: #{cyclegan_forward.57} parent=0
    _
  %s6 = ssub.s32 1, %s4
  %s7 = scalar_select 0, %s6, %s4
  loop: start=0, step=1, limit=4
  $region2: #{cyclegan_forward.57} parent=0 // loop_pre_header
    _
  $region3: #{cyclegan_forward.57} parent=0 // loop_header
    %s9 = sphi 0, %s13
    %p10 = scmp.ge.s32.totalorder %s9, 4
    %s19 = sphi 0, %s21
    %s22 = sphi 0, %s19
    %s23 = sphi 0, %s22
    %s39 = sphi 0, %s23
    %s43 = sphi 0, %s43
    %s45 = sphi 0, %s43
    %s46 = sphi 0, %s45
    %s60 = sphi 0, %s46
    %s64 = sphi 0, %s64
    %s66 = sphi 0, %s64
    %s67 = sphi 0, %s66
    %s81 = sphi 0, %s67
    %s87 = sphi 0, %s89
    %s90 = sphi 0, %s87
    %s91 = sphi 0, %s90
    %s107 = sphi 0, %s91
  $region4: #{cyclegan_forward.57} parent=0 // loop_header_branch
    %12 = sbr.rel (%p10) target = $region8
  $region5: #{cyclegan_forward.57} parent=0 // loop_body
    %s14 = ssub.s32 %s9, 1
    %s15 = ssub.s32 %s9, 2
    %s16 = sadd.s32 %s9, 1
    %s17 = ssub.s32 %s9, %s16
    %p18 = scmp.eq.s32.totalorder %s17, 0
    %s20 = sadd.s32 %s19, 1
    %s21 = scalar_select %p18, %s19, %s20
    %p24 = pneg %p18
    %p25 = scmp.eq.s32.totalorder %s9, 1
    %p26 = por %p24, %p25
    %p27 = scmp.ne.s32.totalorder %s19, %s22
    %p28 = scmp.eq.s32.totalorder %s9, 0
    %p29 = por %p27, %p28
    %p30 = scmp.ne.s32.totalorder %s19, %s22
    %p31 = scmp.eq.s32.totalorder %s14, 1
    %p32 = por %p30, %p31
    %p33 = scmp.ne.s32.totalorder %s22, %s23
    %p34 = scmp.eq.s32.totalorder %s14, 0
    %p35 = por %p33, %p34
    %p36 = scmp.ne.s32.totalorder %s22, %s23
    %p37 = scmp.eq.s32.totalorder %s15, 1
    %p38 = por %p36, %p37
    %p40 = scmp.ne.s32.totalorder %s23, %s39
    %p41 = scmp.eq.s32.totalorder %s15, 0
    %p42 = por %p40, %p41
    %s44 = sadd.s32 %s43, 1
    %p47 = scmp.eq.s32.totalorder %s9, 1
    %p48 = scmp.ne.s32.totalorder %s43, %s45
    %p49 = scmp.eq.s32.totalorder %s9, 0
    %p50 = por %p48, %p49
    %p51 = scmp.ne.s32.totalorder %s43, %s45
    %p52 = scmp.eq.s32.totalorder %s14, 1
    %p53 = por %p51, %p52
    %p54 = scmp.ne.s32.totalorder %s45, %s46
    %p55 = scmp.eq.s32.totalorder %s14, 0
    %p56 = por %p54, %p55
    %p57 = scmp.ne.s32.totalorder %s45, %s46
    %p58 = scmp.eq.s32.totalorder %s15, 1
    %p59 = por %p57, %p58
    %p61 = scmp.ne.s32.totalorder %s46, %s60
    %p62 = scmp.eq.s32.totalorder %s15, 0
    %p63 = por %p61, %p62
    %s65 = sadd.s32 %s64, 1
    %p68 = scmp.eq.s32.totalorder %s9, 1
    %p69 = scmp.ne.s32.totalorder %s64, %s66
    %p70 = scmp.eq.s32.totalorder %s9, 0
    %p71 = por %p69, %p70
    %p72 = scmp.ne.s32.totalorder %s64, %s66
    %p73 = scmp.eq.s32.totalorder %s14, 1
    %p74 = por %p72, %p73
    %p75 = scmp.ne.s32.totalorder %s66, %s67
    %p76 = scmp.eq.s32.totalorder %s14, 0
    %p77 = por %p75, %p76
    %p78 = scmp.ne.s32.totalorder %s66, %s67
    %p79 = scmp.eq.s32.totalorder %s15, 1
    %p80 = por %p78, %p79
    %p82 = scmp.ne.s32.totalorder %s67, %s81
    %p83 = scmp.eq.s32.totalorder %s15, 0
    %p84 = por %p82, %p83
    %s85 = ssub.s32 %s9, %s16
    %p86 = scmp.eq.s32.totalorder %s85, 0
    %s88 = sadd.s32 %s87, 1
    %s89 = scalar_select %p86, %s87, %s88
    %p92 = pneg %p86
    %p93 = scmp.eq.s32.totalorder %s9, 1
    %p94 = por %p92, %p93
    %p95 = scmp.ne.s32.totalorder %s87, %s90
    %p96 = scmp.eq.s32.totalorder %s9, 0
    %p97 = por %p95, %p96
    %p98 = scmp.ne.s32.totalorder %s87, %s90
    %p99 = scmp.eq.s32.totalorder %s14, 1
    %p100 = por %p98, %p99
    %p101 = scmp.ne.s32.totalorder %s90, %s91
    %p102 = scmp.eq.s32.totalorder %s14, 0
    %p103 = por %p101, %p102
    %p104 = scmp.ne.s32.totalorder %s90, %s91
    %p105 = scmp.eq.s32.totalorder %s15, 1
    %p106 = por %p104, %p105
    %p108 = scmp.ne.s32.totalorder %s91, %s107
    %p109 = scmp.eq.s32.totalorder %s15, 0
    %p110 = por %p108, %p109
    %p111 = scmp.le.s32.totalorder 1, %s9
    %p112 = scmp.lt.s32.totalorder %s9, 3
    %p113 = pnand %p111, %p112
    %p114 = pneg %p113
    // Predicated region
    $region9: #{cyclegan_forward.57} parent=5 // pred_check
      _
    $region10: #{cyclegan_forward.57} parent=5 // pred_check_branch
      %116 = sbr.rel (%p113) target = $region12
    $region11: #{cyclegan_forward.57} parent=5 // pred_region
      %s117 = ssub.s32 %s9, 1
      // Predicated region
      $region13: #{cyclegan_forward.57} parent=11 // pred_check
        %p118 = pneg %p56
      $region14: #{cyclegan_forward.57} parent=11 // pred_check_branch
        %120 = sbr.rel (%p118) target = $region16
      $region15: #{cyclegan_forward.57} parent=11 // pred_region
        _
      $region16: #{cyclegan_forward.57} parent=11 // pred_fallthru
        _
      // Predicated region
      $region17: #{cyclegan_forward.57} parent=11 // pred_check
        %p121 = pneg %p77
      $region18: #{cyclegan_forward.57} parent=11 // pred_check_branch
        %123 = sbr.rel (%p121) target = $region20
      $region19: #{cyclegan_forward.57} parent=11 // pred_region
        _
      $region20: #{cyclegan_forward.57} parent=11 // pred_fallthru
        _
    $region12: #{cyclegan_forward.57} parent=5 // pred_fallthru
      _
    %p124 = scmp.lt.s32.totalorder %s9, 2
    // Predicated region
    $region21: #{cyclegan_forward.57} parent=5 // pred_check
      %p125 = pneg %p124
    $region22: #{cyclegan_forward.57} parent=5 // pred_check_branch
      %127 = sbr.rel (%p125) target = $region24
    $region23: #{cyclegan_forward.57} parent=5 // pred_region
      // Predicated region
      $region25: #{cyclegan_forward.57} parent=23 // pred_check
        %p128 = pneg %p29
      $region26: #{cyclegan_forward.57} parent=23 // pred_check_branch
        %130 = sbr.rel (%p128) target = $region28
      $region27: #{cyclegan_forward.57} parent=23 // pred_region
        %p131 = scmp.lt.s32.totalorder %s9, 1
        %s132 = scalar_select %p131, %s9, 1
        %s133 = smul.addr %s132, 36
        %s134 = smul.addr %s133, 4
        %s135 = scalar_lea.vmem %s0, %s134
      $region28: #{cyclegan_forward.57} parent=23 // pred_fallthru
        _
    $region24: #{cyclegan_forward.57} parent=5 // pred_fallthru
      _
    %p136 = scmp.le.s32.totalorder 1, %s9
    %p137 = scmp.lt.s32.totalorder %s9, 3
    %p138 = pnand %p136, %p137
    %p139 = pneg %p138
    // Predicated region
    $region29: #{cyclegan_forward.57} parent=5 // pred_check
      _
    $region30: #{cyclegan_forward.57} parent=5 // pred_check_branch
      %141 = sbr.rel (%p138) target = $region32
    $region31: #{cyclegan_forward.57} parent=5 // pred_region
      %s142 = ssub.s32 %s9, 1
      %p143 = scmp.lt.s32.totalorder %s14, 1
      %s144 = scalar_select %p143, %s14, 1
      %s145 = smul.addr %s144, 36
      %s146 = smul.addr %s145, 4
      %s147 = scalar_lea.vmem %s0, %s146
      %p148 = pneg %p35
      %p149 = pneg %p32
      %p150 = pneg %p56
      %p151 = pneg %p53
      %p152 = pneg %p77
      %p153 = pneg %p74
      %p154 = pneg %p103
      %p155 = pneg %p100
      %p156 = scmp.lt.s32.totalorder %s14, 1
      %s157 = scalar_select %p156, %s14, 1
      %s158 = smul.addr %s157, 2
      %s159 = smul.addr %s158, 4
      %s160 = scalar_lea.vmem %s3, %s159
      %p161 = scmp.lt.s32.totalorder %s14, 1
      %s162 = scalar_select %p161, %s14, 1
      %s163 = smul.addr %s162, 36
      %s164 = smul.addr %s163, 4
      %s165 = scalar_lea.vmem %s0, %s164
      %p166 = scmp.lt.s32.totalorder %s14, 1
      %s167 = scalar_select %p166, %s14, 1
      %s168 = smul.addr %s167, 2
      %s169 = smul.addr %s168, 4
      %s170 = scalar_lea.vmem %s3, %s169
      %v172 = vld [vmem:[%s1] sm:$0xff]
      %v173 = vld [vmem:[%s1 + $0x8] sm:$0xf]
      %v174 = vld [vmem:[%s1 + $0xc] sm:$0xff]
      %v175 = vld [vmem:[%s1 + $0x14] sm:$0xf]
      %v176 = vld [vmem:[%s165] sm:$0xf]
      %v177 = vld [vmem:[%s165 + $0x4] sm:$0xf]
      %v178 = vld [vmem:[%s165 + $0x8] sm:$0xf]
      %v179 = vld [vmem:[%s165 + $0xc] sm:$0xf]
      %v180 = vld [vmem:[%s165 + $0x10] sm:$0xf]
      %v181 = vld [vmem:[%s165 + $0x14] sm:$0xf]
      %v182 = vld [vmem:[%s165 + $0x18] sm:$0xf]
      %v183 = vld [vmem:[%s165 + $0x1c] sm:$0xf]
      %v184 = vld [vmem:[%s165 + $0x20] sm:$0xf]
      %v185 = vld [vmem:[%s165 + $0x24] sm:$0xf]
      %v186 = vld [vmem:[%s165 + $0x28] sm:$0xf]
      %v187 = vld [vmem:[%s165 + $0x2c] sm:$0xf]
      %v188 = vld [vmem:[%s165 + $0x30] sm:$0xf]
      %v189 = vld [vmem:[%s165 + $0x34] sm:$0xf]
      %v190 = vld [vmem:[%s165 + $0x38] sm:$0xf]
      %v191 = vld [vmem:[%s165 + $0x3c] sm:$0xf]
      %v192 = vld [vmem:[%s165 + $0x40] sm:$0xf]
      %v193 = vld [vmem:[%s165 + $0x44] sm:$0xf]
      %v194 = vld [vmem:[%s165 + $0x48] sm:$0xf]
      %v195 = vld [vmem:[%s165 + $0x4c] sm:$0xf]
      %v196 = vld [vmem:[%s165 + $0x50] sm:$0xf]
      %v197 = vld [vmem:[%s165 + $0x54] sm:$0xf]
      %v198 = vld [vmem:[%s165 + $0x58] sm:$0xf]
      %v199 = vld [vmem:[%s165 + $0x5c] sm:$0xf]
      %v200 = vld [vmem:[%s165 + $0x60] sm:$0xf]
      %v201 = vld [vmem:[%s165 + $0x64] sm:$0xf]
      %v202 = vld [vmem:[%s165 + $0x68] sm:$0xf]
      %v203 = vld [vmem:[%s165 + $0x6c] sm:$0xf]
      %v204 = vld [vmem:[%s165 + $0x70] sm:$0xf]
      %v205 = vld [vmem:[%s165 + $0x74] sm:$0xf]
      %v206 = vld [vmem:[%s165 + $0x78] sm:$0xf]
      %v207 = vld [vmem:[%s165 + $0x7c] sm:$0xf]
      %v208 = vld [vmem:[%s165 + $0x80] sm:$0xf]
      %v209 = vld [vmem:[%s165 + $0x84] sm:$0xf]
      %v210 = vld [vmem:[%s165 + $0x88] sm:$0xf]
      %v211 = vld [vmem:[%s165 + $0x8c] sm:$0xf]
      %v212 = vld [vmem:[%s2] sm:$0xff]
      %v213 = vld [vmem:[%s2 + $0x8] sm:$0xff]
      %215 = vset.pattern.permute.xlu0 0
      %216 = vperm.xlu0 %215, %v212
      %v217 = vpop.permute.xlu0 %216
      %220 = vset.pattern.permute.xlu0 0
      %221 = vperm.xlu0 %220, %v213
      %v222 = vpop.permute.xlu0 %221
      %v228 = vunpack.c.l.b16 %v172
      %v229 = vunpack.c.h.b16 %v172
      %v230 = vunpack.c.l.b16 %v173
      %v231 = vunpack.c.l.b16 %v174
      %v232 = vunpack.c.h.b16 %v174
      %v233 = vunpack.c.l.b16 %v175
      %v234 = vpack.c.b16 %v231, %v228
      %v235 = vpack.c.b16 %v232, %v229
      %v236 = vpack.c.b16 %v233, %v230
      %v275 = vunpack.c.l.b16 %v176
      %v276 = vunpack.c.l.b16 %v177
      %v277 = vunpack.c.l.b16 %v178
      %v278 = vunpack.c.l.b16 %v179
      %v279 = vunpack.c.l.b16 %v180
      %v280 = vunpack.c.l.b16 %v181
      %v281 = vunpack.c.l.b16 %v182
      %v282 = vunpack.c.l.b16 %v183
      %v283 = vunpack.c.l.b16 %v184
      %v284 = vunpack.c.l.b16 %v185
      %v285 = vunpack.c.l.b16 %v186
      %v286 = vunpack.c.l.b16 %v187
      %v287 = vunpack.c.l.b16 %v188
      %v288 = vunpack.c.l.b16 %v189
      %v289 = vunpack.c.l.b16 %v190
      %v290 = vunpack.c.l.b16 %v191
      %v291 = vunpack.c.l.b16 %v192
      %v292 = vunpack.c.l.b16 %v193
      %v293 = vunpack.c.l.b16 %v194
      %v294 = vunpack.c.l.b16 %v195
      %v295 = vunpack.c.l.b16 %v196
      %v296 = vunpack.c.l.b16 %v197
      %v297 = vunpack.c.l.b16 %v198
      %v298 = vunpack.c.l.b16 %v199
      %v299 = vunpack.c.l.b16 %v200
      %v300 = vunpack.c.l.b16 %v201
      %v301 = vunpack.c.l.b16 %v202
      %v302 = vunpack.c.l.b16 %v203
      %v303 = vunpack.c.l.b16 %v204
      %v304 = vunpack.c.l.b16 %v205
      %v305 = vunpack.c.l.b16 %v206
      %v306 = vunpack.c.l.b16 %v207
      %v307 = vunpack.c.l.b16 %v208
      %v308 = vunpack.c.l.b16 %v209
      %v309 = vunpack.c.l.b16 %v210
      %v310 = vunpack.c.l.b16 %v211
      %v311 = vpack.c.b16 %v276, %v275
      %v312 = vpack.c.b16 %v278, %v277
      %v313 = vpack.c.b16 %v280, %v279
      %v314 = vpack.c.b16 %v282, %v281
      %v315 = vpack.c.b16 %v284, %v283
      %v316 = vpack.c.b16 %v286, %v285
      %v317 = vpack.c.b16 %v288, %v287
      %v318 = vpack.c.b16 %v290, %v289
      %v319 = vpack.c.b16 %v292, %v291
      %v320 = vpack.c.b16 %v294, %v293
      %v321 = vpack.c.b16 %v296, %v295
      %v322 = vpack.c.b16 %v298, %v297
      %v323 = vpack.c.b16 %v300, %v299
      %v324 = vpack.c.b16 %v302, %v301
      %v325 = vpack.c.b16 %v304, %v303
      %v326 = vpack.c.b16 %v306, %v305
      %v327 = vpack.c.b16 %v308, %v307
      %v328 = vpack.c.b16 %v310, %v309
      %vm347 = vcmask 261120
      %v349 = vsel %vm347, %v236, 0
      %351 = vmatprep.subr.bf16.mxu0 0
      %352 = vmatpush1.bf16.msra.mxu0 %v311
      %353 = vmatprep.subr.bf16.mxu0 0
      %354 = vmatpush1.bf16.msra.mxu0 %v312
      %355 = vmatprep.subr.bf16.mxu0 0
      %356 = vmatpush1.bf16.msra.mxu0 %v313
      %357 = vmatprep.subr.bf16.mxu0 0
      %358 = vmatpush1.bf16.msra.mxu0 %v314
      %359 = vmatprep.subr.bf16.mxu0 0
      %360 = vmatpush1.bf16.msra.mxu0 %v315
      %361 = vmatprep.subr.bf16.mxu0 0
      %362 = vmatpush1.bf16.msra.mxu0 %v316
      %363 = vmatprep.subr.bf16.mxu0 0
      %364 = vmatpush1.bf16.msra.mxu0 %v317
      %365 = vmatprep.subr.bf16.mxu0 0
      %366 = vmatpush1.bf16.msra.mxu0 %v318
      %367 = vmatprep.subr.bf16.mxu0 0
      %368 = vmatpush1.bf16.msra.mxu0 %v319
      %369 = vmatprep.subr.bf16.mxu0 0
      %370 = vmatpush1.bf16.msra.mxu0 %v320
      %371 = vmatprep.subr.bf16.mxu0 0
      %372 = vmatpush1.bf16.msra.mxu0 %v321
      %373 = vmatprep.subr.bf16.mxu0 0
      %374 = vmatpush1.bf16.msra.mxu0 %v322
      %375 = vmatprep.subr.bf16.mxu0 0
      %376 = vmatpush1.bf16.msra.mxu0 %v323
      %377 = vmatprep.subr.bf16.mxu0 0
      %378 = vmatpush1.bf16.msra.mxu0 %v324
      %379 = vmatprep.subr.bf16.mxu0 0
      %380 = vmatpush1.bf16.msra.mxu0 %v325
      %381 = vmatprep.subr.bf16.mxu0 0
      %382 = vmatpush1.bf16.msra.mxu0 %v326
      %383 = vmatprep.mubr.bf16.mxu0 %v235
      %384 = vmatmul.mubr.bf16.gmra.mrb[0].mxu0 %v234
      %v385 = vpop.f32.mrb[0].mxu0
      %v386 = vadd.f32 %v217, %v385
      %v387 = vpop.f32.mrb[0].mxu0
      %v388 = vpop.f32.mrb[0].mxu0
      %v389 = vadd.f32 %v222, %v388
      %v390 = vpop.f32.mrb[0].mxu0
      %391 = vdwg.mxu0
      %392 = vmatprep.subr.bf16.mxu0 0
      %393 = vmatpush1.bf16.msra.mxu0 %v327
      %394 = vmatprep.subr.bf16.mxu0 0
      %395 = vmatpush1.bf16.msra.mxu0 %v328
      %396 = vmatprep.subr.bf16.mxu0 0
      %397 = vmatpush1.bf16.msra.mxu0 0
      %398 = vmatprep.subr.bf16.mxu0 0
      %399 = vmatpush1.bf16.msra.mxu0 0
      %400 = vmatprep.subr.bf16.mxu0 0
      %401 = vmatpush1.bf16.msra.mxu0 0
      %402 = vmatprep.subr.bf16.mxu0 0
      %403 = vmatpush1.bf16.msra.mxu0 0
      %404 = vmatprep.subr.bf16.mxu0 0
      %405 = vmatpush1.bf16.msra.mxu0 0
      %406 = vmatprep.subr.bf16.mxu0 0
      %407 = vmatpush1.bf16.msra.mxu0 0
      %408 = vmatprep.subr.bf16.mxu0 0
      %409 = vmatpush1.bf16.msra.mxu0 0
      %410 = vmatprep.subr.bf16.mxu0 0
      %411 = vmatpush1.bf16.msra.mxu0 0
      %412 = vmatprep.subr.bf16.mxu0 0
      %413 = vmatpush1.bf16.msra.mxu0 0
      %414 = vmatprep.subr.bf16.mxu0 0
      %415 = vmatpush1.bf16.msra.mxu0 0
      %416 = vmatprep.subr.bf16.mxu0 0
      %417 = vmatpush1.bf16.msra.mxu0 0
      %418 = vmatprep.subr.bf16.mxu0 0
      %419 = vmatpush1.bf16.msra.mxu0 0
      %420 = vmatprep.subr.bf16.mxu0 0
      %421 = vmatpush1.bf16.msra.mxu0 0
      %422 = vmatprep.subr.bf16.mxu0 0
      %423 = vmatpush1.bf16.msra.mxu0 0
      %424 = vmatprep.mubr.bf16.mxu0 0
      %425 = vmatmul.mubr.bf16.gmra.mrb[0].mxu0 %v349
      %v426 = vpop.f32.mrb[0].mxu0
      %v427 = vadd.f32 %v386, %v426
      %v428 = vpop.f32.mrb[0].mxu0
      %v429 = vpop.f32.mrb[0].mxu0
      %v430 = vadd.f32 %v389, %v429
      %v431 = vpop.f32.mrb[0].mxu0
      %432 = vdwg.mxu0
      %vm433 = vcmask 523264
      %v434 = vsel %vm433, %v427, 0.0
      %435 = vadd.xlane.f32.xlu0 %v434
      %v436 = vpop.xlane.xlu0 %435
      %v437 = vsel %vm433, %v430, 0.0
      %438 = vadd.xlane.f32.xlu0 %v437
      %v439 = vpop.xlane.xlu0 %438
      %v440 = vrcp.pop 64.0
      %v441 = vmul.f32 %v436, %v440
      %v442 = vmul.f32 %v439, %v440
      %v443 = vsub.f32 %v427, %v441
      %v444 = vsub.f32 %v430, %v442
      %v445 = vmul.f32 %v443, %v443
      %v446 = vmul.f32 %v444, %v444
      %v447 = vsel %vm433, %v445, 0.0
      %448 = vadd.xlane.f32.xlu0 %v447
      %v449 = vpop.xlane.xlu0 %448
      %v450 = vsel %vm433, %v446, 0.0
      %451 = vadd.xlane.f32.xlu0 %v450
      %v452 = vpop.xlane.xlu0 %451
      %v453 = vmul.f32 %v449, %v440
      %v454 = vmul.f32 %v452, %v440
      %v455 = vadd.f32 %v453, 1e-05
      %v456 = vadd.f32 %v454, 1e-05
      %v457 = vrsqrt.pop %v455
      %v458 = vrsqrt.pop %v456
      %v459 = vmul.f32 %v443, %v457
      %v460 = vmul.f32 %v444, %v458
      %v461 = vmax.f32 %v459, 0.0
      %v462 = vmax.f32 %v460, 0.0
      %v463 = vpack.c.bf16 %v462, %v461
      %v465 = vunpack.c.l.b16 %v463
      %v466 = vunpack.c.h.b16 %v463
      %v467 = vpack.c.b16 %v465, %v465
      %v468 = vpack.c.b16 %v466, %v466
      %vm471 = vcmask 519168
      %472 = vst.msk [vmem:[%s170] sm:$0xf] %vm471, %v467
      %473 = vst.msk [vmem:[%s170 + $0x4] sm:$0xf] %vm471, %v468
      %p474 = scmp.lt.s32.totalorder %s14, 1
      %s475 = scalar_select %p474, %s14, 1
      %s476 = smul.addr %s475, 2
      %s477 = smul.addr %s476, 4
      %s478 = scalar_lea.vmem %s3, %s477
      // Predicated region
      $region33: #{cyclegan_forward.57} parent=31 // pred_check
        %p479 = pneg %p100
      $region34: #{cyclegan_forward.57} parent=31 // pred_check_branch
        %481 = sbr.rel (%p479) target = $region36
      $region35: #{cyclegan_forward.57} parent=31 // pred_region
        _
      $region36: #{cyclegan_forward.57} parent=31 // pred_fallthru
        _
    $region32: #{cyclegan_forward.57} parent=5 // pred_fallthru
      _
    %p482 = scmp.le.s32.totalorder 2, %s9
    // Predicated region
    $region37: #{cyclegan_forward.57} parent=5 // pred_check
      %p483 = pneg %p482
    $region38: #{cyclegan_forward.57} parent=5 // pred_check_branch
      %485 = sbr.rel (%p483) target = $region40
    $region39: #{cyclegan_forward.57} parent=5 // pred_region
      %s486 = ssub.s32 %s9, 2
      // Predicated region
      $region41: #{cyclegan_forward.57} parent=39 // pred_check
        %p487 = pneg %p106
      $region42: #{cyclegan_forward.57} parent=39 // pred_check_branch
        %489 = sbr.rel (%p487) target = $region44
      $region43: #{cyclegan_forward.57} parent=39 // pred_region
        %p490 = scmp.lt.s32.totalorder %s15, 1
        %s491 = scalar_select %p490, %s15, 1
        %s492 = smul.addr %s491, 2
        %s493 = smul.addr %s492, 4
        %s494 = scalar_lea.vmem %s3, %s493
      $region44: #{cyclegan_forward.57} parent=39 // pred_fallthru
        _
    $region40: #{cyclegan_forward.57} parent=5 // pred_fallthru
      _
  $region6: #{cyclegan_forward.57} parent=0 // loop_footer
    %s13 = sadd.s32 1, %s9
  $region7: #{cyclegan_forward.57} parent=0 // loop_footer_branch
    %8 = sbr.rel target = $region3
  $region8: #{cyclegan_forward.57} parent=0 // loop_exit
    _

// kernel: cyclegan_forward.58
$region0: #{cyclegan_forward.58}
  #allocation0 [shape = 'u32[]', space=smem, size = 0x4, offset = 0x4, fixed_abs, tag = 'smem constant byte address 0x4 - core index']
  #allocation1 [shape = 'u32[144,128]{1,0:T(1,128)}', space=vmem, size = 0x12000, scoped, tag = 'internal scratch']
  %s0 = inlined_call_operand.vmem [shape: bf16[2,144,256], index: 0, kind: input, shape index: {}]
  %s1 = inlined_call_operand.vmem [shape: bf16[8,144], index: 1, kind: input, shape index: {}]
  %s2 = inlined_call_operand.vmem [shape: f32[8,1], index: 2, kind: input, shape index: {}]
  %s3 = inlined_call_operand.vmem [shape: bf16[2,8,256], index: 3, kind: output, shape index: {}]
  %s4 = sld [smem:[#allocation0]]
  $region45: #{cyclegan_forward.58} parent=0
    _
  %s6 = ssub.s32 1, %s4
  %s7 = scalar_select 0, %s6, %s4
  loop: start=0, step=1, limit=4
  $region2: #{cyclegan_forward.58} parent=0 // loop_pre_header
    _
  $region3: #{cyclegan_forward.58} parent=0 // loop_header
    %s9 = sphi 0, %s13
    %p10 = scmp.ge.s32.totalorder %s9, 4
    %s19 = sphi 0, %s21
    %s22 = sphi 0, %s19
    %s23 = sphi 0, %s22
    %s39 = sphi 0, %s23
    %s43 = sphi 0, %s43
    %s45 = sphi 0, %s43
    %s46 = sphi 0, %s45
    %s60 = sphi 0, %s46
    %s64 = sphi 0, %s64
    %s66 = sphi 0, %s64
    %s67 = sphi 0, %s66
    %s81 = sphi 0, %s67
    %s87 = sphi 0, %s89
    %s90 = sphi 0, %s87
    %s91 = sphi 0, %s90
    %s107 = sphi 0, %s91
  $region4: #{cyclegan_forward.58} parent=0 // loop_header_branch
    %12 = sbr.rel (%p10) target = $region8
  $region5: #{cyclegan_forward.58} parent=0 // loop_body
    %s14 = ssub.s32 %s9, 1
    %s15 = ssub.s32 %s9, 2
    %s16 = sadd.s32 %s9, 1
    %s17 = ssub.s32 %s9, %s16
    %p18 = scmp.eq.s32.totalorder %s17, 0
    %s20 = sadd.s32 %s19, 1
    %s21 = scalar_select %p18, %s19, %s20
    %p24 = pneg %p18
    %p25 = scmp.eq.s32.totalorder %s9, 1
    %p26 = por %p24, %p25
    %p27 = scmp.ne.s32.totalorder %s19, %s22
    %p28 = scmp.eq.s32.totalorder %s9, 0
    %p29 = por %p27, %p28
    %p30 = scmp.ne.s32.totalorder %s19, %s22
    %p31 = scmp.eq.s32.totalorder %s14, 1
    %p32 = por %p30, %p31
    %p33 = scmp.ne.s32.totalorder %s22, %s23
    %p34 = scmp.eq.s32.totalorder %s14, 0
    %p35 = por %p33, %p34
    %p36 = scmp.ne.s32.totalorder %s22, %s23
    %p37 = scmp.eq.s32.totalorder %s15, 1
    %p38 = por %p36, %p37
    %p40 = scmp.ne.s32.totalorder %s23, %s39
    %p41 = scmp.eq.s32.totalorder %s15, 0
    %p42 = por %p40, %p41
    %s44 = sadd.s32 %s43, 1
    %p47 = scmp.eq.s32.totalorder %s9, 1
    %p48 = scmp.ne.s32.totalorder %s43, %s45
    %p49 = scmp.eq.s32.totalorder %s9, 0
    %p50 = por %p48, %p49
    %p51 = scmp.ne.s32.totalorder %s43, %s45
    %p52 = scmp.eq.s32.totalorder %s14, 1
    %p53 = por %p51, %p52
    %p54 = scmp.ne.s32.totalorder %s45, %s46
    %p55 = scmp.eq.s32.totalorder %s14, 0
    %p56 = por %p54, %p55
    %p57 = scmp.ne.s32.totalorder %s45, %s46
    %p58 = scmp.eq.s32.totalorder %s15, 1
    %p59 = por %p57, %p58
    %p61 = scmp.ne.s32.totalorder %s46, %s60
    %p62 = scmp.eq.s32.totalorder %s15, 0
    %p63 = por %p61, %p62
    %s65 = sadd.s32 %s64, 1
    %p68 = scmp.eq.s32.totalorder %s9, 1
    %p69 = scmp.ne.s32.totalorder %s64, %s66
    %p70 = scmp.eq.s32.totalorder %s9, 0
    %p71 = por %p69, %p70
    %p72 = scmp.ne.s32.totalorder %s64, %s66
    %p73 = scmp.eq.s32.totalorder %s14, 1
    %p74 = por %p72, %p73
    %p75 = scmp.ne.s32.totalorder %s66, %s67
    %p76 = scmp.eq.s32.totalorder %s14, 0
    %p77 = por %p75, %p76
    %p78 = scmp.ne.s32.totalorder %s66, %s67
    %p79 = scmp.eq.s32.totalorder %s15, 1
    %p80 = por %p78, %p79
    %p82 = scmp.ne.s32.totalorder %s67, %s81
    %p83 = scmp.eq.s32.totalorder %s15, 0
    %p84 = por %p82, %p83
    %s85 = ssub.s32 %s9, %s16
    %p86 = scmp.eq.s32.totalorder %s85, 0
    %s88 = sadd.s32 %s87, 1
    %s89 = scalar_select %p86, %s87, %s88
    %p92 = pneg %p86
    %p93 = scmp.eq.s32.totalorder %s9, 1
    %p94 = por %p92, %p93
    %p95 = scmp.ne.s32.totalorder %s87, %s90
    %p96 = scmp.eq.s32.totalorder %s9, 0
    %p97 = por %p95, %p96
    %p98 = scmp.ne.s32.totalorder %s87, %s90
    %p99 = scmp.eq.s32.totalorder %s14, 1
    %p100 = por %p98, %p99
    %p101 = scmp.ne.s32.totalorder %s90, %s91
    %p102 = scmp.eq.s32.totalorder %s14, 0
    %p103 = por %p101, %p102
    %p104 = scmp.ne.s32.totalorder %s90, %s91
    %p105 = scmp.eq.s32.totalorder %s15, 1
    %p106 = por %p104, %p105
    %p108 = scmp.ne.s32.totalorder %s91, %s107
    %p109 = scmp.eq.s32.totalorder %s15, 0
    %p110 = por %p108, %p109
    %p111 = scmp.le.s32.totalorder 1, %s9
    %p112 = scmp.lt.s32.totalorder %s9, 3
    %p113 = pnand %p111, %p112
    %p114 = pneg %p113
    // Predicated region
    $region9: #{cyclegan_forward.58} parent=5 // pred_check
      _
    $region10: #{cyclegan_forward.58} parent=5 // pred_check_branch
      %116 = sbr.rel (%p113) target = $region12
    $region11: #{cyclegan_forward.58} parent=5 // pred_region
      %s117 = ssub.s32 %s9, 1
      // Predicated region
      $region13: #{cyclegan_forward.58} parent=11 // pred_check
        %p118 = pneg %p56
      $region14: #{cyclegan_forward.58} parent=11 // pred_check_branch
        %120 = sbr.rel (%p118) target = $region16
      $region15: #{cyclegan_forward.58} parent=11 // pred_region
        _
      $region16: #{cyclegan_forward.58} parent=11 // pred_fallthru
        _
      // Predicated region
      $region17: #{cyclegan_forward.58} parent=11 // pred_check
        %p121 = pneg %p77
      $region18: #{cyclegan_forward.58} parent=11 // pred_check_branch
        %123 = sbr.rel (%p121) target = $region20
      $region19: #{cyclegan_forward.58} parent=11 // pred_region
        _
      $region20: #{cyclegan_forward.58} parent=11 // pred_fallthru
        _
    $region12: #{cyclegan_forward.58} parent=5 // pred_fallthru
      _
    %p124 = scmp.lt.s32.totalorder %s9, 2
    // Predicated region
    $region21: #{cyclegan_forward.58} parent=5 // pred_check
      %p125 = pneg %p124
    $region22: #{cyclegan_forward.58} parent=5 // pred_check_branch
      %127 = sbr.rel (%p125) target = $region24
    $region23: #{cyclegan_forward.58} parent=5 // pred_region
      // Predicated region
      $region25: #{cyclegan_forward.58} parent=23 // pred_check
        %p128 = pneg %p29
      $region26: #{cyclegan_forward.58} parent=23 // pred_check_branch
        %130 = sbr.rel (%p128) target = $region28
      $region27: #{cyclegan_forward.58} parent=23 // pred_region
        %p131 = scmp.lt.s32.totalorder %s9, 1
        %s132 = scalar_select %p131, %s9, 1
        %s133 = smul.addr %s132, 36
        %s134 = smul.addr %s133, 4
        %s135 = scalar_lea.vmem %s0, %s134
      $region28: #{cyclegan_forward.58} parent=23 // pred_fallthru
        _
    $region24: #{cyclegan_forward.58} parent=5 // pred_fallthru
      _
    %p136 = scmp.le.s32.totalorder 1, %s9
    %p137 = scmp.lt.s32.totalorder %s9, 3
    %p138 = pnand %p136, %p137
    %p139 = pneg %p138
    // Predicated region
    $region29: #{cyclegan_forward.58} parent=5 // pred_check
      _
    $region30: #{cyclegan_forward.58} parent=5 // pred_check_branch
      %141 = sbr.rel (%p138) target = $region32
    $region31: #{cyclegan_forward.58} parent=5 // pred_region
      %s142 = ssub.s32 %s9, 1
      %p143 = scmp.lt.s32.totalorder %s14, 1
      %s144 = scalar_select %p143, %s14, 1
      %s145 = smul.addr %s144, 36
      %s146 = smul.addr %s145, 4
      %s147 = scalar_lea.vmem %s0, %s146
      %p148 = pneg %p35
      %p149 = pneg %p32
      %p150 = pneg %p56
      %p151 = pneg %p53
      %p152 = pneg %p77
      %p153 = pneg %p74
      %p154 = pneg %p103
      %p155 = pneg %p100
      %p156 = scmp.lt.s32.totalorder %s14, 1
      %s157 = scalar_select %p156, %s14, 1
      %s158 = smul.addr %s157, 2
      %s159 = smul.addr %s158, 4
      %s160 = scalar_lea.vmem %s3, %s159
      %p161 = scmp.lt.s32.totalorder %s14, 1
      %s162 = scalar_select %p161, %s14, 1
      %s163 = smul.addr %s162, 36
      %s164 = smul.addr %s163, 4
      %s165 = scalar_lea.vmem %s0, %s164
      %p166 = scmp.lt.s32.totalorder %s14, 1
      %s167 = scalar_select %p166, %s14, 1
      %s168 = smul.addr %s167, 2
      %s169 = smul.addr %s168, 4
      %s170 = scalar_lea.vmem %s3, %s169
      %v172 = vld [vmem:[%s1] sm:$0xff]
      %v173 = vld [vmem:[%s165] sm:$0xff]
      %v174 = vld [vmem:[%s165 + $0x8] sm:$0xff]
      %v175 = vld [vmem:[%s165 + $0x10] sm:$0xff]
      %v176 = vld [vmem:[%s165 + $0x18] sm:$0xff]
      %v177 = vld [vmem:[%s165 + $0x20] sm:$0xff]
      %v178 = vld [vmem:[%s165 + $0x28] sm:$0xff]
      %v179 = vld [vmem:[%s165 + $0x30] sm:$0xff]
      %v180 = vld [vmem:[%s165 + $0x38] sm:$0xff]
      %v181 = vld [vmem:[%s165 + $0x40] sm:$0xff]
      %v182 = vld [vmem:[%s165 + $0x48] sm:$0xff]
      %v183 = vld [vmem:[%s165 + $0x50] sm:$0xff]
      %v184 = vld [vmem:[%s165 + $0x58] sm:$0xff]
      %v185 = vld [vmem:[%s165 + $0x60] sm:$0xff]
      %v186 = vld [vmem:[%s165 + $0x68] sm:$0xff]
      %v187 = vld [vmem:[%s165 + $0x70] sm:$0xff]
      %v188 = vld [vmem:[%s165 + $0x78] sm:$0xff]
      %v189 = vld [vmem:[%s165 + $0x80] sm:$0xff]
      %v190 = vld [vmem:[%s165 + $0x88] sm:$0xff]
      %v191 = vld [vmem:[%s2] sm:$0xff]
      %193 = vset.pattern.permute.xlu0 0
      %194 = vperm.xlu0 %193, %v191
      %v195 = vpop.permute.xlu0 %194
      %v198 = vunpack.c.l.b16 %v172
      %v199 = vunpack.c.h.b16 %v172
      %v200 = vpack.c.b16 %v198, %v198
      %v201 = vpack.c.b16 %v199, %v199
      %v221 = vunpack.c.l.b16 %v173
      %v222 = vunpack.c.h.b16 %v173
      %v223 = vunpack.c.l.b16 %v174
      %v224 = vunpack.c.h.b16 %v174
      %v225 = vunpack.c.l.b16 %v175
      %v226 = vunpack.c.h.b16 %v175
      %v227 = vunpack.c.l.b16 %v176
      %v228 = vunpack.c.h.b16 %v176
      %v229 = vunpack.c.l.b16 %v177
      %v230 = vunpack.c.h.b16 %v177
      %v231 = vunpack.c.l.b16 %v178
      %v232 = vunpack.c.h.b16 %v178
      %v233 = vunpack.c.l.b16 %v179
      %v234 = vunpack.c.h.b16 %v179
      %v235 = vunpack.c.l.b16 %v180
      %v236 = vunpack.c.h.b16 %v180
      %v237 = vunpack.c.l.b16 %v181
      %v238 = vunpack.c.h.b16 %v181
      %v239 = vunpack.c.l.b16 %v182
      %v240 = vunpack.c.h.b16 %v182
      %v241 = vunpack.c.l.b16 %v183
      %v242 = vunpack.c.h.b16 %v183
      %v243 = vunpack.c.l.b16 %v184
      %v244 = vunpack.c.h.b16 %v184
      %v245 = vunpack.c.l.b16 %v185
      %v246 = vunpack.c.h.b16 %v185
      %v247 = vunpack.c.l.b16 %v186
      %v248 = vunpack.c.h.b16 %v186
      %v249 = vunpack.c.l.b16 %v187
      %v250 = vunpack.c.h.b16 %v187
      %v251 = vunpack.c.l.b16 %v188
      %v252 = vunpack.c.h.b16 %v188
      %v253 = vunpack.c.l.b16 %v189
      %v254 = vunpack.c.h.b16 %v189
      %v255 = vunpack.c.l.b16 %v190
      %v256 = vunpack.c.h.b16 %v190
      %v257 = vpack.c.b16 %v223, %v221
      %v258 = vpack.c.b16 %v224, %v222
      %v259 = vpack.c.b16 %v227, %v225
      %v260 = vpack.c.b16 %v228, %v226
      %v261 = vpack.c.b16 %v231, %v229
      %v262 = vpack.c.b16 %v232, %v230
      %v263 = vpack.c.b16 %v235, %v233
      %v264 = vpack.c.b16 %v236, %v234
      %v265 = vpack.c.b16 %v239, %v237
      %v266 = vpack.c.b16 %v240, %v238
      %v267 = vpack.c.b16 %v243, %v241
      %v268 = vpack.c.b16 %v244, %v242
      %v269 = vpack.c.b16 %v247, %v245
      %v270 = vpack.c.b16 %v248, %v246
      %v271 = vpack.c.b16 %v251, %v249
      %v272 = vpack.c.b16 %v252, %v250
      %v273 = vpack.c.b16 %v255, %v253
      %v274 = vpack.c.b16 %v256, %v254
      %vm293 = vcmask 130048
      %v295 = vsel %vm293, %v201, 0
      %297 = vmatprep.subr.bf16.mxu0 %v258
      %298 = vmatpush1.bf16.msra.mxu0 %v257
      %299 = vmatprep.subr.bf16.mxu0 %v260
      %300 = vmatpush1.bf16.msra.mxu0 %v259
      %301 = vmatprep.subr.bf16.mxu0 %v262
      %302 = vmatpush1.bf16.msra.mxu0 %v261
      %303 = vmatprep.subr.bf16.mxu0 %v264
      %304 = vmatpush1.bf16.msra.mxu0 %v263
      %305 = vmatprep.subr.bf16.mxu0 %v266
      %306 = vmatpush1.bf16.msra.mxu0 %v265
      %307 = vmatprep.subr.bf16.mxu0 %v268
      %308 = vmatpush1.bf16.msra.mxu0 %v267
      %309 = vmatprep.subr.bf16.mxu0 %v270
      %310 = vmatpush1.bf16.msra.mxu0 %v269
      %311 = vmatprep.subr.bf16.mxu0 %v272
      %312 = vmatpush1.bf16.msra.mxu0 %v271
      %313 = vmatprep.subr.bf16.mxu0 %v274
      %314 = vmatpush1.bf16.msra.mxu0 %v273
      %315 = vmatprep.subr.bf16.mxu0 0
      %316 = vmatpush1.bf16.msra.mxu0 0
      %317 = vmatprep.subr.bf16.mxu0 0
      %318 = vmatpush1.bf16.msra.mxu0 0
      %319 = vmatprep.subr.bf16.mxu0 0
      %320 = vmatpush1.bf16.msra.mxu0 0
      %321 = vmatprep.subr.bf16.mxu0 0
      %322 = vmatpush1.bf16.msra.mxu0 0
      %323 = vmatprep.subr.bf16.mxu0 0
      %324 = vmatpush1.bf16.msra.mxu0 0
      %325 = vmatprep.subr.bf16.mxu0 0
      %326 = vmatpush1.bf16.msra.mxu0 0
      %327 = vmatprep.subr.bf16.mxu0 0
      %328 = vmatpush1.bf16.msra.mxu0 0
      %329 = vmatprep.mubr.bf16.mxu0 %v295
      %330 = vmatmul.mubr.bf16.gmra.mrb[0].mxu0 %v200
      %v331 = vpop.f32.mrb[0].mxu0
      %v332 = vadd.f32 %v195, %v331
      %v333 = vpop.f32.mrb[0].mxu0
      %v334 = vadd.f32 %v195, %v333
      %v335 = vpop.f32.mrb[0].mxu0
      %v336 = vpop.f32.mrb[0].mxu0
      %337 = vdwg.mxu0
      %v338 = vadd.f32 %v332, %v334
      %339 = vadd.xlane.f32.xlu0 %v338
      %v340 = vpop.xlane.xlu0 %339
      %v341 = vrcp.pop 256.0
      %v342 = vmul.f32 %v340, %v341
      %v343 = vsub.f32 %v332, %v342
      %v344 = vsub.f32 %v334, %v342
      %v345 = vmul.f32 %v343, %v343
      %v346 = vmul.f32 %v344, %v344
      %v347 = vadd.f32 %v345, %v346
      %348 = vadd.xlane.f32.xlu0 %v347
      %v349 = vpop.xlane.xlu0 %348
      %v350 = vmul.f32 %v349, %v341
      %v351 = vadd.f32 %v350, 1e-05
      %v352 = vrsqrt.pop %v351
      %v353 = vmul.f32 %v343, %v352
      %v354 = vmul.f32 %v344, %v352
      %v355 = vmax.f32 %v353, 0.0
      %v356 = vmax.f32 %v354, 0.0
      %v357 = vpack.c.bf16 %v355, %v355
      %v358 = vpack.c.bf16 %v356, %v356
      %v361 = vunpack.c.l.b16 %v357
      %v362 = vunpack.c.l.b16 %v358
      %v363 = vpack.c.b16 %v362, %v361
      %365 = vst [vmem:[%s170] sm:$0xff] %v363
      %p366 = scmp.lt.s32.totalorder %s14, 1
      %s367 = scalar_select %p366, %s14, 1
      %s368 = smul.addr %s367, 2
      %s369 = smul.addr %s368, 4
      %s370 = scalar_lea.vmem %s3, %s369
      // Predicated region
      $region33: #{cyclegan_forward.58} parent=31 // pred_check
        %p371 = pneg %p100
      $region34: #{cyclegan_forward.58} parent=31 // pred_check_branch
        %373 = sbr.rel (%p371) target = $region36
      $region35: #{cyclegan_forward.58} parent=31 // pred_region
        _
      $region36: #{cyclegan_forward.58} parent=31 // pred_fallthru
        _
    $region32: #{cyclegan_forward.58} parent=5 // pred_fallthru
      _
    %p374 = scmp.le.s32.totalorder 2, %s9
    // Predicated region
    $region37: #{cyclegan_forward.58} parent=5 // pred_check
      %p375 = pneg %p374
    $region38: #{cyclegan_forward.58} parent=5 // pred_check_branch
      %377 = sbr.rel (%p375) target = $region40
    $region39: #{cyclegan_forward.58} parent=5 // pred_region
      %s378 = ssub.s32 %s9, 2
      // Predicated region
      $region41: #{cyclegan_forward.58} parent=39 // pred_check
        %p379 = pneg %p106
      $region42: #{cyclegan_forward.58} parent=39 // pred_check_branch
        %381 = sbr.rel (%p379) target = $region44
      $region43: #{cyclegan_forward.58} parent=39 // pred_region
        %p382 = scmp.lt.s32.totalorder %s15, 1
        %s383 = scalar_select %p382, %s15, 1
        %s384 = smul.addr %s383, 2
        %s385 = smul.addr %s384, 4
        %s386 = scalar_lea.vmem %s3, %s385
      $region44: #{cyclegan_forward.58} parent=39 // pred_fallthru
        _
    $region40: #{cyclegan_forward.58} parent=5 // pred_fallthru
      _
  $region6: #{cyclegan_forward.58} parent=0 // loop_footer
    %s13 = sadd.s32 1, %s9
  $region7: #{cyclegan_forward.58} parent=0 // loop_footer_branch
    %8 = sbr.rel target = $region3
  $region8: #{cyclegan_forward.58} parent=0 // loop_exit
    _

// kernel: cyclegan_forward.59
$region0: #{cyclegan_forward.59}
  #allocation0 [shape = 'u32[]', space=smem, size = 0x4, offset = 0x4, fixed_abs, tag = 'smem constant byte address 0x4 - core index']
  #allocation1 [shape = 'u32[144,128]{1,0:T(1,128)}', space=vmem, size = 0x12000, scoped, tag = 'internal scratch']
  %s0 = inlined_call_operand.vmem [shape: bf16[2,392,256], index: 0, kind: input, shape index: {}]
  %s1 = inlined_call_operand.vmem [shape: bf16[3,392], index: 1, kind: input, shape index: {}]
  %s2 = inlined_call_operand.vmem [shape: f32[3,1], index: 2, kind: input, shape index: {}]
  %s3 = inlined_call_operand.vmem [shape: f32[2,3,256], index: 3, kind: output, shape index: {}]
  %s4 = sld [smem:[#allocation0]]
  $region45: #{cyclegan_forward.59} parent=0
    _
  %s6 = ssub.s32 1, %s4
  %s7 = scalar_select 0, %s6, %s4
  loop: start=0, step=1, limit=4
  $region2: #{cyclegan_forward.59} parent=0 // loop_pre_header
    _
  $region3: #{cyclegan_forward.59} parent=0 // loop_header
    %s9 = sphi 0, %s13
    %p10 = scmp.ge.s32.totalorder %s9, 4
    %s19 = sphi 0, %s21
    %s22 = sphi 0, %s19
    %s23 = sphi 0, %s22
    %s39 = sphi 0, %s23
    %s43 = sphi 0, %s43
    %s45 = sphi 0, %s43
    %s46 = sphi 0, %s45
    %s60 = sphi 0, %s46
    %s64 = sphi 0, %s64
    %s66 = sphi 0, %s64
    %s67 = sphi 0, %s66
    %s81 = sphi 0, %s67
    %s87 = sphi 0, %s89
    %s90 = sphi 0, %s87
    %s91 = sphi 0, %s90
    %s107 = sphi 0, %s91
  $region4: #{cyclegan_forward.59} parent=0 // loop_header_branch
    %12 = sbr.rel (%p10) target = $region8
  $region5: #{cyclegan_forward.59} parent=0 // loop_body
    %s14 = ssub.s32 %s9, 1
    %s15 = ssub.s32 %s9, 2
    %s16 = sadd.s32 %s9, 1
    %s17 = ssub.s32 %s9, %s16
    %p18 = scmp.eq.s32.totalorder %s17, 0
    %s20 = sadd.s32 %s19, 1
    %s21 = scalar_select %p18, %s19, %s20
    %p24 = pneg %p18
    %p25 = scmp.eq.s32.totalorder %s9, 1
    %p26 = por %p24, %p25
    %p27 = scmp.ne.s32.totalorder %s19, %s22
    %p28 = scmp.eq.s32.totalorder %s9, 0
    %p29 = por %p27, %p28
    %p30 = scmp.ne.s32.totalorder %s19, %s22
    %p31 = scmp.eq.s32.totalorder %s14, 1
    %p32 = por %p30, %p31
    %p33 = scmp.ne.s32.totalorder %s22, %s23
    %p34 = scmp.eq.s32.totalorder %s14, 0
    %p35 = por %p33, %p34
    %p36 = scmp.ne.s32.totalorder %s22, %s23
    %p37 = scmp.eq.s32.totalorder %s15, 1
    %p38 = por %p36, %p37
    %p40 = scmp.ne.s32.totalorder %s23, %s39
    %p41 = scmp.eq.s32.totalorder %s15, 0
    %p42 = por %p40, %p41
    %s44 = sadd.s32 %s43, 1
    %p47 = scmp.eq.s32.totalorder %s9, 1
    %p48 = scmp.ne.s32.totalorder %s43, %s45
    %p49 = scmp.eq.s32.totalorder %s9, 0
    %p50 = por %p48, %p49
    %p51 = scmp.ne.s32.totalorder %s43, %s45
    %p52 = scmp.eq.s32.totalorder %s14, 1
    %p53 = por %p51, %p52
    %p54 = scmp.ne.s32.totalorder %s45, %s46
    %p55 = scmp.eq.s32.totalorder %s14, 0
    %p56 = por %p54, %p55
    %p57 = scmp.ne.s32.totalorder %s45, %s46
    %p58 = scmp.eq.s32.totalorder %s15, 1
    %p59 = por %p57, %p58
    %p61 = scmp.ne.s32.totalorder %s46, %s60
    %p62 = scmp.eq.s32.totalorder %s15, 0
    %p63 = por %p61, %p62
    %s65 = sadd.s32 %s64, 1
    %p68 = scmp.eq.s32.totalorder %s9, 1
    %p69 = scmp.ne.s32.totalorder %s64, %s66
    %p70 = scmp.eq.s32.totalorder %s9, 0
    %p71 = por %p69, %p70
    %p72 = scmp.ne.s32.totalorder %s64, %s66
    %p73 = scmp.eq.s32.totalorder %s14, 1
    %p74 = por %p72, %p73
    %p75 = scmp.ne.s32.totalorder %s66, %s67
    %p76 = scmp.eq.s32.totalorder %s14, 0
    %p77 = por %p75, %p76
    %p78 = scmp.ne.s32.totalorder %s66, %s67
    %p79 = scmp.eq.s32.totalorder %s15, 1
    %p80 = por %p78, %p79
    %p82 = scmp.ne.s32.totalorder %s67, %s81
    %p83 = scmp.eq.s32.totalorder %s15, 0
    %p84 = por %p82, %p83
    %s85 = ssub.s32 %s9, %s16
    %p86 = scmp.eq.s32.totalorder %s85, 0
    %s88 = sadd.s32 %s87, 1
    %s89 = scalar_select %p86, %s87, %s88
    %p92 = pneg %p86
    %p93 = scmp.eq.s32.totalorder %s9, 1
    %p94 = por %p92, %p93
    %p95 = scmp.ne.s32.totalorder %s87, %s90
    %p96 = scmp.eq.s32.totalorder %s9, 0
    %p97 = por %p95, %p96
    %p98 = scmp.ne.s32.totalorder %s87, %s90
    %p99 = scmp.eq.s32.totalorder %s14, 1
    %p100 = por %p98, %p99
    %p101 = scmp.ne.s32.totalorder %s90, %s91
    %p102 = scmp.eq.s32.totalorder %s14, 0
    %p103 = por %p101, %p102
    %p104 = scmp.ne.s32.totalorder %s90, %s91
    %p105 = scmp.eq.s32.totalorder %s15, 1
    %p106 = por %p104, %p105
    %p108 = scmp.ne.s32.totalorder %s91, %s107
    %p109 = scmp.eq.s32.totalorder %s15, 0
    %p110 = por %p108, %p109
    %p111 = scmp.le.s32.totalorder 1, %s9
    %p112 = scmp.lt.s32.totalorder %s9, 3
    %p113 = pnand %p111, %p112
    %p114 = pneg %p113
    // Predicated region
    $region9: #{cyclegan_forward.59} parent=5 // pred_check
      _
    $region10: #{cyclegan_forward.59} parent=5 // pred_check_branch
      %116 = sbr.rel (%p113) target = $region12
    $region11: #{cyclegan_forward.59} parent=5 // pred_region
      %s117 = ssub.s32 %s9, 1
      // Predicated region
      $region13: #{cyclegan_forward.59} parent=11 // pred_check
        %p118 = pneg %p56
      $region14: #{cyclegan_forward.59} parent=11 // pred_check_branch
        %120 = sbr.rel (%p118) target = $region16
      $region15: #{cyclegan_forward.59} parent=11 // pred_region
        _
      $region16: #{cyclegan_forward.59} parent=11 // pred_fallthru
        _
      // Predicated region
      $region17: #{cyclegan_forward.59} parent=11 // pred_check
        %p121 = pneg %p77
      $region18: #{cyclegan_forward.59} parent=11 // pred_check_branch
        %123 = sbr.rel (%p121) target = $region20
      $region19: #{cyclegan_forward.59} parent=11 // pred_region
        _
      $region20: #{cyclegan_forward.59} parent=11 // pred_fallthru
        _
    $region12: #{cyclegan_forward.59} parent=5 // pred_fallthru
      _
    %p124 = scmp.lt.s32.totalorder %s9, 2
    // Predicated region
    $region21: #{cyclegan_forward.59} parent=5 // pred_check
      %p125 = pneg %p124
    $region22: #{cyclegan_forward.59} parent=5 // pred_check_branch
      %127 = sbr.rel (%p125) target = $region24
    $region23: #{cyclegan_forward.59} parent=5 // pred_region
      // Predicated region
      $region25: #{cyclegan_forward.59} parent=23 // pred_check
        %p128 = pneg %p29
      $region26: #{cyclegan_forward.59} parent=23 // pred_check_branch
        %130 = sbr.rel (%p128) target = $region28
      $region27: #{cyclegan_forward.59} parent=23 // pred_region
        %p131 = scmp.lt.s32.totalorder %s9, 1
        %s132 = scalar_select %p131, %s9, 1
        %s133 = smul.addr %s132, 98
        %s134 = smul.addr %s133, 4
        %s135 = scalar_lea.vmem %s0, %s134
      $region28: #{cyclegan_forward.59} parent=23 // pred_fallthru
        _
    $region24: #{cyclegan_forward.59} parent=5 // pred_fallthru
      _
    %p136 = scmp.le.s32.totalorder 1, %s9
    %p137 = scmp.lt.s32.totalorder %s9, 3
    %p138 = pnand %p136, %p137
    %p139 = pneg %p138
    // Predicated region
    $region29: #{cyclegan_forward.59} parent=5 // pred_check
      _
    $region30: #{cyclegan_forward.59} parent=5 // pred_check_branch
      %141 = sbr.rel (%p138) target = $region32
    $region31: #{cyclegan_forward.59} parent=5 // pred_region
      %s142 = ssub.s32 %s9, 1
      %p143 = scmp.lt.s32.totalorder %s14, 1
      %s144 = scalar_select %p143, %s14, 1
      %s145 = smul.addr %s144, 98
      %s146 = smul.addr %s145, 4
      %s147 = scalar_lea.vmem %s0, %s146
      %p148 = pneg %p35
      %p149 = pneg %p32
      %p150 = pneg %p56
      %p151 = pneg %p53
      %p152 = pneg %p77
      %p153 = pneg %p74
      %p154 = pneg %p103
      %p155 = pneg %p100
      %p156 = scmp.lt.s32.totalorder %s14, 1
      %s157 = scalar_select %p156, %s14, 1
      %s158 = smul.addr %s157, 2
      %s159 = smul.addr %s158, 4
      %s160 = scalar_lea.vmem %s3, %s159
      %p161 = scmp.lt.s32.totalorder %s14, 1
      %s162 = scalar_select %p161, %s14, 1
      %s163 = smul.addr %s162, 98
      %s164 = smul.addr %s163, 4
      %s165 = scalar_lea.vmem %s0, %s164
      %p166 = scmp.lt.s32.totalorder %s14, 1
      %s167 = scalar_select %p166, %s14, 1
      %s168 = smul.addr %s167, 2
      %s169 = smul.addr %s168, 4
      %s170 = scalar_lea.vmem %s3, %s169
      %v172 = vld [vmem:[%s1] sm:$0xff]
      %v173 = vld [vmem:[%s165] sm:$0xff]
      %v174 = vld [vmem:[%s165 + $0x8] sm:$0xff]
      %v175 = vld [vmem:[%s165 + $0x10] sm:$0xff]
      %v176 = vld [vmem:[%s165 + $0x18] sm:$0xff]
      %v177 = vld [vmem:[%s165 + $0x20] sm:$0xff]
      %v178 = vld [vmem:[%s165 + $0x28] sm:$0xff]
      %v179 = vld [vmem:[%s165 + $0x30] sm:$0xff]
      %v180 = vld [vmem:[%s165 + $0x38] sm:$0xff]
      %v181 = vld [vmem:[%s165 + $0x40] sm:$0xff]
      %v182 = vld [vmem:[%s165 + $0x48] sm:$0xff]
      %v183 = vld [vmem:[%s165 + $0x50] sm:$0xff]
      %v184 = vld [vmem:[%s165 + $0x58] sm:$0xff]
      %v185 = vld [vmem:[%s165 + $0x60] sm:$0xff]
      %v186 = vld [vmem:[%s165 + $0x68] sm:$0xff]
      %v187 = vld [vmem:[%s165 + $0x70] sm:$0xff]
      %v188 = vld [vmem:[%s165 + $0x78] sm:$0xff]
      %v189 = vld [vmem:[%s165 + $0x80] sm:$0xff]
      %v190 = vld [vmem:[%s165 + $0x88] sm:$0xff]
      %v191 = vld [vmem:[%s165 + $0x90] sm:$0xff]
      %v192 = vld [vmem:[%s165 + $0x98] sm:$0xff]
      %v193 = vld [vmem:[%s165 + $0xa0] sm:$0xff]
      %v194 = vld [vmem:[%s165 + $0xa8] sm:$0xff]
      %v195 = vld [vmem:[%s165 + $0xb0] sm:$0xff]
      %v196 = vld [vmem:[%s165 + $0xb8] sm:$0xff]
      %v197 = vld [vmem:[%s165 + $0xc0] sm:$0xff]
      %v198 = vld [vmem:[%s165 + $0xc8] sm:$0xff]
      %v199 = vld [vmem:[%s165 + $0xd0] sm:$0xff]
      %v200 = vld [vmem:[%s165 + $0xd8] sm:$0xff]
      %v201 = vld [vmem:[%s165 + $0xe0] sm:$0xff]
      %v202 = vld [vmem:[%s165 + $0xe8] sm:$0xff]
      %v203 = vld [vmem:[%s165 + $0xf0] sm:$0xff]
      %v204 = vld [vmem:[%s165 + $0xf8] sm:$0xff]
      %v205 = vld [vmem:[%s165 + $0x100] sm:$0xff]
      %v206 = vld [vmem:[%s165 + $0x108] sm:$0xff]
      %v207 = vld [vmem:[%s165 + $0x110] sm:$0xff]
      %v208 = vld [vmem:[%s165 + $0x118] sm:$0xff]
      %v209 = vld [vmem:[%s165 + $0x120] sm:$0xff]
      %v210 = vld [vmem:[%s165 + $0x128] sm:$0xff]
      %v211 = vld [vmem:[%s165 + $0x130] sm:$0xff]
      %v212 = vld [vmem:[%s165 + $0x138] sm:$0xff]
      %v213 = vld [vmem:[%s165 + $0x140] sm:$0xff]
      %v214 = vld [vmem:[%s165 + $0x148] sm:$0xff]
      %v215 = vld [vmem:[%s165 + $0x150] sm:$0xff]
      %v216 = vld [vmem:[%s165 + $0x158] sm:$0xff]
      %v217 = vld [vmem:[%s165 + $0x160] sm:$0xff]
      %v218 = vld [vmem:[%s165 + $0x168] sm:$0xff]
      %v219 = vld [vmem:[%s165 + $0x170] sm:$0xff]
      %v220 = vld [vmem:[%s165 + $0x178] sm:$0xff]
      %v221 = vld [vmem:[%s165 + $0x180] sm:$0xff]
      %v222 = vld [vmem:[%s2] sm:$0x7]
      %224 = vset.pattern.permute.xlu0 0
      %225 = vperm.xlu0 %224, %v222
      %v226 = vpop.permute.xlu0 %225
      %v229 = vcombine.high %v172, %v172
      %v231 = vunpack.c.l.s4 1983009808
      %v232 = vunpack.c.0.s8 %v231
      %v233 = vlaneseq
      %v234 = vshrl.u32 %v233, 7
      %v235 = vsub.s32 %v232, %v234
      %v236 = vrot.slane %v172, %v235
      %v238 = vunpack.c.l.s4 1983009808
      %v239 = vunpack.c.0.s8 %v238
      %v240 = vlaneseq
      %v241 = vshrl.u32 %v240, 7
      %v242 = vsub.s32 %v239, %v241
      %v243 = vrot.slane %v229, %v242
      %v244 = vcombine.high %v236, %v236
      %v245 = vcombine.high %v243, %v243
      %v298 = vunpack.c.l.b16 %v173
      %v299 = vunpack.c.h.b16 %v173
      %v300 = vunpack.c.l.b16 %v174
      %v301 = vunpack.c.h.b16 %v174
      %v302 = vunpack.c.l.b16 %v175
      %v303 = vunpack.c.h.b16 %v175
      %v304 = vunpack.c.l.b16 %v176
      %v305 = vunpack.c.h.b16 %v176
      %v306 = vunpack.c.l.b16 %v177
      %v307 = vunpack.c.h.b16 %v177
      %v308 = vunpack.c.l.b16 %v178
      %v309 = vunpack.c.h.b16 %v178
      %v310 = vunpack.c.l.b16 %v179
      %v311 = vunpack.c.h.b16 %v179
      %v312 = vunpack.c.l.b16 %v180
      %v313 = vunpack.c.h.b16 %v180
      %v314 = vunpack.c.l.b16 %v181
      %v315 = vunpack.c.h.b16 %v181
      %v316 = vunpack.c.l.b16 %v182
      %v317 = vunpack.c.h.b16 %v182
      %v318 = vunpack.c.l.b16 %v183
      %v319 = vunpack.c.h.b16 %v183
      %v320 = vunpack.c.l.b16 %v184
      %v321 = vunpack.c.h.b16 %v184
      %v322 = vunpack.c.l.b16 %v185
      %v323 = vunpack.c.h.b16 %v185
      %v324 = vunpack.c.l.b16 %v186
      %v325 = vunpack.c.h.b16 %v186
      %v326 = vunpack.c.l.b16 %v187
      %v327 = vunpack.c.h.b16 %v187
      %v328 = vunpack.c.l.b16 %v188
      %v329 = vunpack.c.h.b16 %v188
      %v330 = vunpack.c.l.b16 %v189
      %v331 = vunpack.c.h.b16 %v189
      %v332 = vunpack.c.l.b16 %v190
      %v333 = vunpack.c.h.b16 %v190
      %v334 = vunpack.c.l.b16 %v191
      %v335 = vunpack.c.h.b16 %v191
      %v336 = vunpack.c.l.b16 %v192
      %v337 = vunpack.c.h.b16 %v192
      %v338 = vunpack.c.l.b16 %v193
      %v339 = vunpack.c.h.b16 %v193
      %v340 = vunpack.c.l.b16 %v194
      %v341 = vunpack.c.h.b16 %v194
      %v342 = vunpack.c.l.b16 %v195
      %v343 = vunpack.c.h.b16 %v195
      %v344 = vunpack.c.l.b16 %v196
      %v345 = vunpack.c.h.b16 %v196
      %v346 = vunpack.c.l.b16 %v197
      %v347 = vunpack.c.h.b16 %v197
      %v348 = vunpack.c.l.b16 %v198
      %v349 = vunpack.c.h.b16 %v198
      %v350 = vunpack.c.l.b16 %v199
      %v351 = vunpack.c.h.b16 %v199
      %v352 = vunpack.c.l.b16 %v200
      %v353 = vunpack.c.h.b16 %v200
      %v354 = vunpack.c.l.b16 %v201
      %v355 = vunpack.c.h.b16 %v201
      %v356 = vunpack.c.l.b16 %v202
      %v357 = vunpack.c.h.b16 %v202
      %v358 = vunpack.c.l.b16 %v203
      %v359 = vunpack.c.h.b16 %v203
      %v360 = vunpack.c.l.b16 %v204
      %v361 = vunpack.c.h.b16 %v204
      %v362 = vunpack.c.l.b16 %v205
      %v363 = vunpack.c.h.b16 %v205
      %v364 = vunpack.c.l.b16 %v206
      %v365 = vunpack.c.h.b16 %v206
      %v366 = vunpack.c.l.b16 %v207
      %v367 = vunpack.c.h.b16 %v207
      %v368 = vunpack.c.l.b16 %v208
      %v369 = vunpack.c.h.b16 %v208
      %v370 = vunpack.c.l.b16 %v209
      %v371 = vunpack.c.h.b16 %v209
      %v372 = vunpack.c.l.b16 %v210
      %v373 = vunpack.c.h.b16 %v210
      %v374 = vunpack.c.l.b16 %v211
      %v375 = vunpack.c.h.b16 %v211
      %v376 = vunpack.c.l.b16 %v212
      %v377 = vunpack.c.h.b16 %v212
      %v378 = vunpack.c.l.b16 %v213
      %v379 = vunpack.c.h.b16 %v213
      %v380 = vunpack.c.l.b16 %v214
      %v381 = vunpack.c.h.b16 %v214
      %v382 = vunpack.c.l.b16 %v215
      %v383 = vunpack.c.h.b16 %v215
      %v384 = vunpack.c.l.b16 %v216
      %v385 = vunpack.c.h.b16 %v216
      %v386 = vunpack.c.l.b16 %v217
      %v387 = vunpack.c.h.b16 %v217
      %v388 = vunpack.c.l.b16 %v218
      %v389 = vunpack.c.h.b16 %v218
      %v390 = vunpack.c.l.b16 %v219
      %v391 = vunpack.c.h.b16 %v219
      %v392 = vunpack.c.l.b16 %v220
      %v393 = vunpack.c.h.b16 %v220
      %v394 = vunpack.c.l.b16 %v221
      %v395 = vunpack.c.h.b16 %v221
      %v396 = vpack.c.b16 %v300, %v298
      %v397 = vpack.c.b16 %v301, %v299
      %v398 = vpack.c.b16 %v304, %v302
      %v399 = vpack.c.b16 %v305, %v303
      %v400 = vpack.c.b16 %v308, %v306
      %v401 = vpack.c.b16 %v309, %v307
      %v402 = vpack.c.b16 %v312, %v310
      %v403 = vpack.c.b16 %v313, %v311
      %v404 = vpack.c.b16 %v316, %v314
      %v405 = vpack.c.b16 %v317, %v315
      %v406 = vpack.c.b16 %v320, %v318
      %v407 = vpack.c.b16 %v321, %v319
      %v408 = vpack.c.b16 %v324, %v322
      %v409 = vpack.c.b16 %v325, %v323
      %v410 = vpack.c.b16 %v328, %v326
      %v411 = vpack.c.b16 %v329, %v327
      %v412 = vpack.c.b16 %v332, %v330
      %v413 = vpack.c.b16 %v333, %v331
      %v414 = vpack.c.b16 %v336, %v334
      %v415 = vpack.c.b16 %v337, %v335
      %v416 = vpack.c.b16 %v340, %v338
      %v417 = vpack.c.b16 %v341, %v339
      %v418 = vpack.c.b16 %v344, %v342
      %v419 = vpack.c.b16 %v345, %v343
      %v420 = vpack.c.b16 %v348, %v346
      %v421 = vpack.c.b16 %v349, %v347
      %v422 = vpack.c.b16 %v352, %v350
      %v423 = vpack.c.b16 %v353, %v351
      %v424 = vpack.c.b16 %v356, %v354
      %v425 = vpack.c.b16 %v357, %v355
      %v426 = vpack.c.b16 %v360, %v358
      %v427 = vpack.c.b16 %v361, %v359
      %v428 = vpack.c.b16 %v364, %v362
      %v429 = vpack.c.b16 %v365, %v363
      %v430 = vpack.c.b16 %v368, %v366
      %v431 = vpack.c.b16 %v369, %v367
      %v432 = vpack.c.b16 %v372, %v370
      %v433 = vpack.c.b16 %v373, %v371
      %v434 = vpack.c.b16 %v376, %v374
      %v435 = vpack.c.b16 %v377, %v375
      %v436 = vpack.c.b16 %v380, %v378
      %v437 = vpack.c.b16 %v381, %v379
      %v438 = vpack.c.b16 %v384, %v382
      %v439 = vpack.c.b16 %v385, %v383
      %v440 = vpack.c.b16 %v388, %v386
      %v441 = vpack.c.b16 %v389, %v387
      %v442 = vpack.c.b16 %v392, %v390
      %v443 = vpack.c.b16 %v393, %v391
      %v444 = vpack.c.b16 %v394, %v394
      %v445 = vpack.c.b16 %v395, %v395
      %vm494 = vcmask 64512
      %v496 = vsel %vm494, %v245, 0
      %vm498 = vcmask 1043456
      %v500 = vsel %vm498, %v444, 0
      %v503 = vsel %vm498, %v445, 0
      %505 = vmatprep.subr.bf16.mxu0 %v397
      %506 = vmatpush1.bf16.msra.mxu0 %v396
      %507 = vmatprep.subr.bf16.mxu0 %v399
      %508 = vmatpush1.bf16.msra.mxu0 %v398
      %509 = vmatprep.subr.bf16.mxu0 %v401
      %510 = vmatpush1.bf16.msra.mxu0 %v400
      %511 = vmatprep.subr.bf16.mxu0 %v403
      %512 = vmatpush1.bf16.msra.mxu0 %v402
      %513 = vmatprep.subr.bf16.mxu0 %v405
      %514 = vmatpush1.bf16.msra.mxu0 %v404
      %515 = vmatprep.subr.bf16.mxu0 %v407
      %516 = vmatpush1.bf16.msra.mxu0 %v406
      %517 = vmatprep.subr.bf16.mxu0 %v409
      %518 = vmatpush1.bf16.msra.mxu0 %v408
      %519 = vmatprep.subr.bf16.mxu0 %v411
      %520 = vmatpush1.bf16.msra.mxu0 %v410
      %521 = vmatprep.subr.bf16.mxu0 %v413
      %522 = vmatpush1.bf16.msra.mxu0 %v412
      %523 = vmatprep.subr.bf16.mxu0 %v415
      %524 = vmatpush1.bf16.msra.mxu0 %v414
      %525 = vmatprep.subr.bf16.mxu0 %v417
      %526 = vmatpush1.bf16.msra.mxu0 %v416
      %527 = vmatprep.subr.bf16.mxu0 %v419
      %528 = vmatpush1.bf16.msra.mxu0 %v418
      %529 = vmatprep.subr.bf16.mxu0 %v421
      %530 = vmatpush1.bf16.msra.mxu0 %v420
      %531 = vmatprep.subr.bf16.mxu0 %v423
      %532 = vmatpush1.bf16.msra.mxu0 %v422
      %533 = vmatprep.subr.bf16.mxu0 %v425
      %534 = vmatpush1.bf16.msra.mxu0 %v424
      %535 = vmatprep.subr.bf16.mxu0 %v427
      %536 = vmatpush1.bf16.msra.mxu0 %v426
      %537 = vmatprep.mubr.bf16.mxu0 %v244
      %538 = vmatmul.mubr.bf16.gmra.mrb[0].mxu0 %v236
      %v539 = vpop.f32.mrb[0].mxu0
      %v540 = vadd.f32 %v226, %v539
      %v541 = vpop.f32.mrb[0].mxu0
      %v542 = vadd.f32 %v226, %v541
      %v543 = vpop.f32.mrb[0].mxu0
      %v544 = vpop.f32.mrb[0].mxu0
      %545 = vdwg.mxu0
      %546 = vmatprep.subr.bf16.mxu0 %v429
      %547 = vmatpush1.bf16.msra.mxu0 %v428
      %548 = vmatprep.subr.bf16.mxu0 %v431
      %549 = vmatpush1.bf16.msra.mxu0 %v430
      %550 = vmatprep.subr.bf16.mxu0 %v433
      %551 = vmatpush1.bf16.msra.mxu0 %v432
      %552 = vmatprep.subr.bf16.mxu0 %v435
      %553 = vmatpush1.bf16.msra.mxu0 %v434
      %554 = vmatprep.subr.bf16.mxu0 %v437
      %555 = vmatpush1.bf16.msra.mxu0 %v436
      %556 = vmatprep.subr.bf16.mxu0 %v439
      %557 = vmatpush1.bf16.msra.mxu0 %v438
      %558 = vmatprep.subr.bf16.mxu0 %v441
      %559 = vmatpush1.bf16.msra.mxu0 %v440
      %560 = vmatprep.subr.bf16.mxu0 %v443
      %561 = vmatpush1.bf16.msra.mxu0 %v442
      %562 = vmatprep.subr.bf16.mxu0 %v503
      %563 = vmatpush1.bf16.msra.mxu0 %v500
      %564 = vmatprep.subr.bf16.mxu0 0
      %565 = vmatpush1.bf16.msra.mxu0 0
      %566 = vmatprep.subr.bf16.mxu0 0
      %567 = vmatpush1.bf16.msra.mxu0 0
      %568 = vmatprep.subr.bf16.mxu0 0
      %569 = vmatpush1.bf16.msra.mxu0 0
      %570 = vmatprep.subr.bf16.mxu0 0
      %571 = vmatpush1.bf16.msra.mxu0 0
      %572 = vmatprep.subr.bf16.mxu0 0
      %573 = vmatpush1.bf16.msra.mxu0 0
      %574 = vmatprep.subr.bf16.mxu0 0
      %575 = vmatpush1.bf16.msra.mxu0 0
      %576 = vmatprep.subr.bf16.mxu0 0
      %577 = vmatpush1.bf16.msra.mxu0 0
      %578 = vmatprep.mubr.bf16.mxu0 %v496
      %579 = vmatmul.mubr.bf16.gmra.mrb[0].mxu0 %v243
      %v580 = vpop.f32.mrb[0].mxu0
      %v581 = vadd.f32 %v540, %v580
      %v582 = vpop.f32.mrb[0].mxu0
      %v583 = vadd.f32 %v542, %v582
      %v584 = vpop.f32.mrb[0].mxu0
      %v585 = vpop.f32.mrb[0].mxu0
      %586 = vdwg.mxu0
      %v587 = vtanh.pop %v581
      %v588 = vtanh.pop %v583
      %v591 = vcombine.low %v587, %v588
      %593 = vst [vmem:[%s170] sm:$0x77] %v591
      %p594 = scmp.lt.s32.totalorder %s14, 1
      %s595 = scalar_select %p594, %s14, 1
      %s596 = smul.addr %s595, 2
      %s597 = smul.addr %s596, 4
      %s598 = scalar_lea.vmem %s3, %s597
      // Predicated region
      $region33: #{cyclegan_forward.59} parent=31 // pred_check
        %p599 = pneg %p100
      $region34: #{cyclegan_forward.59} parent=31 // pred_check_branch
        %601 = sbr.rel (%p599) target = $region36
      $region35: #{cyclegan_forward.59} parent=31 // pred_region
        _
      $region36: #{cyclegan_forward.59} parent=31 // pred_fallthru
        _
    $region32: #{cyclegan_forward.59} parent=5 // pred_fallthru
      _
    %p602 = scmp.le.s32.totalorder 2, %s9
    // Predicated region
    $region37: #{cyclegan_forward.59} parent=5 // pred_check
      %p603 = pneg %p602
    $region38: #{cyclegan_forward.59} parent=5 // pred_check_branch
      %605 = sbr.rel (%p603) target = $region40
    $region39: #{cyclegan_forward.59} parent=5 // pred_region
      %s606 = ssub.s32 %s9, 2
      // Predicated region
      $region41: #{cyclegan_forward.59} parent=39 // pred_check
        %p607 = pneg %p106
      $region42: #{cyclegan_forward.59} parent=39 // pred_check_branch
        %609 = sbr.rel (%p607) target = $region44
      $region43: #{cyclegan_forward.59} parent=39 // pred_region
        %p610 = scmp.lt.s32.totalorder %s15, 1
        %s611 = scalar_select %p610, %s15, 1
        %s612 = smul.addr %s611, 2
        %s613 = smul.addr %s612, 4
        %s614 = scalar_lea.vmem %s3, %s613
      $region44: #{cyclegan_forward.59} parent=39 // pred_fallthru
        _
    $region40: #{cyclegan_forward.59} parent=5 // pred_fallthru
      _
  $region6: #{cyclegan_forward.59} parent=0 // loop_footer
    %s13 = sadd.s32 1, %s9
  $region7: #{cyclegan_forward.59} parent=0 // loop_footer_branch
    %8 = sbr.rel target = $region3
  $region8: #{cyclegan_forward.59} parent=0 // loop_exit
    _

</llo_original>
